<compile_context>
chip_gen: v5e
topology: v5e:2x2
jax: 0.10.0
libtpu: 0.0.40
codegen_flags: <defaults>
</compile_context>

<pallas_src>
import jax
import jax.numpy as jnp
from jax.experimental import pallas as pl
from jax.experimental.pallas import tpu as pltpu


_LN_EPS = 1e-5


# ----------------------------- in-kernel helpers -----------------------------

def _layernorm(x, gamma, beta):
    mean = jnp.mean(x, axis=-1, keepdims=True)
    var = jnp.mean((x - mean) ** 2, axis=-1, keepdims=True)
    return (x - mean) * jax.lax.rsqrt(var + _LN_EPS) * gamma + beta


def _gelu_exact(x):
    # nn.GELU() default: 0.5 * x * (1 + erf(x / sqrt(2)))
    return 0.5 * x * (1.0 + jax.lax.erf(x * 0.7071067811865476))


def _attn_block(x, ctx, p, cfg, self_attn):
    """PreNorm + multi-head attention + output projection + residual.

    x:   (Bt, n, d) f32 query/residual tokens.
    ctx: (Bt, m, d) f32 key/value tokens (raw, as in PyTorch PreNorm);
         ignored when self_attn=True (then context = norm(x), as the module).
    p:   refs -> vec (3,d) f32 rows [ln_g, ln_b, bo],
                 w_qkv (d, 3*heads*dh) bf16 (Q columns pre-scaled by dh**-0.5),
                 wo (heads*dh, d) bf16.
    """
    heads, dh = cfg["heads"], cfg["dim_head"]
    Bt, n, d = x.shape
    E = heads * dh

    vec = p["vec"][...]                                   # (3, d) f32
    ln_g, ln_b, bo = vec[0:1], vec[1:2], vec[2:3]
    w_qkv = p["w_qkv"][...]                               # (d, 3E) bf16
    wo = p["wo"][...]                                     # (E, d)  bf16

    xn = _layernorm(x, ln_g, ln_b)
    x2 = xn.reshape(Bt * n, d).astype(jnp.bfloat16)

    if self_attn:
        m = n
        qkv = jnp.dot(x2, w_qkv, preferred_element_type=jnp.float32)   # (Bt*n, 3E)
        q2, k2, v2 = qkv[:, :E], qkv[:, E:2 * E], qkv[:, 2 * E:]
    else:
        m = ctx.shape[1]
        c2 = ctx.reshape(Bt * m, d).astype(jnp.bfloat16)  # raw context (PreNorm quirk)
        q2 = jnp.dot(x2, w_qkv[:, :E], preferred_element_type=jnp.float32)
        kv = jnp.dot(c2, w_qkv[:, E:], preferred_element_type=jnp.float32)  # (Bt*m, 2E)
        k2, v2 = kv[:, :E], kv[:, E:]

    q3 = q2.reshape(Bt, n, E)
    k3 = k2.reshape(Bt, m, E)
    v3 = v2.reshape(Bt, m, E)

    # Per-head attention: inherently per-(batch, head); tiny batched 3-D
    # einsums over the Bt batch axis, heads unrolled statically.
    head_outs = []
    for h in range(heads):
        lo, hi = h * dh, (h + 1) * dh
        qh = q3[:, :, lo:hi].astype(jnp.bfloat16)         # (Bt, n, dh)
        kh = k3[:, :, lo:hi].astype(jnp.bfloat16)         # (Bt, m, dh)
        vh = v3[:, :, lo:hi].astype(jnp.bfloat16)         # (Bt, m, dh)
        dots = jnp.einsum("bne,bme->bnm", qh, kh,
                          preferred_element_type=jnp.float32)   # scale folded into wq
        dots = dots - jnp.max(dots, axis=-1, keepdims=True)
        e = jnp.exp(dots)
        attn = e * pl.reciprocal(jnp.sum(e, axis=-1, keepdims=True), approx=True)
        oh = jnp.einsum("bnm,bme->bne", attn.astype(jnp.bfloat16), vh,
                        preferred_element_type=jnp.float32)     # (Bt, n, dh)
        head_outs.append(oh)

    o = jnp.concatenate(head_outs, axis=-1) if heads > 1 else head_outs[0]  # (Bt,n,E)
    y = jnp.dot(o.reshape(Bt * n, E).astype(jnp.bfloat16), wo,
                preferred_element_type=jnp.float32)             # (Bt*n, d)
    y = y.reshape(Bt, n, d) + bo
    return x + y


def _ff_block(x, p):
    """PreNorm + FeedForward (Linear-GELU-Linear) + residual."""
    Bt, n, d = x.shape
    vec = p["vec"][...]                                   # (3, d): ln_g, ln_b, b2
    ln_g, ln_b, b2 = vec[0:1], vec[1:2], vec[2:3]
    b1 = p["b1"][...]                                     # (1, mlp_dim) f32
    w1 = p["w1"][...]                                     # (d, mlp_dim) bf16
    w2 = p["w2"][...]                                     # (mlp_dim, d) bf16

    xn = _layernorm(x, ln_g, ln_b)
    x2 = xn.reshape(Bt * n, d).astype(jnp.bfloat16)
    h = jnp.dot(x2, w1, preferred_element_type=jnp.float32) + b1
    h = _gelu_exact(h)
    y = jnp.dot(h.astype(jnp.bfloat16), w2, preferred_element_type=jnp.float32) + b2
    return x + y.reshape(Bt, n, d)


def _transformer(x, p, cfg):
    for layer, lcfg in zip(p["layers"], cfg["layers"]):
        x = _attn_block(x, None, layer["attn"], lcfg["attn"], self_attn=True)
        x = _ff_block(x, layer["ff"])
    nv = p["norm_vec"][...]                               # (2, d): gamma, beta
    return _layernorm(x, nv[0:1], nv[1:2])


def _cross_transformer(f1, f2, p, cfg):
    for layer, lcfg in zip(p["layers"], cfg["layers"]):
        f1 = _attn_block(f1, f2, layer["br1"], lcfg["br1"], self_attn=False)
        f2 = _attn_block(f2, f1, layer["br2"], lcfg["br2"], self_attn=False)
    return f1, f2


# ----------------------------- fused forward ---------------------------------

def basic_crossvit_forward(feat1, feat2, params, config, block_b=None):
    """Entire BasicCrossVitBlock forward in one fused pallas_call.

    The PyTorch forward calls cross_attend(feat1, feat1) and returns
    (feat1, feat1); feat2 / the t2 encoder never influence the output, so that
    dead branch is skipped (identical semantics, ~2x less work).
    """
    del feat2  # unused by the module's forward (dead branch)
    B, N, D = feat1.shape

    # Batch blocking: fold Bt*N rows into every 2-D matmul, keep grid length 2
    # when possible so v7x's two TensorCores both get work.
    if block_b is None:
        block_b = B // 2 if (B % 2 == 0 and B >= 2) else 1
    assert B % block_b == 0, "batch must be divisible by block_b"
    n_blocks = B // block_b

    live_p = {"layers": [{"t1": L["t1"], "cross": L["cross"]} for L in params["layers"]]}
    live_c = {"layers": [{"t1": C["t1"], "cross": C["cross"]} for C in config["layers"]]}
    leaves, treedef = jax.tree_util.tree_flatten(live_p)
    n_w = len(leaves)

    def kernel(*refs):
        x = refs[0][...]                                  # (Bt, N, D) f32
        # Unflatten the *refs* (not values): weights are loaded lazily at the
        # point of use inside each sub-block -> only the current layer is live.
        p = jax.tree_util.tree_unflatten(treedef, list(refs[1:1 + n_w]))
        o_ref = refs[1 + n_w]
        for layer, lcfg in zip(p["layers"], live_c["layers"]):
            x = _transformer(x, layer["t1"], lcfg["t1"])
            # quirk reproduced: cross_attend(feat1, feat1); the second output
            # only feeds the dead t2 branch of the next layer -> dropped.
            x, _ = _cross_transformer(x, x, layer["cross"], lcfg["cross"])
        o_ref[...] = x.astype(o_ref.dtype)

    def _w_spec(shape):
        nd = len(shape)
        return pl.BlockSpec(shape, lambda b, _nd=nd: (0,) * _nd)

    tok_spec = pl.BlockSpec((block_b, N, D), lambda b: (b, 0, 0))
    out = pl.pallas_call(
        kernel,
        out_shape=jax.ShapeDtypeStruct((B, N, D), feat1.dtype),
        grid=(n_blocks,),
        in_specs=[tok_spec] + [_w_spec(w.shape) for w in leaves],
        out_specs=tok_spec,
        compiler_params=pltpu.CompilerParams(
            dimension_semantics=("parallel",),
            vmem_limit_bytes=32 * 1024 * 1024),
    )(feat1, *leaves)
    return out, out  # module returns (feat1_tokens, feat1_tokens)


# ------------------------------ parameter init --------------------------------

def init_attn_params(key, dim, heads, dim_head):
    inner = heads * dim_head
    k1, k2 = jax.random.split(key)
    w_qkv = 0.02 * jax.random.normal(k1, (dim, 3 * inner), jnp.float32)
    # Fold the softmax scale dh**-0.5 into the Q columns (zero kernel cost).
    w_qkv = w_qkv.at[:, :inner].multiply(dim_head ** -0.5)
    wo = 0.02 * jax.random.normal(k2, (inner, dim), jnp.float32)
    vec = jnp.concatenate([jnp.ones((1, dim), jnp.float32),    # ln gamma
                           jnp.zeros((1, dim), jnp.float32),   # ln beta
                           jnp.zeros((1, dim), jnp.float32)],  # out-proj bias
                          axis=0)
    return dict(vec=vec,
                w_qkv=w_qkv.astype(jnp.bfloat16),
                wo=wo.astype(jnp.bfloat16))


def init_ff_params(key, dim, mlp_dim):
    k1, k2 = jax.random.split(key)
    vec = jnp.concatenate([jnp.ones((1, dim), jnp.float32),    # ln gamma
                           jnp.zeros((1, dim), jnp.float32),   # ln beta
                           jnp.zeros((1, dim), jnp.float32)],  # b2
                          axis=0)
    return dict(vec=vec,
                b1=jnp.zeros((1, mlp_dim), jnp.float32),
                w1=(0.02 * jax.random.normal(k1, (dim, mlp_dim), jnp.float32)).astype(jnp.bfloat16),
                w2=(0.02 * jax.random.normal(k2, (mlp_dim, dim), jnp.float32)).astype(jnp.bfloat16))


def init_transformer(key, dim, depth, heads_list, dim_head, mlp_dim):
    layers_p, layers_c = [], []
    for i, k in enumerate(jax.random.split(key, depth)):
        ka, kf = jax.random.split(k)
        layers_p.append(dict(attn=init_attn_params(ka, dim, heads_list[i], dim_head),
                             ff=init_ff_params(kf, dim, mlp_dim)))
        layers_c.append(dict(attn=dict(heads=heads_list[i], dim_head=dim_head)))
    p = dict(layers=layers_p,
             norm_vec=jnp.concatenate([jnp.ones((1, dim), jnp.float32),
                                       jnp.zeros((1, dim), jnp.float32)], axis=0))
    return p, dict(layers=layers_c)


def init_cross(key, dim1, dim2, depth, heads_list, dim_head):
    # dim1 == dim2 is required by the module forward; ProjectInOut -> Identity.
    layers_p, layers_c = [], []
    for i, k in enumerate(jax.random.split(key, depth)):
        k1, k2 = jax.random.split(k)
        layers_p.append(dict(br1=init_attn_params(k1, dim2, heads_list[i], dim_head),
                             br2=init_attn_params(k2, dim1, heads_list[i], dim_head)))
        layers_c.append(dict(br1=dict(heads=heads_list[i], dim_head=dim_head),
                             br2=dict(heads=heads_list[i], dim_head=dim_head)))
    return dict(layers=layers_p), dict(layers=layers_c)


def init_basic_crossvit(key, depth, embed_dim, image1_enc_params, image2_enc_params,
                        cross_attn_heads, cross_attn_depth, cross_attn_dim_head):
    assert embed_dim[0] == embed_dim[1], "module forward requires equal embed dims"
    layers_p, layers_c = [], []
    for k in jax.random.split(key, depth):
        kt1, kt2, kc = jax.random.split(k, 3)
        t1p, t1c = init_transformer(kt1, embed_dim[0], image1_enc_params["depth"],
                                    image1_enc_params["heads"], image1_enc_params["dim_head"],
                                    image1_enc_params["mlp_dim"])
        t2p, t2c = init_transformer(kt2, embed_dim[1], image2_enc_params["depth"],
                                    image2_enc_params["heads"], image2_enc_params["dim_head"],
                                    image2_enc_params["mlp_dim"])
        cp, cc = init_cross(kc, embed_dim[0], embed_dim[1], cross_attn_depth,
                            cross_attn_heads, cross_attn_dim_head)
        # t2 params mirror the PyTorch module's parameters but the forward never
        # lets them affect the output, so the kernel skips them.
        layers_p.append(dict(t1=t1p, t2=t2p, cross=cp))
        layers_c.append(dict(t1=t1c, t2=t2c, cross=cc))
    return dict(layers=layers_p), dict(layers=layers_c)


# ----------------------------------- main -------------------------------------

if __name__ == "__main__":
    key = jax.random.PRNGKey(0)
    k_in1, k_in2, k_params = jax.random.split(key, 3)

    # small shapes: batch=2, seq=8, embed=32
    B, N1, N2, D = 2, 8, 8, 32
    feat1 = jax.random.normal(k_in1, (B, N1, D), jnp.float32)
    feat2 = jax.random.normal(k_in2, (B, N2, D), jnp.float32)

    image1_enc_params = dict(depth=1, heads=[2], mlp_dim=64, dim_head=16)
    image2_enc_params = dict(depth=1, heads=[2], mlp_dim=64, dim_head=16)
    cross_attn_depth = 2
    cross_attn_heads = [2, 2]
    cross_attn_dim_head = 16

    params, config = init_basic_crossvit(
        k_params, depth=1, embed_dim=[D, D],
        image1_enc_params=image1_enc_params, image2_enc_params=image2_enc_params,
        cross_attn_heads=cross_attn_heads, cross_attn_depth=cross_attn_depth,
        cross_attn_dim_head=cross_attn_dim_head)

    out1, out2 = basic_crossvit_forward(feat1, feat2, params, config)
    jax.block_until_ready(out1)
    jax.block_until_ready(out2)
    assert out1.shape == (B, N1, D) and out2.shape == (B, N1, D)
    assert bool(jnp.all(jnp.isfinite(out1)))
    print("KERNEL_OK")
</pallas_src>

<mosaic_0001>
module attributes {stable_mosaic.version = 11 : i64} {
  func.func @kernel(%arg0: i32, %arg1: memref<1x8x32xf32, #tpu.memory_space<vmem>>, %arg2: memref<3x32xf32, #tpu.memory_space<vmem>>, %arg3: memref<32x96xbf16, #tpu.memory_space<vmem>>, %arg4: memref<32x32xbf16, #tpu.memory_space<vmem>>, %arg5: memref<3x32xf32, #tpu.memory_space<vmem>>, %arg6: memref<32x96xbf16, #tpu.memory_space<vmem>>, %arg7: memref<32x32xbf16, #tpu.memory_space<vmem>>, %arg8: memref<3x32xf32, #tpu.memory_space<vmem>>, %arg9: memref<32x96xbf16, #tpu.memory_space<vmem>>, %arg10: memref<32x32xbf16, #tpu.memory_space<vmem>>, %arg11: memref<3x32xf32, #tpu.memory_space<vmem>>, %arg12: memref<32x96xbf16, #tpu.memory_space<vmem>>, %arg13: memref<32x32xbf16, #tpu.memory_space<vmem>>, %arg14: memref<3x32xf32, #tpu.memory_space<vmem>>, %arg15: memref<32x96xbf16, #tpu.memory_space<vmem>>, %arg16: memref<32x32xbf16, #tpu.memory_space<vmem>>, %arg17: memref<1x64xf32, #tpu.memory_space<vmem>>, %arg18: memref<3x32xf32, #tpu.memory_space<vmem>>, %arg19: memref<32x64xbf16, #tpu.memory_space<vmem>>, %arg20: memref<64x32xbf16, #tpu.memory_space<vmem>>, %arg21: memref<2x32xf32, #tpu.memory_space<vmem>>, %arg22: memref<1x8x32xf32, #tpu.memory_space<vmem>>) attributes {dimension_semantics = [#tpu.dimension_semantics<parallel>], iteration_bounds = array<i64: 2>, scalar_prefetch = 0 : i64, scratch_operands = 0 : i64, tpu.core_type = #tpu.core_type<tc>, window_params = [{transform_indices = @transform_0, window_bounds = array<i64: 1, 8, 32>}, {pipeline_mode = #tpu.pipeline_mode<synchronous>, transform_indices = @transform_1, window_bounds = array<i64: 3, 32>}, {pipeline_mode = #tpu.pipeline_mode<synchronous>, transform_indices = @transform_2, window_bounds = array<i64: 32, 96>}, {pipeline_mode = #tpu.pipeline_mode<synchronous>, transform_indices = @transform_3, window_bounds = array<i64: 32, 32>}, {pipeline_mode = #tpu.pipeline_mode<synchronous>, transform_indices = @transform_4, window_bounds = array<i64: 3, 32>}, {pipeline_mode = #tpu.pipeline_mode<synchronous>, transform_indices = @transform_5, window_bounds = array<i64: 32, 96>}, {pipeline_mode = #tpu.pipeline_mode<synchronous>, transform_indices = @transform_6, window_bounds = array<i64: 32, 32>}, {pipeline_mode = #tpu.pipeline_mode<synchronous>, transform_indices = @transform_7, window_bounds = array<i64: 3, 32>}, {pipeline_mode = #tpu.pipeline_mode<synchronous>, transform_indices = @transform_8, window_bounds = array<i64: 32, 96>}, {pipeline_mode = #tpu.pipeline_mode<synchronous>, transform_indices = @transform_9, window_bounds = array<i64: 32, 32>}, {pipeline_mode = #tpu.pipeline_mode<synchronous>, transform_indices = @transform_10, window_bounds = array<i64: 3, 32>}, {pipeline_mode = #tpu.pipeline_mode<synchronous>, transform_indices = @transform_11, window_bounds = array<i64: 32, 96>}, {pipeline_mode = #tpu.pipeline_mode<synchronous>, transform_indices = @transform_12, window_bounds = array<i64: 32, 32>}, {pipeline_mode = #tpu.pipeline_mode<synchronous>, transform_indices = @transform_13, window_bounds = array<i64: 3, 32>}, {pipeline_mode = #tpu.pipeline_mode<synchronous>, transform_indices = @transform_14, window_bounds = array<i64: 32, 96>}, {pipeline_mode = #tpu.pipeline_mode<synchronous>, transform_indices = @transform_15, window_bounds = array<i64: 32, 32>}, {pipeline_mode = #tpu.pipeline_mode<synchronous>, transform_indices = @transform_16, window_bounds = array<i64: 1, 64>}, {pipeline_mode = #tpu.pipeline_mode<synchronous>, transform_indices = @transform_17, window_bounds = array<i64: 3, 32>}, {pipeline_mode = #tpu.pipeline_mode<synchronous>, transform_indices = @transform_18, window_bounds = array<i64: 32, 64>}, {pipeline_mode = #tpu.pipeline_mode<synchronous>, transform_indices = @transform_19, window_bounds = array<i64: 64, 32>}, {pipeline_mode = #tpu.pipeline_mode<synchronous>, transform_indices = @transform_20, window_bounds = array<i64: 2, 32>}, {transform_indices = @transform_21, window_bounds = array<i64: 1, 8, 32>}]} {
    %c0 = arith.constant 0 : index
    %c0_0 = arith.constant 0 : index
    %c0_1 = arith.constant 0 : index
    %0 = vector.load %arg1[%c0, %c0_0, %c0_1] : memref<1x8x32xf32, #tpu.memory_space<vmem>>, vector<1x8x32xf32>
    %c0_2 = arith.constant 0 : index
    %c0_3 = arith.constant 0 : index
    %1 = vector.load %arg14[%c0_2, %c0_3] : memref<3x32xf32, #tpu.memory_space<vmem>>, vector<3x32xf32>
    %2 = vector.extract_strided_slice %1 {offsets = [0, 0], sizes = [1, 32], strides = [1, 1]} : vector<3x32xf32> to vector<1x32xf32>
    %3 = vector.extract_strided_slice %1 {offsets = [1, 0], sizes = [1, 32], strides = [1, 1]} : vector<3x32xf32> to vector<1x32xf32>
    %4 = vector.extract_strided_slice %1 {offsets = [2, 0], sizes = [1, 32], strides = [1, 1]} : vector<3x32xf32> to vector<1x32xf32>
    %c0_4 = arith.constant 0 : index
    %c0_5 = arith.constant 0 : index
    %5 = vector.load %arg15[%c0_4, %c0_5] : memref<32x96xbf16, #tpu.memory_space<vmem>>, vector<32x96xbf16>
    %c0_6 = arith.constant 0 : index
    %c0_7 = arith.constant 0 : index
    %6 = vector.load %arg16[%c0_6, %c0_7] : memref<32x32xbf16, #tpu.memory_space<vmem>>, vector<32x32xbf16>
    %cst = arith.constant dense<0.000000e+00> : vector<1x8xf32>
    %7 = vector.multi_reduction <add>, %0, %cst [2] : vector<1x8x32xf32> to vector<1x8xf32>
    %8 = vector.shape_cast %7 : vector<1x8xf32> to vector<1x8x1xf32>
    %cst_8 = arith.constant 3.200000e+01 : f32
    %9 = vector.broadcast %cst_8 : f32 to vector<1x8x1xf32>
    %10 = arith.divf %8, %9 : vector<1x8x1xf32>
    %11 = vector.broadcast %10 : vector<1x8x1xf32> to vector<1x8x32xf32>
    %12 = arith.subf %0, %11 : vector<1x8x32xf32>
    %13 = arith.mulf %12, %12 : vector<1x8x32xf32>
    %cst_9 = arith.constant dense<0.000000e+00> : vector<1x8xf32>
    %14 = vector.multi_reduction <add>, %13, %cst_9 [2] : vector<1x8x32xf32> to vector<1x8xf32>
    %15 = vector.shape_cast %14 : vector<1x8xf32> to vector<1x8x1xf32>
    %cst_10 = arith.constant 3.200000e+01 : f32
    %16 = vector.broadcast %cst_10 : f32 to vector<1x8x1xf32>
    %17 = arith.divf %15, %16 : vector<1x8x1xf32>
    %18 = vector.broadcast %10 : vector<1x8x1xf32> to vector<1x8x32xf32>
    %19 = arith.subf %0, %18 : vector<1x8x32xf32>
    %cst_11 = arith.constant 9.99999974E-6 : f32
    %20 = vector.broadcast %cst_11 : f32 to vector<1x8x1xf32>
    %21 = arith.addf %17, %20 : vector<1x8x1xf32>
    %22 = math.rsqrt %21 : vector<1x8x1xf32>
    %23 = vector.broadcast %22 : vector<1x8x1xf32> to vector<1x8x32xf32>
    %24 = arith.mulf %19, %23 : vector<1x8x32xf32>
    %25 = vector.shape_cast %2 : vector<1x32xf32> to vector<1x1x32xf32>
    %26 = vector.broadcast %25 : vector<1x1x32xf32> to vector<1x8x32xf32>
    %27 = arith.mulf %24, %26 : vector<1x8x32xf32>
    %28 = vector.shape_cast %3 : vector<1x32xf32> to vector<1x1x32xf32>
    %29 = vector.broadcast %28 : vector<1x1x32xf32> to vector<1x8x32xf32>
    %30 = arith.addf %27, %29 : vector<1x8x32xf32>
    %31 = vector.shape_cast %30 : vector<1x8x32xf32> to vector<8x32xf32>
    %32 = arith.truncf %31 : vector<8x32xf32> to vector<8x32xbf16>
    %cst_12 = arith.constant dense<0.000000e+00> : vector<8x96xf32>
    %33 = tpu.matmul %32, %5, %cst_12 {dimension_numbers = #tpu.dot_dimension_numbers<[1], [0], [0], [1], [0, 0, 1, 1], [], []>} : vector<8x32xbf16>, vector<32x96xbf16>, vector<8x96xf32> -> vector<8x96xf32>
    %34 = vector.extract_strided_slice %33 {offsets = [0, 0], sizes = [8, 32], strides = [1, 1]} : vector<8x96xf32> to vector<8x32xf32>
    %35 = vector.extract_strided_slice %33 {offsets = [0, 32], sizes = [8, 32], strides = [1, 1]} : vector<8x96xf32> to vector<8x32xf32>
    %36 = vector.extract_strided_slice %33 {offsets = [0, 64], sizes = [8, 32], strides = [1, 1]} : vector<8x96xf32> to vector<8x32xf32>
    %37 = vector.shape_cast %34 : vector<8x32xf32> to vector<1x8x32xf32>
    %38 = vector.shape_cast %35 : vector<8x32xf32> to vector<1x8x32xf32>
    %39 = vector.shape_cast %36 : vector<8x32xf32> to vector<1x8x32xf32>
    %40 = vector.extract_strided_slice %37 {offsets = [0, 0, 0], sizes = [1, 8, 16], strides = [1, 1, 1]} : vector<1x8x32xf32> to vector<1x8x16xf32>
    %41 = arith.truncf %40 : vector<1x8x16xf32> to vector<1x8x16xbf16>
    %42 = vector.extract_strided_slice %38 {offsets = [0, 0, 0], sizes = [1, 8, 16], strides = [1, 1, 1]} : vector<1x8x32xf32> to vector<1x8x16xf32>
    %43 = arith.truncf %42 : vector<1x8x16xf32> to vector<1x8x16xbf16>
    %44 = vector.extract_strided_slice %39 {offsets = [0, 0, 0], sizes = [1, 8, 16], strides = [1, 1, 1]} : vector<1x8x32xf32> to vector<1x8x16xf32>
    %45 = arith.truncf %44 : vector<1x8x16xf32> to vector<1x8x16xbf16>
    "tpu.trace_start"() <{level = 10 : i32, message = "bne,bme->bnm"}> : () -> ()
    %cst_13 = arith.constant dense<0.000000e+00> : vector<1x8x8xf32>
    %46 = tpu.matmul %41, %43, %cst_13 {dimension_numbers = #tpu.dot_dimension_numbers<[2], [2], [1], [1], [0, 0, 0, 1, 1, 1], [0], [0]>} : vector<1x8x16xbf16>, vector<1x8x16xbf16>, vector<1x8x8xf32> -> vector<1x8x8xf32>
    "tpu.trace_stop"() : () -> ()
    %cst_14 = arith.constant dense<0xFF800000> : vector<1x8xf32>
    %47 = vector.multi_reduction <maximumf>, %46, %cst_14 [2] : vector<1x8x8xf32> to vector<1x8xf32>
    %48 = vector.shape_cast %47 : vector<1x8xf32> to vector<1x8x1xf32>
    %49 = vector.broadcast %48 : vector<1x8x1xf32> to vector<1x8x8xf32>
    %50 = arith.subf %46, %49 : vector<1x8x8xf32>
    %51 = math.exp %50 : vector<1x8x8xf32>
    %cst_15 = arith.constant dense<0.000000e+00> : vector<1x8xf32>
    %52 = vector.multi_reduction <add>, %51, %cst_15 [2] : vector<1x8x8xf32> to vector<1x8xf32>
    %53 = vector.shape_cast %52 : vector<1x8xf32> to vector<1x8x1xf32>
    %54 = tpu.reciprocal %53 {approx = true} : vector<1x8x1xf32> -> vector<1x8x1xf32>
    %55 = vector.broadcast %54 : vector<1x8x1xf32> to vector<1x8x8xf32>
    %56 = arith.mulf %51, %55 : vector<1x8x8xf32>
    %57 = arith.truncf %56 : vector<1x8x8xf32> to vector<1x8x8xbf16>
    "tpu.trace_start"() <{level = 10 : i32, message = "bnm,bme->bne"}> : () -> ()
    %cst_16 = arith.constant dense<0.000000e+00> : vector<1x8x16xf32>
    %58 = tpu.matmul %57, %45, %cst_16 {dimension_numbers = #tpu.dot_dimension_numbers<[2], [1], [1], [2], [0, 0, 0, 1, 1, 2], [0], [0]>} : vector<1x8x8xbf16>, vector<1x8x16xbf16>, vector<1x8x16xf32> -> vector<1x8x16xf32>
    "tpu.trace_stop"() : () -> ()
    %59 = vector.extract_strided_slice %37 {offsets = [0, 0, 16], sizes = [1, 8, 16], strides = [1, 1, 1]} : vector<1x8x32xf32> to vector<1x8x16xf32>
    %60 = arith.truncf %59 : vector<1x8x16xf32> to vector<1x8x16xbf16>
    %61 = vector.extract_strided_slice %38 {offsets = [0, 0, 16], sizes = [1, 8, 16], strides = [1, 1, 1]} : vector<1x8x32xf32> to vector<1x8x16xf32>
    %62 = arith.truncf %61 : vector<1x8x16xf32> to vector<1x8x16xbf16>
    %63 = vector.extract_strided_slice %39 {offsets = [0, 0, 16], sizes = [1, 8, 16], strides = [1, 1, 1]} : vector<1x8x32xf32> to vector<1x8x16xf32>
    %64 = arith.truncf %63 : vector<1x8x16xf32> to vector<1x8x16xbf16>
    "tpu.trace_start"() <{level = 10 : i32, message = "bne,bme->bnm"}> : () -> ()
    %cst_17 = arith.constant dense<0.000000e+00> : vector<1x8x8xf32>
    %65 = tpu.matmul %60, %62, %cst_17 {dimension_numbers = #tpu.dot_dimension_numbers<[2], [2], [1], [1], [0, 0, 0, 1, 1, 1], [0], [0]>} : vector<1x8x16xbf16>, vector<1x8x16xbf16>, vector<1x8x8xf32> -> vector<1x8x8xf32>
    "tpu.trace_stop"() : () -> ()
    %cst_18 = arith.constant dense<0xFF800000> : vector<1x8xf32>
    %66 = vector.multi_reduction <maximumf>, %65, %cst_18 [2] : vector<1x8x8xf32> to vector<1x8xf32>
    %67 = vector.shape_cast %66 : vector<1x8xf32> to vector<1x8x1xf32>
    %68 = vector.broadcast %67 : vector<1x8x1xf32> to vector<1x8x8xf32>
    %69 = arith.subf %65, %68 : vector<1x8x8xf32>
    %70 = math.exp %69 : vector<1x8x8xf32>
    %cst_19 = arith.constant dense<0.000000e+00> : vector<1x8xf32>
    %71 = vector.multi_reduction <add>, %70, %cst_19 [2] : vector<1x8x8xf32> to vector<1x8xf32>
    %72 = vector.shape_cast %71 : vector<1x8xf32> to vector<1x8x1xf32>
    %73 = tpu.reciprocal %72 {approx = true} : vector<1x8x1xf32> -> vector<1x8x1xf32>
    %74 = vector.broadcast %73 : vector<1x8x1xf32> to vector<1x8x8xf32>
    %75 = arith.mulf %70, %74 : vector<1x8x8xf32>
    %76 = arith.truncf %75 : vector<1x8x8xf32> to vector<1x8x8xbf16>
    "tpu.trace_start"() <{level = 10 : i32, message = "bnm,bme->bne"}> : () -> ()
    %cst_20 = arith.constant dense<0.000000e+00> : vector<1x8x16xf32>
    %77 = tpu.matmul %76, %64, %cst_20 {dimension_numbers = #tpu.dot_dimension_numbers<[2], [1], [1], [2], [0, 0, 0, 1, 1, 2], [0], [0]>} : vector<1x8x8xbf16>, vector<1x8x16xbf16>, vector<1x8x16xf32> -> vector<1x8x16xf32>
    "tpu.trace_stop"() : () -> ()
    %78 = tpu.concatenate %58, %77 in 2 : vector<1x8x16xf32>, vector<1x8x16xf32> -> vector<1x8x32xf32>
    %79 = vector.shape_cast %78 : vector<1x8x32xf32> to vector<8x32xf32>
    %80 = arith.truncf %79 : vector<8x32xf32> to vector<8x32xbf16>
    %cst_21 = arith.constant dense<0.000000e+00> : vector<8x32xf32>
    %81 = tpu.matmul %80, %6, %cst_21 {dimension_numbers = #tpu.dot_dimension_numbers<[1], [0], [0], [1], [0, 0, 1, 1], [], []>} : vector<8x32xbf16>, vector<32x32xbf16>, vector<8x32xf32> -> vector<8x32xf32>
    %82 = vector.shape_cast %81 : vector<8x32xf32> to vector<1x8x32xf32>
    %83 = vector.shape_cast %4 : vector<1x32xf32> to vector<1x1x32xf32>
    %84 = vector.broadcast %83 : vector<1x1x32xf32> to vector<1x8x32xf32>
    %85 = arith.addf %82, %84 : vector<1x8x32xf32>
    %86 = arith.addf %0, %85 : vector<1x8x32xf32>
    %c0_22 = arith.constant 0 : index
    %c0_23 = arith.constant 0 : index
    %87 = vector.load %arg18[%c0_22, %c0_23] : memref<3x32xf32, #tpu.memory_space<vmem>>, vector<3x32xf32>
    %88 = vector.extract_strided_slice %87 {offsets = [0, 0], sizes = [1, 32], strides = [1, 1]} : vector<3x32xf32> to vector<1x32xf32>
    %89 = vector.extract_strided_slice %87 {offsets = [1, 0], sizes = [1, 32], strides = [1, 1]} : vector<3x32xf32> to vector<1x32xf32>
    %90 = vector.extract_strided_slice %87 {offsets = [2, 0], sizes = [1, 32], strides = [1, 1]} : vector<3x32xf32> to vector<1x32xf32>
    %c0_24 = arith.constant 0 : index
    %c0_25 = arith.constant 0 : index
    %91 = vector.load %arg17[%c0_24, %c0_25] : memref<1x64xf32, #tpu.memory_space<vmem>>, vector<1x64xf32>
    %c0_26 = arith.constant 0 : index
    %c0_27 = arith.constant 0 : index
    %92 = vector.load %arg19[%c0_26, %c0_27] : memref<32x64xbf16, #tpu.memory_space<vmem>>, vector<32x64xbf16>
    %c0_28 = arith.constant 0 : index
    %c0_29 = arith.constant 0 : index
    %93 = vector.load %arg20[%c0_28, %c0_29] : memref<64x32xbf16, #tpu.memory_space<vmem>>, vector<64x32xbf16>
    %cst_30 = arith.constant dense<0.000000e+00> : vector<1x8xf32>
    %94 = vector.multi_reduction <add>, %86, %cst_30 [2] : vector<1x8x32xf32> to vector<1x8xf32>
    %95 = vector.shape_cast %94 : vector<1x8xf32> to vector<1x8x1xf32>
    %cst_31 = arith.constant 3.200000e+01 : f32
    %96 = vector.broadcast %cst_31 : f32 to vector<1x8x1xf32>
    %97 = arith.divf %95, %96 : vector<1x8x1xf32>
    %98 = vector.broadcast %97 : vector<1x8x1xf32> to vector<1x8x32xf32>
    %99 = arith.subf %86, %98 : vector<1x8x32xf32>
    %100 = arith.mulf %99, %99 : vector<1x8x32xf32>
    %cst_32 = arith.constant dense<0.000000e+00> : vector<1x8xf32>
    %101 = vector.multi_reduction <add>, %100, %cst_32 [2] : vector<1x8x32xf32> to vector<1x8xf32>
    %102 = vector.shape_cast %101 : vector<1x8xf32> to vector<1x8x1xf32>
    %cst_33 = arith.constant 3.200000e+01 : f32
    %103 = vector.broadcast %cst_33 : f32 to vector<1x8x1xf32>
    %104 = arith.divf %102, %103 : vector<1x8x1xf32>
    %105 = vector.broadcast %97 : vector<1x8x1xf32> to vector<1x8x32xf32>
    %106 = arith.subf %86, %105 : vector<1x8x32xf32>
    %cst_34 = arith.constant 9.99999974E-6 : f32
    %107 = vector.broadcast %cst_34 : f32 to vector<1x8x1xf32>
    %108 = arith.addf %104, %107 : vector<1x8x1xf32>
    %109 = math.rsqrt %108 : vector<1x8x1xf32>
    %110 = vector.broadcast %109 : vector<1x8x1xf32> to vector<1x8x32xf32>
    %111 = arith.mulf %106, %110 : vector<1x8x32xf32>
    %112 = vector.shape_cast %88 : vector<1x32xf32> to vector<1x1x32xf32>
    %113 = vector.broadcast %112 : vector<1x1x32xf32> to vector<1x8x32xf32>
    %114 = arith.mulf %111, %113 : vector<1x8x32xf32>
    %115 = vector.shape_cast %89 : vector<1x32xf32> to vector<1x1x32xf32>
    %116 = vector.broadcast %115 : vector<1x1x32xf32> to vector<1x8x32xf32>
    %117 = arith.addf %114, %116 : vector<1x8x32xf32>
    %118 = vector.shape_cast %117 : vector<1x8x32xf32> to vector<8x32xf32>
    %119 = arith.truncf %118 : vector<8x32xf32> to vector<8x32xbf16>
    %cst_35 = arith.constant dense<0.000000e+00> : vector<8x64xf32>
    %120 = tpu.matmul %119, %92, %cst_35 {dimension_numbers = #tpu.dot_dimension_numbers<[1], [0], [0], [1], [0, 0, 1, 1], [], []>} : vector<8x32xbf16>, vector<32x64xbf16>, vector<8x64xf32> -> vector<8x64xf32>
    %121 = vector.broadcast %91 : vector<1x64xf32> to vector<8x64xf32>
    %122 = arith.addf %120, %121 : vector<8x64xf32>
    %cst_36 = arith.constant 5.000000e-01 : f32
    %123 = vector.broadcast %cst_36 : f32 to vector<8x64xf32>
    %124 = arith.mulf %123, %122 : vector<8x64xf32>
    %cst_37 = arith.constant 0.707106769 : f32
    %125 = vector.broadcast %cst_37 : f32 to vector<8x64xf32>
    %126 = arith.mulf %122, %125 : vector<8x64xf32>
    %127 = math.erf %126 : vector<8x64xf32>
    %cst_38 = arith.constant 1.000000e+00 : f32
    %128 = vector.broadcast %cst_38 : f32 to vector<8x64xf32>
    %129 = arith.addf %128, %127 : vector<8x64xf32>
    %130 = arith.mulf %124, %129 : vector<8x64xf32>
    %131 = arith.truncf %130 : vector<8x64xf32> to vector<8x64xbf16>
    %cst_39 = arith.constant dense<0.000000e+00> : vector<8x32xf32>
    %132 = tpu.matmul %131, %93, %cst_39 {dimension_numbers = #tpu.dot_dimension_numbers<[1], [0], [0], [1], [0, 0, 1, 1], [], []>} : vector<8x64xbf16>, vector<64x32xbf16>, vector<8x32xf32> -> vector<8x32xf32>
    %133 = vector.broadcast %90 : vector<1x32xf32> to vector<8x32xf32>
    %134 = arith.addf %132, %133 : vector<8x32xf32>
    %135 = vector.shape_cast %134 : vector<8x32xf32> to vector<1x8x32xf32>
    %136 = arith.addf %86, %135 : vector<1x8x32xf32>
    %c0_40 = arith.constant 0 : index
    %c0_41 = arith.constant 0 : index
    %137 = vector.load %arg21[%c0_40, %c0_41] : memref<2x32xf32, #tpu.memory_space<vmem>>, vector<2x32xf32>
    %138 = vector.extract_strided_slice %137 {offsets = [0, 0], sizes = [1, 32], strides = [1, 1]} : vector<2x32xf32> to vector<1x32xf32>
    %139 = vector.extract_strided_slice %137 {offsets = [1, 0], sizes = [1, 32], strides = [1, 1]} : vector<2x32xf32> to vector<1x32xf32>
    %cst_42 = arith.constant dense<0.000000e+00> : vector<1x8xf32>
    %140 = vector.multi_reduction <add>, %136, %cst_42 [2] : vector<1x8x32xf32> to vector<1x8xf32>
    %141 = vector.shape_cast %140 : vector<1x8xf32> to vector<1x8x1xf32>
    %cst_43 = arith.constant 3.200000e+01 : f32
    %142 = vector.broadcast %cst_43 : f32 to vector<1x8x1xf32>
    %143 = arith.divf %141, %142 : vector<1x8x1xf32>
    %144 = vector.broadcast %143 : vector<1x8x1xf32> to vector<1x8x32xf32>
    %145 = arith.subf %136, %144 : vector<1x8x32xf32>
    %146 = arith.mulf %145, %145 : vector<1x8x32xf32>
    %cst_44 = arith.constant dense<0.000000e+00> : vector<1x8xf32>
    %147 = vector.multi_reduction <add>, %146, %cst_44 [2] : vector<1x8x32xf32> to vector<1x8xf32>
    %148 = vector.shape_cast %147 : vector<1x8xf32> to vector<1x8x1xf32>
    %cst_45 = arith.constant 3.200000e+01 : f32
    %149 = vector.broadcast %cst_45 : f32 to vector<1x8x1xf32>
    %150 = arith.divf %148, %149 : vector<1x8x1xf32>
    %151 = vector.broadcast %143 : vector<1x8x1xf32> to vector<1x8x32xf32>
    %152 = arith.subf %136, %151 : vector<1x8x32xf32>
    %cst_46 = arith.constant 9.99999974E-6 : f32
    %153 = vector.broadcast %cst_46 : f32 to vector<1x8x1xf32>
    %154 = arith.addf %150, %153 : vector<1x8x1xf32>
    %155 = math.rsqrt %154 : vector<1x8x1xf32>
    %156 = vector.broadcast %155 : vector<1x8x1xf32> to vector<1x8x32xf32>
    %157 = arith.mulf %152, %156 : vector<1x8x32xf32>
    %158 = vector.shape_cast %138 : vector<1x32xf32> to vector<1x1x32xf32>
    %159 = vector.broadcast %158 : vector<1x1x32xf32> to vector<1x8x32xf32>
    %160 = arith.mulf %157, %159 : vector<1x8x32xf32>
    %161 = vector.shape_cast %139 : vector<1x32xf32> to vector<1x1x32xf32>
    %162 = vector.broadcast %161 : vector<1x1x32xf32> to vector<1x8x32xf32>
    %163 = arith.addf %160, %162 : vector<1x8x32xf32>
    %c0_47 = arith.constant 0 : index
    %c0_48 = arith.constant 0 : index
    %164 = vector.load %arg2[%c0_47, %c0_48] : memref<3x32xf32, #tpu.memory_space<vmem>>, vector<3x32xf32>
    %165 = vector.extract_strided_slice %164 {offsets = [0, 0], sizes = [1, 32], strides = [1, 1]} : vector<3x32xf32> to vector<1x32xf32>
    %166 = vector.extract_strided_slice %164 {offsets = [1, 0], sizes = [1, 32], strides = [1, 1]} : vector<3x32xf32> to vector<1x32xf32>
    %167 = vector.extract_strided_slice %164 {offsets = [2, 0], sizes = [1, 32], strides = [1, 1]} : vector<3x32xf32> to vector<1x32xf32>
    %c0_49 = arith.constant 0 : index
    %c0_50 = arith.constant 0 : index
    %168 = vector.load %arg3[%c0_49, %c0_50] : memref<32x96xbf16, #tpu.memory_space<vmem>>, vector<32x96xbf16>
    %c0_51 = arith.constant 0 : index
    %c0_52 = arith.constant 0 : index
    %169 = vector.load %arg4[%c0_51, %c0_52] : memref<32x32xbf16, #tpu.memory_space<vmem>>, vector<32x32xbf16>
    %cst_53 = arith.constant dense<0.000000e+00> : vector<1x8xf32>
    %170 = vector.multi_reduction <add>, %163, %cst_53 [2] : vector<1x8x32xf32> to vector<1x8xf32>
    %171 = vector.shape_cast %170 : vector<1x8xf32> to vector<1x8x1xf32>
    %cst_54 = arith.constant 3.200000e+01 : f32
    %172 = vector.broadcast %cst_54 : f32 to vector<1x8x1xf32>
    %173 = arith.divf %171, %172 : vector<1x8x1xf32>
    %174 = vector.broadcast %173 : vector<1x8x1xf32> to vector<1x8x32xf32>
    %175 = arith.subf %163, %174 : vector<1x8x32xf32>
    %176 = arith.mulf %175, %175 : vector<1x8x32xf32>
    %cst_55 = arith.constant dense<0.000000e+00> : vector<1x8xf32>
    %177 = vector.multi_reduction <add>, %176, %cst_55 [2] : vector<1x8x32xf32> to vector<1x8xf32>
    %178 = vector.shape_cast %177 : vector<1x8xf32> to vector<1x8x1xf32>
    %cst_56 = arith.constant 3.200000e+01 : f32
    %179 = vector.broadcast %cst_56 : f32 to vector<1x8x1xf32>
    %180 = arith.divf %178, %179 : vector<1x8x1xf32>
    %181 = vector.broadcast %173 : vector<1x8x1xf32> to vector<1x8x32xf32>
    %182 = arith.subf %163, %181 : vector<1x8x32xf32>
    %cst_57 = arith.constant 9.99999974E-6 : f32
    %183 = vector.broadcast %cst_57 : f32 to vector<1x8x1xf32>
    %184 = arith.addf %180, %183 : vector<1x8x1xf32>
    %185 = math.rsqrt %184 : vector<1x8x1xf32>
    %186 = vector.broadcast %185 : vector<1x8x1xf32> to vector<1x8x32xf32>
    %187 = arith.mulf %182, %186 : vector<1x8x32xf32>
    %188 = vector.shape_cast %165 : vector<1x32xf32> to vector<1x1x32xf32>
    %189 = vector.broadcast %188 : vector<1x1x32xf32> to vector<1x8x32xf32>
    %190 = arith.mulf %187, %189 : vector<1x8x32xf32>
    %191 = vector.shape_cast %166 : vector<1x32xf32> to vector<1x1x32xf32>
    %192 = vector.broadcast %191 : vector<1x1x32xf32> to vector<1x8x32xf32>
    %193 = arith.addf %190, %192 : vector<1x8x32xf32>
    %194 = vector.shape_cast %193 : vector<1x8x32xf32> to vector<8x32xf32>
    %195 = arith.truncf %194 : vector<8x32xf32> to vector<8x32xbf16>
    %196 = vector.shape_cast %163 : vector<1x8x32xf32> to vector<8x32xf32>
    %197 = arith.truncf %196 : vector<8x32xf32> to vector<8x32xbf16>
    %198 = vector.extract_strided_slice %168 {offsets = [0, 0], sizes = [32, 32], strides = [1, 1]} : vector<32x96xbf16> to vector<32x32xbf16>
    %cst_58 = arith.constant dense<0.000000e+00> : vector<8x32xf32>
    %199 = tpu.matmul %195, %198, %cst_58 {dimension_numbers = #tpu.dot_dimension_numbers<[1], [0], [0], [1], [0, 0, 1, 1], [], []>} : vector<8x32xbf16>, vector<32x32xbf16>, vector<8x32xf32> -> vector<8x32xf32>
    %200 = vector.extract_strided_slice %168 {offsets = [0, 32], sizes = [32, 64], strides = [1, 1]} : vector<32x96xbf16> to vector<32x64xbf16>
    %cst_59 = arith.constant dense<0.000000e+00> : vector<8x64xf32>
    %201 = tpu.matmul %197, %200, %cst_59 {dimension_numbers = #tpu.dot_dimension_numbers<[1], [0], [0], [1], [0, 0, 1, 1], [], []>} : vector<8x32xbf16>, vector<32x64xbf16>, vector<8x64xf32> -> vector<8x64xf32>
    %202 = vector.extract_strided_slice %201 {offsets = [0, 0], sizes = [8, 32], strides = [1, 1]} : vector<8x64xf32> to vector<8x32xf32>
    %203 = vector.extract_strided_slice %201 {offsets = [0, 32], sizes = [8, 32], strides = [1, 1]} : vector<8x64xf32> to vector<8x32xf32>
    %204 = vector.shape_cast %199 : vector<8x32xf32> to vector<1x8x32xf32>
    %205 = vector.shape_cast %202 : vector<8x32xf32> to vector<1x8x32xf32>
    %206 = vector.shape_cast %203 : vector<8x32xf32> to vector<1x8x32xf32>
    %207 = vector.extract_strided_slice %204 {offsets = [0, 0, 0], sizes = [1, 8, 16], strides = [1, 1, 1]} : vector<1x8x32xf32> to vector<1x8x16xf32>
    %208 = arith.truncf %207 : vector<1x8x16xf32> to vector<1x8x16xbf16>
    %209 = vector.extract_strided_slice %205 {offsets = [0, 0, 0], sizes = [1, 8, 16], strides = [1, 1, 1]} : vector<1x8x32xf32> to vector<1x8x16xf32>
    %210 = arith.truncf %209 : vector<1x8x16xf32> to vector<1x8x16xbf16>
    %211 = vector.extract_strided_slice %206 {offsets = [0, 0, 0], sizes = [1, 8, 16], strides = [1, 1, 1]} : vector<1x8x32xf32> to vector<1x8x16xf32>
    %212 = arith.truncf %211 : vector<1x8x16xf32> to vector<1x8x16xbf16>
    "tpu.trace_start"() <{level = 10 : i32, message = "bne,bme->bnm"}> : () -> ()
    %cst_60 = arith.constant dense<0.000000e+00> : vector<1x8x8xf32>
    %213 = tpu.matmul %208, %210, %cst_60 {dimension_numbers = #tpu.dot_dimension_numbers<[2], [2], [1], [1], [0, 0, 0, 1, 1, 1], [0], [0]>} : vector<1x8x16xbf16>, vector<1x8x16xbf16>, vector<1x8x8xf32> -> vector<1x8x8xf32>
    "tpu.trace_stop"() : () -> ()
    %cst_61 = arith.constant dense<0xFF800000> : vector<1x8xf32>
    %214 = vector.multi_reduction <maximumf>, %213, %cst_61 [2] : vector<1x8x8xf32> to vector<1x8xf32>
    %215 = vector.shape_cast %214 : vector<1x8xf32> to vector<1x8x1xf32>
    %216 = vector.broadcast %215 : vector<1x8x1xf32> to vector<1x8x8xf32>
    %217 = arith.subf %213, %216 : vector<1x8x8xf32>
    %218 = math.exp %217 : vector<1x8x8xf32>
    %cst_62 = arith.constant dense<0.000000e+00> : vector<1x8xf32>
    %219 = vector.multi_reduction <add>, %218, %cst_62 [2] : vector<1x8x8xf32> to vector<1x8xf32>
    %220 = vector.shape_cast %219 : vector<1x8xf32> to vector<1x8x1xf32>
    %221 = tpu.reciprocal %220 {approx = true} : vector<1x8x1xf32> -> vector<1x8x1xf32>
    %222 = vector.broadcast %221 : vector<1x8x1xf32> to vector<1x8x8xf32>
    %223 = arith.mulf %218, %222 : vector<1x8x8xf32>
    %224 = arith.truncf %223 : vector<1x8x8xf32> to vector<1x8x8xbf16>
    "tpu.trace_start"() <{level = 10 : i32, message = "bnm,bme->bne"}> : () -> ()
    %cst_63 = arith.constant dense<0.000000e+00> : vector<1x8x16xf32>
    %225 = tpu.matmul %224, %212, %cst_63 {dimension_numbers = #tpu.dot_dimension_numbers<[2], [1], [1], [2], [0, 0, 0, 1, 1, 2], [0], [0]>} : vector<1x8x8xbf16>, vector<1x8x16xbf16>, vector<1x8x16xf32> -> vector<1x8x16xf32>
    "tpu.trace_stop"() : () -> ()
    %226 = vector.extract_strided_slice %204 {offsets = [0, 0, 16], sizes = [1, 8, 16], strides = [1, 1, 1]} : vector<1x8x32xf32> to vector<1x8x16xf32>
    %227 = arith.truncf %226 : vector<1x8x16xf32> to vector<1x8x16xbf16>
    %228 = vector.extract_strided_slice %205 {offsets = [0, 0, 16], sizes = [1, 8, 16], strides = [1, 1, 1]} : vector<1x8x32xf32> to vector<1x8x16xf32>
    %229 = arith.truncf %228 : vector<1x8x16xf32> to vector<1x8x16xbf16>
    %230 = vector.extract_strided_slice %206 {offsets = [0, 0, 16], sizes = [1, 8, 16], strides = [1, 1, 1]} : vector<1x8x32xf32> to vector<1x8x16xf32>
    %231 = arith.truncf %230 : vector<1x8x16xf32> to vector<1x8x16xbf16>
    "tpu.trace_start"() <{level = 10 : i32, message = "bne,bme->bnm"}> : () -> ()
    %cst_64 = arith.constant dense<0.000000e+00> : vector<1x8x8xf32>
    %232 = tpu.matmul %227, %229, %cst_64 {dimension_numbers = #tpu.dot_dimension_numbers<[2], [2], [1], [1], [0, 0, 0, 1, 1, 1], [0], [0]>} : vector<1x8x16xbf16>, vector<1x8x16xbf16>, vector<1x8x8xf32> -> vector<1x8x8xf32>
    "tpu.trace_stop"() : () -> ()
    %cst_65 = arith.constant dense<0xFF800000> : vector<1x8xf32>
    %233 = vector.multi_reduction <maximumf>, %232, %cst_65 [2] : vector<1x8x8xf32> to vector<1x8xf32>
    %234 = vector.shape_cast %233 : vector<1x8xf32> to vector<1x8x1xf32>
    %235 = vector.broadcast %234 : vector<1x8x1xf32> to vector<1x8x8xf32>
    %236 = arith.subf %232, %235 : vector<1x8x8xf32>
    %237 = math.exp %236 : vector<1x8x8xf32>
    %cst_66 = arith.constant dense<0.000000e+00> : vector<1x8xf32>
    %238 = vector.multi_reduction <add>, %237, %cst_66 [2] : vector<1x8x8xf32> to vector<1x8xf32>
    %239 = vector.shape_cast %238 : vector<1x8xf32> to vector<1x8x1xf32>
    %240 = tpu.reciprocal %239 {approx = true} : vector<1x8x1xf32> -> vector<1x8x1xf32>
    %241 = vector.broadcast %240 : vector<1x8x1xf32> to vector<1x8x8xf32>
    %242 = arith.mulf %237, %241 : vector<1x8x8xf32>
    %243 = arith.truncf %242 : vector<1x8x8xf32> to vector<1x8x8xbf16>
    "tpu.trace_start"() <{level = 10 : i32, message = "bnm,bme->bne"}> : () -> ()
    %cst_67 = arith.constant dense<0.000000e+00> : vector<1x8x16xf32>
    %244 = tpu.matmul %243, %231, %cst_67 {dimension_numbers = #tpu.dot_dimension_numbers<[2], [1], [1], [2], [0, 0, 0, 1, 1, 2], [0], [0]>} : vector<1x8x8xbf16>, vector<1x8x16xbf16>, vector<1x8x16xf32> -> vector<1x8x16xf32>
    "tpu.trace_stop"() : () -> ()
    %245 = tpu.concatenate %225, %244 in 2 : vector<1x8x16xf32>, vector<1x8x16xf32> -> vector<1x8x32xf32>
    %246 = vector.shape_cast %245 : vector<1x8x32xf32> to vector<8x32xf32>
    %247 = arith.truncf %246 : vector<8x32xf32> to vector<8x32xbf16>
    %cst_68 = arith.constant dense<0.000000e+00> : vector<8x32xf32>
    %248 = tpu.matmul %247, %169, %cst_68 {dimension_numbers = #tpu.dot_dimension_numbers<[1], [0], [0], [1], [0, 0, 1, 1], [], []>} : vector<8x32xbf16>, vector<32x32xbf16>, vector<8x32xf32> -> vector<8x32xf32>
    %249 = vector.shape_cast %248 : vector<8x32xf32> to vector<1x8x32xf32>
    %250 = vector.shape_cast %167 : vector<1x32xf32> to vector<1x1x32xf32>
    %251 = vector.broadcast %250 : vector<1x1x32xf32> to vector<1x8x32xf32>
    %252 = arith.addf %249, %251 : vector<1x8x32xf32>
    %253 = arith.addf %163, %252 : vector<1x8x32xf32>
    %c0_69 = arith.constant 0 : index
    %c0_70 = arith.constant 0 : index
    %254 = vector.load %arg5[%c0_69, %c0_70] : memref<3x32xf32, #tpu.memory_space<vmem>>, vector<3x32xf32>
    %255 = vector.extract_strided_slice %254 {offsets = [0, 0], sizes = [1, 32], strides = [1, 1]} : vector<3x32xf32> to vector<1x32xf32>
    %256 = vector.extract_strided_slice %254 {offsets = [1, 0], sizes = [1, 32], strides = [1, 1]} : vector<3x32xf32> to vector<1x32xf32>
    %257 = vector.extract_strided_slice %254 {offsets = [2, 0], sizes = [1, 32], strides = [1, 1]} : vector<3x32xf32> to vector<1x32xf32>
    %c0_71 = arith.constant 0 : index
    %c0_72 = arith.constant 0 : index
    %258 = vector.load %arg6[%c0_71, %c0_72] : memref<32x96xbf16, #tpu.memory_space<vmem>>, vector<32x96xbf16>
    %c0_73 = arith.constant 0 : index
    %c0_74 = arith.constant 0 : index
    %259 = vector.load %arg7[%c0_73, %c0_74] : memref<32x32xbf16, #tpu.memory_space<vmem>>, vector<32x32xbf16>
    %cst_75 = arith.constant dense<0.000000e+00> : vector<1x8xf32>
    %260 = vector.multi_reduction <add>, %163, %cst_75 [2] : vector<1x8x32xf32> to vector<1x8xf32>
    %261 = vector.shape_cast %260 : vector<1x8xf32> to vector<1x8x1xf32>
    %cst_76 = arith.constant 3.200000e+01 : f32
    %262 = vector.broadcast %cst_76 : f32 to vector<1x8x1xf32>
    %263 = arith.divf %261, %262 : vector<1x8x1xf32>
    %264 = vector.broadcast %263 : vector<1x8x1xf32> to vector<1x8x32xf32>
    %265 = arith.subf %163, %264 : vector<1x8x32xf32>
    %266 = arith.mulf %265, %265 : vector<1x8x32xf32>
    %cst_77 = arith.constant dense<0.000000e+00> : vector<1x8xf32>
    %267 = vector.multi_reduction <add>, %266, %cst_77 [2] : vector<1x8x32xf32> to vector<1x8xf32>
    %268 = vector.shape_cast %267 : vector<1x8xf32> to vector<1x8x1xf32>
    %cst_78 = arith.constant 3.200000e+01 : f32
    %269 = vector.broadcast %cst_78 : f32 to vector<1x8x1xf32>
    %270 = arith.divf %268, %269 : vector<1x8x1xf32>
    %271 = vector.broadcast %263 : vector<1x8x1xf32> to vector<1x8x32xf32>
    %272 = arith.subf %163, %271 : vector<1x8x32xf32>
    %cst_79 = arith.constant 9.99999974E-6 : f32
    %273 = vector.broadcast %cst_79 : f32 to vector<1x8x1xf32>
    %274 = arith.addf %270, %273 : vector<1x8x1xf32>
    %275 = math.rsqrt %274 : vector<1x8x1xf32>
    %276 = vector.broadcast %275 : vector<1x8x1xf32> to vector<1x8x32xf32>
    %277 = arith.mulf %272, %276 : vector<1x8x32xf32>
    %278 = vector.shape_cast %255 : vector<1x32xf32> to vector<1x1x32xf32>
    %279 = vector.broadcast %278 : vector<1x1x32xf32> to vector<1x8x32xf32>
    %280 = arith.mulf %277, %279 : vector<1x8x32xf32>
    %281 = vector.shape_cast %256 : vector<1x32xf32> to vector<1x1x32xf32>
    %282 = vector.broadcast %281 : vector<1x1x32xf32> to vector<1x8x32xf32>
    %283 = arith.addf %280, %282 : vector<1x8x32xf32>
    %284 = vector.shape_cast %283 : vector<1x8x32xf32> to vector<8x32xf32>
    %285 = arith.truncf %284 : vector<8x32xf32> to vector<8x32xbf16>
    %286 = vector.shape_cast %253 : vector<1x8x32xf32> to vector<8x32xf32>
    %287 = arith.truncf %286 : vector<8x32xf32> to vector<8x32xbf16>
    %288 = vector.extract_strided_slice %258 {offsets = [0, 0], sizes = [32, 32], strides = [1, 1]} : vector<32x96xbf16> to vector<32x32xbf16>
    %cst_80 = arith.constant dense<0.000000e+00> : vector<8x32xf32>
    %289 = tpu.matmul %285, %288, %cst_80 {dimension_numbers = #tpu.dot_dimension_numbers<[1], [0], [0], [1], [0, 0, 1, 1], [], []>} : vector<8x32xbf16>, vector<32x32xbf16>, vector<8x32xf32> -> vector<8x32xf32>
    %290 = vector.extract_strided_slice %258 {offsets = [0, 32], sizes = [32, 64], strides = [1, 1]} : vector<32x96xbf16> to vector<32x64xbf16>
    %cst_81 = arith.constant dense<0.000000e+00> : vector<8x64xf32>
    %291 = tpu.matmul %287, %290, %cst_81 {dimension_numbers = #tpu.dot_dimension_numbers<[1], [0], [0], [1], [0, 0, 1, 1], [], []>} : vector<8x32xbf16>, vector<32x64xbf16>, vector<8x64xf32> -> vector<8x64xf32>
    %292 = vector.extract_strided_slice %291 {offsets = [0, 0], sizes = [8, 32], strides = [1, 1]} : vector<8x64xf32> to vector<8x32xf32>
    %293 = vector.extract_strided_slice %291 {offsets = [0, 32], sizes = [8, 32], strides = [1, 1]} : vector<8x64xf32> to vector<8x32xf32>
    %294 = vector.shape_cast %289 : vector<8x32xf32> to vector<1x8x32xf32>
    %295 = vector.shape_cast %292 : vector<8x32xf32> to vector<1x8x32xf32>
    %296 = vector.shape_cast %293 : vector<8x32xf32> to vector<1x8x32xf32>
    %297 = vector.extract_strided_slice %294 {offsets = [0, 0, 0], sizes = [1, 8, 16], strides = [1, 1, 1]} : vector<1x8x32xf32> to vector<1x8x16xf32>
    %298 = arith.truncf %297 : vector<1x8x16xf32> to vector<1x8x16xbf16>
    %299 = vector.extract_strided_slice %295 {offsets = [0, 0, 0], sizes = [1, 8, 16], strides = [1, 1, 1]} : vector<1x8x32xf32> to vector<1x8x16xf32>
    %300 = arith.truncf %299 : vector<1x8x16xf32> to vector<1x8x16xbf16>
    %301 = vector.extract_strided_slice %296 {offsets = [0, 0, 0], sizes = [1, 8, 16], strides = [1, 1, 1]} : vector<1x8x32xf32> to vector<1x8x16xf32>
    %302 = arith.truncf %301 : vector<1x8x16xf32> to vector<1x8x16xbf16>
    "tpu.trace_start"() <{level = 10 : i32, message = "bne,bme->bnm"}> : () -> ()
    %cst_82 = arith.constant dense<0.000000e+00> : vector<1x8x8xf32>
    %303 = tpu.matmul %298, %300, %cst_82 {dimension_numbers = #tpu.dot_dimension_numbers<[2], [2], [1], [1], [0, 0, 0, 1, 1, 1], [0], [0]>} : vector<1x8x16xbf16>, vector<1x8x16xbf16>, vector<1x8x8xf32> -> vector<1x8x8xf32>
    "tpu.trace_stop"() : () -> ()
    %cst_83 = arith.constant dense<0xFF800000> : vector<1x8xf32>
    %304 = vector.multi_reduction <maximumf>, %303, %cst_83 [2] : vector<1x8x8xf32> to vector<1x8xf32>
    %305 = vector.shape_cast %304 : vector<1x8xf32> to vector<1x8x1xf32>
    %306 = vector.broadcast %305 : vector<1x8x1xf32> to vector<1x8x8xf32>
    %307 = arith.subf %303, %306 : vector<1x8x8xf32>
    %308 = math.exp %307 : vector<1x8x8xf32>
    %cst_84 = arith.constant dense<0.000000e+00> : vector<1x8xf32>
    %309 = vector.multi_reduction <add>, %308, %cst_84 [2] : vector<1x8x8xf32> to vector<1x8xf32>
    %310 = vector.shape_cast %309 : vector<1x8xf32> to vector<1x8x1xf32>
    %311 = tpu.reciprocal %310 {approx = true} : vector<1x8x1xf32> -> vector<1x8x1xf32>
    %312 = vector.broadcast %311 : vector<1x8x1xf32> to vector<1x8x8xf32>
    %313 = arith.mulf %308, %312 : vector<1x8x8xf32>
    %314 = arith.truncf %313 : vector<1x8x8xf32> to vector<1x8x8xbf16>
    "tpu.trace_start"() <{level = 10 : i32, message = "bnm,bme->bne"}> : () -> ()
    %cst_85 = arith.constant dense<0.000000e+00> : vector<1x8x16xf32>
    %315 = tpu.matmul %314, %302, %cst_85 {dimension_numbers = #tpu.dot_dimension_numbers<[2], [1], [1], [2], [0, 0, 0, 1, 1, 2], [0], [0]>} : vector<1x8x8xbf16>, vector<1x8x16xbf16>, vector<1x8x16xf32> -> vector<1x8x16xf32>
    "tpu.trace_stop"() : () -> ()
    %316 = vector.extract_strided_slice %294 {offsets = [0, 0, 16], sizes = [1, 8, 16], strides = [1, 1, 1]} : vector<1x8x32xf32> to vector<1x8x16xf32>
    %317 = arith.truncf %316 : vector<1x8x16xf32> to vector<1x8x16xbf16>
    %318 = vector.extract_strided_slice %295 {offsets = [0, 0, 16], sizes = [1, 8, 16], strides = [1, 1, 1]} : vector<1x8x32xf32> to vector<1x8x16xf32>
    %319 = arith.truncf %318 : vector<1x8x16xf32> to vector<1x8x16xbf16>
    %320 = vector.extract_strided_slice %296 {offsets = [0, 0, 16], sizes = [1, 8, 16], strides = [1, 1, 1]} : vector<1x8x32xf32> to vector<1x8x16xf32>
    %321 = arith.truncf %320 : vector<1x8x16xf32> to vector<1x8x16xbf16>
    "tpu.trace_start"() <{level = 10 : i32, message = "bne,bme->bnm"}> : () -> ()
    %cst_86 = arith.constant dense<0.000000e+00> : vector<1x8x8xf32>
    %322 = tpu.matmul %317, %319, %cst_86 {dimension_numbers = #tpu.dot_dimension_numbers<[2], [2], [1], [1], [0, 0, 0, 1, 1, 1], [0], [0]>} : vector<1x8x16xbf16>, vector<1x8x16xbf16>, vector<1x8x8xf32> -> vector<1x8x8xf32>
    "tpu.trace_stop"() : () -> ()
    %cst_87 = arith.constant dense<0xFF800000> : vector<1x8xf32>
    %323 = vector.multi_reduction <maximumf>, %322, %cst_87 [2] : vector<1x8x8xf32> to vector<1x8xf32>
    %324 = vector.shape_cast %323 : vector<1x8xf32> to vector<1x8x1xf32>
    %325 = vector.broadcast %324 : vector<1x8x1xf32> to vector<1x8x8xf32>
    %326 = arith.subf %322, %325 : vector<1x8x8xf32>
    %327 = math.exp %326 : vector<1x8x8xf32>
    %cst_88 = arith.constant dense<0.000000e+00> : vector<1x8xf32>
    %328 = vector.multi_reduction <add>, %327, %cst_88 [2] : vector<1x8x8xf32> to vector<1x8xf32>
    %329 = vector.shape_cast %328 : vector<1x8xf32> to vector<1x8x1xf32>
    %330 = tpu.reciprocal %329 {approx = true} : vector<1x8x1xf32> -> vector<1x8x1xf32>
    %331 = vector.broadcast %330 : vector<1x8x1xf32> to vector<1x8x8xf32>
    %332 = arith.mulf %327, %331 : vector<1x8x8xf32>
    %333 = arith.truncf %332 : vector<1x8x8xf32> to vector<1x8x8xbf16>
    "tpu.trace_start"() <{level = 10 : i32, message = "bnm,bme->bne"}> : () -> ()
    %cst_89 = arith.constant dense<0.000000e+00> : vector<1x8x16xf32>
    %334 = tpu.matmul %333, %321, %cst_89 {dimension_numbers = #tpu.dot_dimension_numbers<[2], [1], [1], [2], [0, 0, 0, 1, 1, 2], [0], [0]>} : vector<1x8x8xbf16>, vector<1x8x16xbf16>, vector<1x8x16xf32> -> vector<1x8x16xf32>
    "tpu.trace_stop"() : () -> ()
    %335 = tpu.concatenate %315, %334 in 2 : vector<1x8x16xf32>, vector<1x8x16xf32> -> vector<1x8x32xf32>
    %336 = vector.shape_cast %335 : vector<1x8x32xf32> to vector<8x32xf32>
    %337 = arith.truncf %336 : vector<8x32xf32> to vector<8x32xbf16>
    %cst_90 = arith.constant dense<0.000000e+00> : vector<8x32xf32>
    %338 = tpu.matmul %337, %259, %cst_90 {dimension_numbers = #tpu.dot_dimension_numbers<[1], [0], [0], [1], [0, 0, 1, 1], [], []>} : vector<8x32xbf16>, vector<32x32xbf16>, vector<8x32xf32> -> vector<8x32xf32>
    %339 = vector.shape_cast %338 : vector<8x32xf32> to vector<1x8x32xf32>
    %340 = vector.shape_cast %257 : vector<1x32xf32> to vector<1x1x32xf32>
    %341 = vector.broadcast %340 : vector<1x1x32xf32> to vector<1x8x32xf32>
    %342 = arith.addf %339, %341 : vector<1x8x32xf32>
    %343 = arith.addf %163, %342 : vector<1x8x32xf32>
    %c0_91 = arith.constant 0 : index
    %c0_92 = arith.constant 0 : index
    %344 = vector.load %arg8[%c0_91, %c0_92] : memref<3x32xf32, #tpu.memory_space<vmem>>, vector<3x32xf32>
    %345 = vector.extract_strided_slice %344 {offsets = [0, 0], sizes = [1, 32], strides = [1, 1]} : vector<3x32xf32> to vector<1x32xf32>
    %346 = vector.extract_strided_slice %344 {offsets = [1, 0], sizes = [1, 32], strides = [1, 1]} : vector<3x32xf32> to vector<1x32xf32>
    %347 = vector.extract_strided_slice %344 {offsets = [2, 0], sizes = [1, 32], strides = [1, 1]} : vector<3x32xf32> to vector<1x32xf32>
    %c0_93 = arith.constant 0 : index
    %c0_94 = arith.constant 0 : index
    %348 = vector.load %arg9[%c0_93, %c0_94] : memref<32x96xbf16, #tpu.memory_space<vmem>>, vector<32x96xbf16>
    %c0_95 = arith.constant 0 : index
    %c0_96 = arith.constant 0 : index
    %349 = vector.load %arg10[%c0_95, %c0_96] : memref<32x32xbf16, #tpu.memory_space<vmem>>, vector<32x32xbf16>
    %cst_97 = arith.constant dense<0.000000e+00> : vector<1x8xf32>
    %350 = vector.multi_reduction <add>, %253, %cst_97 [2] : vector<1x8x32xf32> to vector<1x8xf32>
    %351 = vector.shape_cast %350 : vector<1x8xf32> to vector<1x8x1xf32>
    %cst_98 = arith.constant 3.200000e+01 : f32
    %352 = vector.broadcast %cst_98 : f32 to vector<1x8x1xf32>
    %353 = arith.divf %351, %352 : vector<1x8x1xf32>
    %354 = vector.broadcast %353 : vector<1x8x1xf32> to vector<1x8x32xf32>
    %355 = arith.subf %253, %354 : vector<1x8x32xf32>
    %356 = arith.mulf %355, %355 : vector<1x8x32xf32>
    %cst_99 = arith.constant dense<0.000000e+00> : vector<1x8xf32>
    %357 = vector.multi_reduction <add>, %356, %cst_99 [2] : vector<1x8x32xf32> to vector<1x8xf32>
    %358 = vector.shape_cast %357 : vector<1x8xf32> to vector<1x8x1xf32>
    %cst_100 = arith.constant 3.200000e+01 : f32
    %359 = vector.broadcast %cst_100 : f32 to vector<1x8x1xf32>
    %360 = arith.divf %358, %359 : vector<1x8x1xf32>
    %361 = vector.broadcast %353 : vector<1x8x1xf32> to vector<1x8x32xf32>
    %362 = arith.subf %253, %361 : vector<1x8x32xf32>
    %cst_101 = arith.constant 9.99999974E-6 : f32
    %363 = vector.broadcast %cst_101 : f32 to vector<1x8x1xf32>
    %364 = arith.addf %360, %363 : vector<1x8x1xf32>
    %365 = math.rsqrt %364 : vector<1x8x1xf32>
    %366 = vector.broadcast %365 : vector<1x8x1xf32> to vector<1x8x32xf32>
    %367 = arith.mulf %362, %366 : vector<1x8x32xf32>
    %368 = vector.shape_cast %345 : vector<1x32xf32> to vector<1x1x32xf32>
    %369 = vector.broadcast %368 : vector<1x1x32xf32> to vector<1x8x32xf32>
    %370 = arith.mulf %367, %369 : vector<1x8x32xf32>
    %371 = vector.shape_cast %346 : vector<1x32xf32> to vector<1x1x32xf32>
    %372 = vector.broadcast %371 : vector<1x1x32xf32> to vector<1x8x32xf32>
    %373 = arith.addf %370, %372 : vector<1x8x32xf32>
    %374 = vector.shape_cast %373 : vector<1x8x32xf32> to vector<8x32xf32>
    %375 = arith.truncf %374 : vector<8x32xf32> to vector<8x32xbf16>
    %376 = vector.shape_cast %343 : vector<1x8x32xf32> to vector<8x32xf32>
    %377 = arith.truncf %376 : vector<8x32xf32> to vector<8x32xbf16>
    %378 = vector.extract_strided_slice %348 {offsets = [0, 0], sizes = [32, 32], strides = [1, 1]} : vector<32x96xbf16> to vector<32x32xbf16>
    %cst_102 = arith.constant dense<0.000000e+00> : vector<8x32xf32>
    %379 = tpu.matmul %375, %378, %cst_102 {dimension_numbers = #tpu.dot_dimension_numbers<[1], [0], [0], [1], [0, 0, 1, 1], [], []>} : vector<8x32xbf16>, vector<32x32xbf16>, vector<8x32xf32> -> vector<8x32xf32>
    %380 = vector.extract_strided_slice %348 {offsets = [0, 32], sizes = [32, 64], strides = [1, 1]} : vector<32x96xbf16> to vector<32x64xbf16>
    %cst_103 = arith.constant dense<0.000000e+00> : vector<8x64xf32>
    %381 = tpu.matmul %377, %380, %cst_103 {dimension_numbers = #tpu.dot_dimension_numbers<[1], [0], [0], [1], [0, 0, 1, 1], [], []>} : vector<8x32xbf16>, vector<32x64xbf16>, vector<8x64xf32> -> vector<8x64xf32>
    %382 = vector.extract_strided_slice %381 {offsets = [0, 0], sizes = [8, 32], strides = [1, 1]} : vector<8x64xf32> to vector<8x32xf32>
    %383 = vector.extract_strided_slice %381 {offsets = [0, 32], sizes = [8, 32], strides = [1, 1]} : vector<8x64xf32> to vector<8x32xf32>
    %384 = vector.shape_cast %379 : vector<8x32xf32> to vector<1x8x32xf32>
    %385 = vector.shape_cast %382 : vector<8x32xf32> to vector<1x8x32xf32>
    %386 = vector.shape_cast %383 : vector<8x32xf32> to vector<1x8x32xf32>
    %387 = vector.extract_strided_slice %384 {offsets = [0, 0, 0], sizes = [1, 8, 16], strides = [1, 1, 1]} : vector<1x8x32xf32> to vector<1x8x16xf32>
    %388 = arith.truncf %387 : vector<1x8x16xf32> to vector<1x8x16xbf16>
    %389 = vector.extract_strided_slice %385 {offsets = [0, 0, 0], sizes = [1, 8, 16], strides = [1, 1, 1]} : vector<1x8x32xf32> to vector<1x8x16xf32>
    %390 = arith.truncf %389 : vector<1x8x16xf32> to vector<1x8x16xbf16>
    %391 = vector.extract_strided_slice %386 {offsets = [0, 0, 0], sizes = [1, 8, 16], strides = [1, 1, 1]} : vector<1x8x32xf32> to vector<1x8x16xf32>
    %392 = arith.truncf %391 : vector<1x8x16xf32> to vector<1x8x16xbf16>
    "tpu.trace_start"() <{level = 10 : i32, message = "bne,bme->bnm"}> : () -> ()
    %cst_104 = arith.constant dense<0.000000e+00> : vector<1x8x8xf32>
    %393 = tpu.matmul %388, %390, %cst_104 {dimension_numbers = #tpu.dot_dimension_numbers<[2], [2], [1], [1], [0, 0, 0, 1, 1, 1], [0], [0]>} : vector<1x8x16xbf16>, vector<1x8x16xbf16>, vector<1x8x8xf32> -> vector<1x8x8xf32>
    "tpu.trace_stop"() : () -> ()
    %cst_105 = arith.constant dense<0xFF800000> : vector<1x8xf32>
    %394 = vector.multi_reduction <maximumf>, %393, %cst_105 [2] : vector<1x8x8xf32> to vector<1x8xf32>
    %395 = vector.shape_cast %394 : vector<1x8xf32> to vector<1x8x1xf32>
    %396 = vector.broadcast %395 : vector<1x8x1xf32> to vector<1x8x8xf32>
    %397 = arith.subf %393, %396 : vector<1x8x8xf32>
    %398 = math.exp %397 : vector<1x8x8xf32>
    %cst_106 = arith.constant dense<0.000000e+00> : vector<1x8xf32>
    %399 = vector.multi_reduction <add>, %398, %cst_106 [2] : vector<1x8x8xf32> to vector<1x8xf32>
    %400 = vector.shape_cast %399 : vector<1x8xf32> to vector<1x8x1xf32>
    %401 = tpu.reciprocal %400 {approx = true} : vector<1x8x1xf32> -> vector<1x8x1xf32>
    %402 = vector.broadcast %401 : vector<1x8x1xf32> to vector<1x8x8xf32>
    %403 = arith.mulf %398, %402 : vector<1x8x8xf32>
    %404 = arith.truncf %403 : vector<1x8x8xf32> to vector<1x8x8xbf16>
    "tpu.trace_start"() <{level = 10 : i32, message = "bnm,bme->bne"}> : () -> ()
    %cst_107 = arith.constant dense<0.000000e+00> : vector<1x8x16xf32>
    %405 = tpu.matmul %404, %392, %cst_107 {dimension_numbers = #tpu.dot_dimension_numbers<[2], [1], [1], [2], [0, 0, 0, 1, 1, 2], [0], [0]>} : vector<1x8x8xbf16>, vector<1x8x16xbf16>, vector<1x8x16xf32> -> vector<1x8x16xf32>
    "tpu.trace_stop"() : () -> ()
    %406 = vector.extract_strided_slice %384 {offsets = [0, 0, 16], sizes = [1, 8, 16], strides = [1, 1, 1]} : vector<1x8x32xf32> to vector<1x8x16xf32>
    %407 = arith.truncf %406 : vector<1x8x16xf32> to vector<1x8x16xbf16>
    %408 = vector.extract_strided_slice %385 {offsets = [0, 0, 16], sizes = [1, 8, 16], strides = [1, 1, 1]} : vector<1x8x32xf32> to vector<1x8x16xf32>
    %409 = arith.truncf %408 : vector<1x8x16xf32> to vector<1x8x16xbf16>
    %410 = vector.extract_strided_slice %386 {offsets = [0, 0, 16], sizes = [1, 8, 16], strides = [1, 1, 1]} : vector<1x8x32xf32> to vector<1x8x16xf32>
    %411 = arith.truncf %410 : vector<1x8x16xf32> to vector<1x8x16xbf16>
    "tpu.trace_start"() <{level = 10 : i32, message = "bne,bme->bnm"}> : () -> ()
    %cst_108 = arith.constant dense<0.000000e+00> : vector<1x8x8xf32>
    %412 = tpu.matmul %407, %409, %cst_108 {dimension_numbers = #tpu.dot_dimension_numbers<[2], [2], [1], [1], [0, 0, 0, 1, 1, 1], [0], [0]>} : vector<1x8x16xbf16>, vector<1x8x16xbf16>, vector<1x8x8xf32> -> vector<1x8x8xf32>
    "tpu.trace_stop"() : () -> ()
    %cst_109 = arith.constant dense<0xFF800000> : vector<1x8xf32>
    %413 = vector.multi_reduction <maximumf>, %412, %cst_109 [2] : vector<1x8x8xf32> to vector<1x8xf32>
    %414 = vector.shape_cast %413 : vector<1x8xf32> to vector<1x8x1xf32>
    %415 = vector.broadcast %414 : vector<1x8x1xf32> to vector<1x8x8xf32>
    %416 = arith.subf %412, %415 : vector<1x8x8xf32>
    %417 = math.exp %416 : vector<1x8x8xf32>
    %cst_110 = arith.constant dense<0.000000e+00> : vector<1x8xf32>
    %418 = vector.multi_reduction <add>, %417, %cst_110 [2] : vector<1x8x8xf32> to vector<1x8xf32>
    %419 = vector.shape_cast %418 : vector<1x8xf32> to vector<1x8x1xf32>
    %420 = tpu.reciprocal %419 {approx = true} : vector<1x8x1xf32> -> vector<1x8x1xf32>
    %421 = vector.broadcast %420 : vector<1x8x1xf32> to vector<1x8x8xf32>
    %422 = arith.mulf %417, %421 : vector<1x8x8xf32>
    %423 = arith.truncf %422 : vector<1x8x8xf32> to vector<1x8x8xbf16>
    "tpu.trace_start"() <{level = 10 : i32, message = "bnm,bme->bne"}> : () -> ()
    %cst_111 = arith.constant dense<0.000000e+00> : vector<1x8x16xf32>
    %424 = tpu.matmul %423, %411, %cst_111 {dimension_numbers = #tpu.dot_dimension_numbers<[2], [1], [1], [2], [0, 0, 0, 1, 1, 2], [0], [0]>} : vector<1x8x8xbf16>, vector<1x8x16xbf16>, vector<1x8x16xf32> -> vector<1x8x16xf32>
    "tpu.trace_stop"() : () -> ()
    %425 = tpu.concatenate %405, %424 in 2 : vector<1x8x16xf32>, vector<1x8x16xf32> -> vector<1x8x32xf32>
    %426 = vector.shape_cast %425 : vector<1x8x32xf32> to vector<8x32xf32>
    %427 = arith.truncf %426 : vector<8x32xf32> to vector<8x32xbf16>
    %cst_112 = arith.constant dense<0.000000e+00> : vector<8x32xf32>
    %428 = tpu.matmul %427, %349, %cst_112 {dimension_numbers = #tpu.dot_dimension_numbers<[1], [0], [0], [1], [0, 0, 1, 1], [], []>} : vector<8x32xbf16>, vector<32x32xbf16>, vector<8x32xf32> -> vector<8x32xf32>
    %429 = vector.shape_cast %428 : vector<8x32xf32> to vector<1x8x32xf32>
    %430 = vector.shape_cast %347 : vector<1x32xf32> to vector<1x1x32xf32>
    %431 = vector.broadcast %430 : vector<1x1x32xf32> to vector<1x8x32xf32>
    %432 = arith.addf %429, %431 : vector<1x8x32xf32>
    %433 = arith.addf %253, %432 : vector<1x8x32xf32>
    %c0_113 = arith.constant 0 : index
    %c0_114 = arith.constant 0 : index
    %c0_115 = arith.constant 0 : index
    %434 = vector.load %arg22[%c0_113, %c0_114, %c0_115] : memref<1x8x32xf32, #tpu.memory_space<vmem>>, vector<1x8x32xf32>
    tpu.vector_store %arg22[%c0_113, %c0_114, %c0_115], %433 {strides = array<i32>} : memref<1x8x32xf32, #tpu.memory_space<vmem>>, vector<1x8x32xf32>,
    return
  }
  func.func @transform_0(%arg0: i32) -> (i32, i32, i32) {
    %c0_i32 = arith.constant 0 : i32
    %c0_i32_0 = arith.constant 0 : i32
    %c0_i32_1 = arith.constant 0 : i32
    return %arg0, %c0_i32, %c0_i32_0 : i32, i32, i32
  }
  func.func @transform_1(%arg0: i32) -> (i32, i32) {
    %c0_i32 = arith.constant 0 : i32
    %c0_i32_0 = arith.constant 0 : i32
    %c0_i32_1 = arith.constant 0 : i32
    return %c0_i32, %c0_i32_0 : i32, i32
  }
  func.func @transform_2(%arg0: i32) -> (i32, i32) {
    %c0_i32 = arith.constant 0 : i32
    %c0_i32_0 = arith.constant 0 : i32
    %c0_i32_1 = arith.constant 0 : i32
    return %c0_i32, %c0_i32_0 : i32, i32
  }
  func.func @transform_3(%arg0: i32) -> (i32, i32) {
    %c0_i32 = arith.constant 0 : i32
    %c0_i32_0 = arith.constant 0 : i32
    %c0_i32_1 = arith.constant 0 : i32
    return %c0_i32, %c0_i32_0 : i32, i32
  }
  func.func @transform_4(%arg0: i32) -> (i32, i32) {
    %c0_i32 = arith.constant 0 : i32
    %c0_i32_0 = arith.constant 0 : i32
    %c0_i32_1 = arith.constant 0 : i32
    return %c0_i32, %c0_i32_0 : i32, i32
  }
  func.func @transform_5(%arg0: i32) -> (i32, i32) {
    %c0_i32 = arith.constant 0 : i32
    %c0_i32_0 = arith.constant 0 : i32
    %c0_i32_1 = arith.constant 0 : i32
    return %c0_i32, %c0_i32_0 : i32, i32
  }
  func.func @transform_6(%arg0: i32) -> (i32, i32) {
    %c0_i32 = arith.constant 0 : i32
    %c0_i32_0 = arith.constant 0 : i32
    %c0_i32_1 = arith.constant 0 : i32
    return %c0_i32, %c0_i32_0 : i32, i32
  }
  func.func @transform_7(%arg0: i32) -> (i32, i32) {
    %c0_i32 = arith.constant 0 : i32
    %c0_i32_0 = arith.constant 0 : i32
    %c0_i32_1 = arith.constant 0 : i32
    return %c0_i32, %c0_i32_0 : i32, i32
  }
  func.func @transform_8(%arg0: i32) -> (i32, i32) {
    %c0_i32 = arith.constant 0 : i32
    %c0_i32_0 = arith.constant 0 : i32
    %c0_i32_1 = arith.constant 0 : i32
    return %c0_i32, %c0_i32_0 : i32, i32
  }
  func.func @transform_9(%arg0: i32) -> (i32, i32) {
    %c0_i32 = arith.constant 0 : i32
    %c0_i32_0 = arith.constant 0 : i32
    %c0_i32_1 = arith.constant 0 : i32
    return %c0_i32, %c0_i32_0 : i32, i32
  }
  func.func @transform_10(%arg0: i32) -> (i32, i32) {
    %c0_i32 = arith.constant 0 : i32
    %c0_i32_0 = arith.constant 0 : i32
    %c0_i32_1 = arith.constant 0 : i32
    return %c0_i32, %c0_i32_0 : i32, i32
  }
  func.func @transform_11(%arg0: i32) -> (i32, i32) {
    %c0_i32 = arith.constant 0 : i32
    %c0_i32_0 = arith.constant 0 : i32
    %c0_i32_1 = arith.constant 0 : i32
    return %c0_i32, %c0_i32_0 : i32, i32
  }
  func.func @transform_12(%arg0: i32) -> (i32, i32) {
    %c0_i32 = arith.constant 0 : i32
    %c0_i32_0 = arith.constant 0 : i32
    %c0_i32_1 = arith.constant 0 : i32
    return %c0_i32, %c0_i32_0 : i32, i32
  }
  func.func @transform_13(%arg0: i32) -> (i32, i32) {
    %c0_i32 = arith.constant 0 : i32
    %c0_i32_0 = arith.constant 0 : i32
    %c0_i32_1 = arith.constant 0 : i32
    return %c0_i32, %c0_i32_0 : i32, i32
  }
  func.func @transform_14(%arg0: i32) -> (i32, i32) {
    %c0_i32 = arith.constant 0 : i32
    %c0_i32_0 = arith.constant 0 : i32
    %c0_i32_1 = arith.constant 0 : i32
    return %c0_i32, %c0_i32_0 : i32, i32
  }
  func.func @transform_15(%arg0: i32) -> (i32, i32) {
    %c0_i32 = arith.constant 0 : i32
    %c0_i32_0 = arith.constant 0 : i32
    %c0_i32_1 = arith.constant 0 : i32
    return %c0_i32, %c0_i32_0 : i32, i32
  }
  func.func @transform_16(%arg0: i32) -> (i32, i32) {
    %c0_i32 = arith.constant 0 : i32
    %c0_i32_0 = arith.constant 0 : i32
    %c0_i32_1 = arith.constant 0 : i32
    return %c0_i32, %c0_i32_0 : i32, i32
  }
  func.func @transform_17(%arg0: i32) -> (i32, i32) {
    %c0_i32 = arith.constant 0 : i32
    %c0_i32_0 = arith.constant 0 : i32
    %c0_i32_1 = arith.constant 0 : i32
    return %c0_i32, %c0_i32_0 : i32, i32
  }
  func.func @transform_18(%arg0: i32) -> (i32, i32) {
    %c0_i32 = arith.constant 0 : i32
    %c0_i32_0 = arith.constant 0 : i32
    %c0_i32_1 = arith.constant 0 : i32
    return %c0_i32, %c0_i32_0 : i32, i32
  }
  func.func @transform_19(%arg0: i32) -> (i32, i32) {
    %c0_i32 = arith.constant 0 : i32
    %c0_i32_0 = arith.constant 0 : i32
    %c0_i32_1 = arith.constant 0 : i32
    return %c0_i32, %c0_i32_0 : i32, i32
  }
  func.func @transform_20(%arg0: i32) -> (i32, i32) {
    %c0_i32 = arith.constant 0 : i32
    %c0_i32_0 = arith.constant 0 : i32
    %c0_i32_1 = arith.constant 0 : i32
    return %c0_i32, %c0_i32_0 : i32, i32
  }
  func.func @transform_21(%arg0: i32) -> (i32, i32, i32) {
    %c0_i32 = arith.constant 0 : i32
    %c0_i32_0 = arith.constant 0 : i32
    %c0_i32_1 = arith.constant 0 : i32
    return %arg0, %c0_i32, %c0_i32_0 : i32, i32, i32
  }
}

</mosaic_0001>

<llo_original>
// kernel: tpu_custom_call.1
$region0: #{tpu_custom_call.1}
  #allocation0 [shape = 'u32[]', space=smem, size = 0x4, offset = 0x4, fixed_abs, tag = 'smem constant byte address 0x4 - core index']
  #allocation1 [shape = 'u32[72,128]{1,0:T(1,128)}', space=vmem, size = 0x9000, scoped, tag = 'internal scratch']
  %s0 = inlined_call_operand.vmem [shape: f32[2,8,32], index: 0, kind: input, shape index: {}]
  %s1 = inlined_call_operand.hbm [shape: f32[3,32], index: 1, kind: input, shape index: {}]
  %s2 = inlined_call_operand.vmem [shape: bf16[32,96], index: 2, kind: input, shape index: {}]
  %s3 = inlined_call_operand.vmem [shape: bf16[32,32], index: 3, kind: input, shape index: {}]
  %s4 = inlined_call_operand.hbm [shape: f32[3,32], index: 4, kind: input, shape index: {}]
  %s5 = inlined_call_operand.hbm [shape: bf16[32,96], index: 5, kind: input, shape index: {}]
  %s6 = inlined_call_operand.hbm [shape: bf16[32,32], index: 6, kind: input, shape index: {}]
  %s7 = inlined_call_operand.hbm [shape: f32[3,32], index: 7, kind: input, shape index: {}]
  %s8 = inlined_call_operand.hbm [shape: bf16[32,96], index: 8, kind: input, shape index: {}]
  %s9 = inlined_call_operand.hbm [shape: bf16[32,32], index: 9, kind: input, shape index: {}]
  %s10 = inlined_call_operand.hbm [shape: f32[3,32], index: 10, kind: input, shape index: {}]
  %s11 = inlined_call_operand.hbm [shape: bf16[32,96], index: 11, kind: input, shape index: {}]
  %s12 = inlined_call_operand.hbm [shape: bf16[32,32], index: 12, kind: input, shape index: {}]
  %s13 = inlined_call_operand.hbm [shape: f32[3,32], index: 13, kind: input, shape index: {}]
  %s14 = inlined_call_operand.hbm [shape: bf16[32,96], index: 14, kind: input, shape index: {}]
  %s15 = inlined_call_operand.hbm [shape: bf16[32,32], index: 15, kind: input, shape index: {}]
  %s16 = inlined_call_operand.hbm [shape: f32[1,64], index: 16, kind: input, shape index: {}]
  %s17 = inlined_call_operand.hbm [shape: f32[3,32], index: 17, kind: input, shape index: {}]
  %s18 = inlined_call_operand.hbm [shape: bf16[32,64], index: 18, kind: input, shape index: {}]
  %s19 = inlined_call_operand.vmem [shape: bf16[64,32], index: 19, kind: input, shape index: {}]
  %s20 = inlined_call_operand.vmem [shape: f32[2,32], index: 20, kind: input, shape index: {}]
  %s21 = inlined_call_operand.hbm [shape: f32[2,8,32], index: 21, kind: output, shape index: {}]
  %s22 = sld [smem:[#allocation0]]
  $region181: #{tpu_custom_call.1} parent=0
    _
  %s24 = ssub.s32 1, %s22
  %s25 = scalar_select 0, %s24, %s22
  $region1: #{tpu_custom_call.1} parent=0
    #allocation2 [shape = 'u8[2048]{0}', space=vmem, size = 0x800, scoped, tag = 'input window, operand 1, single buffered']
    #allocation3 [shape = 's32[2]{0}', space=sflag, size = 0x8, scoped, tag = 'scoped memory for tpu_custom_call.1']
    #allocation4 [shape = 's32[2]{0}', space=sflag, size = 0x8, scoped, tag = 'scoped memory for tpu_custom_call.1']
    #allocation5 [shape = 'u8[2048]{0}', space=vmem, size = 0x800, scoped, tag = 'input window, operand 4, single buffered']
    #allocation6 [shape = 's32[1]{0}', space=sflag, size = 0x4, scoped, tag = 'scoped memory for tpu_custom_call.1']
    #allocation7 [shape = 'u8[8192]{0}', space=vmem, size = 0x2000, scoped, tag = 'input window, operand 5, single buffered']
    #allocation8 [shape = 'u8[8192]{0}', space=vmem, size = 0x2000, scoped, tag = 'input window, operand 6, single buffered']
    #allocation9 [shape = 's32[1]{0}', space=sflag, size = 0x4, scoped, tag = 'scoped memory for tpu_custom_call.1']
    #allocation10 [shape = 'u8[2048]{0}', space=vmem, size = 0x800, scoped, tag = 'input window, operand 7, single buffered']
    #allocation11 [shape = 'u8[8192]{0}', space=vmem, size = 0x2000, scoped, tag = 'input window, operand 8, single buffered']
    #allocation12 [shape = 's32[1]{0}', space=sflag, size = 0x4, scoped, tag = 'scoped memory for tpu_custom_call.1']
    #allocation13 [shape = 'u8[8192]{0}', space=vmem, size = 0x2000, scoped, tag = 'input window, operand 9, single buffered']
    #allocation14 [shape = 'u8[2048]{0}', space=vmem, size = 0x800, scoped, tag = 'input window, operand 10, single buffered']
    #allocation15 [shape = 's32[1]{0}', space=sflag, size = 0x4, scoped, tag = 'scoped memory for tpu_custom_call.1']
    #allocation16 [shape = 'u8[8192]{0}', space=vmem, size = 0x2000, scoped, tag = 'input window, operand 11, single buffered']
    #allocation17 [shape = 'u8[8192]{0}', space=vmem, size = 0x2000, scoped, tag = 'input window, operand 12, single buffered']
    #allocation18 [shape = 's32[1]{0}', space=sflag, size = 0x4, scoped, tag = 'scoped memory for tpu_custom_call.1']
    #allocation19 [shape = 'u8[2048]{0}', space=vmem, size = 0x800, scoped, tag = 'input window, operand 13, single buffered']
    #allocation20 [shape = 'u8[8192]{0}', space=vmem, size = 0x2000, scoped, tag = 'input window, operand 14, single buffered']
    #allocation21 [shape = 's32[1]{0}', space=sflag, size = 0x4, scoped, tag = 'scoped memory for tpu_custom_call.1']
    #allocation22 [shape = 'u8[8192]{0}', space=vmem, size = 0x2000, scoped, tag = 'input window, operand 15, single buffered']
    #allocation23 [shape = 'u8[512]{0}', space=vmem, size = 0x400, scoped, tag = 'input window, operand 16, single buffered']
    #allocation24 [shape = 's32[1]{0}', space=sflag, size = 0x4, scoped, tag = 'scoped memory for tpu_custom_call.1']
    #allocation25 [shape = 'u8[2048]{0}', space=vmem, size = 0x800, scoped, tag = 'input window, operand 17, single buffered']
    #allocation26 [shape = 'u8[8192]{0}', space=vmem, size = 0x2000, scoped, tag = 'input window, operand 18, single buffered']
    #allocation27 [shape = 's32[1]{0}', space=sflag, size = 0x4, scoped, tag = 'scoped memory for tpu_custom_call.1']
    #allocation28 [shape = 'u8[8192]{0}', space=vmem, size = 0x2000, scoped, tag = 'output window, operand 0']
    %26 = vsyncpa [#allocation3], 0
    %27 = vsyncpa [#allocation6], 0
    %28 = vsyncpa [#allocation9], 0
    %29 = vsyncpa [#allocation12], 0
    %30 = vsyncpa [#allocation15], 0
    %31 = vsyncpa [#allocation18], 0
    %32 = vsyncpa [#allocation21], 0
    %33 = vsyncpa [#allocation24], 0
    %34 = vsyncpa [#allocation27], 0
    %35 = vsyncpa [#allocation4], 0
    %s36 = scalar_lea.sflag [#allocation4], 1
    %37 = vsyncpa %s36, 0
    loop: start=0, step=1, limit=4
    $region2: #{tpu_custom_call.1} parent=1 // loop_pre_header
      _
    $region3: #{tpu_custom_call.1} parent=1 // loop_header
      %s39 = sphi 0, %s43
      %p40 = scmp.ge.s32.totalorder %s39, 4
      %s49 = sphi 0, %s51
      %s52 = sphi 0, %s49
      %s53 = sphi 0, %s52
      %s69 = sphi 0, %s53
      %s73 = sphi 0, %s73
      %s75 = sphi 0, %s73
      %s76 = sphi 0, %s75
      %s90 = sphi 0, %s76
      %s94 = sphi 0, %s94
      %s96 = sphi 0, %s94
      %s97 = sphi 0, %s96
      %s111 = sphi 0, %s97
      %s115 = sphi 0, %s115
      %s117 = sphi 0, %s115
      %s118 = sphi 0, %s117
      %s132 = sphi 0, %s118
      %s136 = sphi 0, %s136
      %s138 = sphi 0, %s136
      %s139 = sphi 0, %s138
      %s153 = sphi 0, %s139
      %s157 = sphi 0, %s157
      %s159 = sphi 0, %s157
      %s160 = sphi 0, %s159
      %s174 = sphi 0, %s160
      %s178 = sphi 0, %s178
      %s180 = sphi 0, %s178
      %s181 = sphi 0, %s180
      %s195 = sphi 0, %s181
      %s199 = sphi 0, %s199
      %s201 = sphi 0, %s199
      %s202 = sphi 0, %s201
      %s216 = sphi 0, %s202
      %s220 = sphi 0, %s220
      %s222 = sphi 0, %s220
      %s223 = sphi 0, %s222
      %s237 = sphi 0, %s223
      %s241 = sphi 0, %s241
      %s243 = sphi 0, %s241
      %s244 = sphi 0, %s243
      %s258 = sphi 0, %s244
      %s262 = sphi 0, %s262
      %s264 = sphi 0, %s262
      %s265 = sphi 0, %s264
      %s279 = sphi 0, %s265
      %s283 = sphi 0, %s283
      %s285 = sphi 0, %s283
      %s286 = sphi 0, %s285
      %s300 = sphi 0, %s286
      %s304 = sphi 0, %s304
      %s306 = sphi 0, %s304
      %s307 = sphi 0, %s306
      %s321 = sphi 0, %s307
      %s325 = sphi 0, %s325
      %s327 = sphi 0, %s325
      %s328 = sphi 0, %s327
      %s342 = sphi 0, %s328
      %s346 = sphi 0, %s346
      %s348 = sphi 0, %s346
      %s349 = sphi 0, %s348
      %s363 = sphi 0, %s349
      %s367 = sphi 0, %s367
      %s369 = sphi 0, %s367
      %s370 = sphi 0, %s369
      %s384 = sphi 0, %s370
      %s388 = sphi 0, %s388
      %s390 = sphi 0, %s388
      %s391 = sphi 0, %s390
      %s405 = sphi 0, %s391
      %s409 = sphi 0, %s409
      %s411 = sphi 0, %s409
      %s412 = sphi 0, %s411
      %s426 = sphi 0, %s412
      %s430 = sphi 0, %s430
      %s432 = sphi 0, %s430
      %s433 = sphi 0, %s432
      %s447 = sphi 0, %s433
      %s451 = sphi 0, %s451
      %s453 = sphi 0, %s451
      %s454 = sphi 0, %s453
      %s468 = sphi 0, %s454
      %s472 = sphi 0, %s472
      %s474 = sphi 0, %s472
      %s475 = sphi 0, %s474
      %s489 = sphi 0, %s475
      %s495 = sphi 0, %s497
      %s498 = sphi 0, %s495
      %s499 = sphi 0, %s498
      %s515 = sphi 0, %s499
    $region4: #{tpu_custom_call.1} parent=1 // loop_header_branch
      %42 = sbr.rel (%p40) target = $region8
    $region5: #{tpu_custom_call.1} parent=1 // loop_body
      %s44 = ssub.s32 %s39, 1
      %s45 = ssub.s32 %s39, 2
      %s46 = sadd.s32 %s39, 1
      %s47 = ssub.s32 %s39, %s46
      %p48 = scmp.eq.s32.totalorder %s47, 0
      %s50 = sadd.s32 %s49, 1
      %s51 = scalar_select %p48, %s49, %s50
      %p54 = pneg %p48
      %p55 = scmp.eq.s32.totalorder %s39, 1
      %p56 = por %p54, %p55
      %p57 = scmp.ne.s32.totalorder %s49, %s52
      %p58 = scmp.eq.s32.totalorder %s39, 0
      %p59 = por %p57, %p58
      %p60 = scmp.ne.s32.totalorder %s49, %s52
      %p61 = scmp.eq.s32.totalorder %s44, 1
      %p62 = por %p60, %p61
      %p63 = scmp.ne.s32.totalorder %s52, %s53
      %p64 = scmp.eq.s32.totalorder %s44, 0
      %p65 = por %p63, %p64
      %p66 = scmp.ne.s32.totalorder %s52, %s53
      %p67 = scmp.eq.s32.totalorder %s45, 1
      %p68 = por %p66, %p67
      %p70 = scmp.ne.s32.totalorder %s53, %s69
      %p71 = scmp.eq.s32.totalorder %s45, 0
      %p72 = por %p70, %p71
      %s74 = sadd.s32 %s73, 1
      %p77 = scmp.eq.s32.totalorder %s39, 1
      %p78 = scmp.ne.s32.totalorder %s73, %s75
      %p79 = scmp.eq.s32.totalorder %s39, 0
      %p80 = por %p78, %p79
      %p81 = scmp.ne.s32.totalorder %s73, %s75
      %p82 = scmp.eq.s32.totalorder %s44, 1
      %p83 = por %p81, %p82
      %p84 = scmp.ne.s32.totalorder %s75, %s76
      %p85 = scmp.eq.s32.totalorder %s44, 0
      %p86 = por %p84, %p85
      %p87 = scmp.ne.s32.totalorder %s75, %s76
      %p88 = scmp.eq.s32.totalorder %s45, 1
      %p89 = por %p87, %p88
      %p91 = scmp.ne.s32.totalorder %s76, %s90
      %p92 = scmp.eq.s32.totalorder %s45, 0
      %p93 = por %p91, %p92
      %s95 = sadd.s32 %s94, 1
      %p98 = scmp.eq.s32.totalorder %s39, 1
      %p99 = scmp.ne.s32.totalorder %s94, %s96
      %p100 = scmp.eq.s32.totalorder %s39, 0
      %p101 = por %p99, %p100
      %p102 = scmp.ne.s32.totalorder %s94, %s96
      %p103 = scmp.eq.s32.totalorder %s44, 1
      %p104 = por %p102, %p103
      %p105 = scmp.ne.s32.totalorder %s96, %s97
      %p106 = scmp.eq.s32.totalorder %s44, 0
      %p107 = por %p105, %p106
      %p108 = scmp.ne.s32.totalorder %s96, %s97
      %p109 = scmp.eq.s32.totalorder %s45, 1
      %p110 = por %p108, %p109
      %p112 = scmp.ne.s32.totalorder %s97, %s111
      %p113 = scmp.eq.s32.totalorder %s45, 0
      %p114 = por %p112, %p113
      %s116 = sadd.s32 %s115, 1
      %p119 = scmp.eq.s32.totalorder %s39, 1
      %p120 = scmp.ne.s32.totalorder %s115, %s117
      %p121 = scmp.eq.s32.totalorder %s39, 0
      %p122 = por %p120, %p121
      %p123 = scmp.ne.s32.totalorder %s115, %s117
      %p124 = scmp.eq.s32.totalorder %s44, 1
      %p125 = por %p123, %p124
      %p126 = scmp.ne.s32.totalorder %s117, %s118
      %p127 = scmp.eq.s32.totalorder %s44, 0
      %p128 = por %p126, %p127
      %p129 = scmp.ne.s32.totalorder %s117, %s118
      %p130 = scmp.eq.s32.totalorder %s45, 1
      %p131 = por %p129, %p130
      %p133 = scmp.ne.s32.totalorder %s118, %s132
      %p134 = scmp.eq.s32.totalorder %s45, 0
      %p135 = por %p133, %p134
      %s137 = sadd.s32 %s136, 1
      %p140 = scmp.eq.s32.totalorder %s39, 1
      %p141 = scmp.ne.s32.totalorder %s136, %s138
      %p142 = scmp.eq.s32.totalorder %s39, 0
      %p143 = por %p141, %p142
      %p144 = scmp.ne.s32.totalorder %s136, %s138
      %p145 = scmp.eq.s32.totalorder %s44, 1
      %p146 = por %p144, %p145
      %p147 = scmp.ne.s32.totalorder %s138, %s139
      %p148 = scmp.eq.s32.totalorder %s44, 0
      %p149 = por %p147, %p148
      %p150 = scmp.ne.s32.totalorder %s138, %s139
      %p151 = scmp.eq.s32.totalorder %s45, 1
      %p152 = por %p150, %p151
      %p154 = scmp.ne.s32.totalorder %s139, %s153
      %p155 = scmp.eq.s32.totalorder %s45, 0
      %p156 = por %p154, %p155
      %s158 = sadd.s32 %s157, 1
      %p161 = scmp.eq.s32.totalorder %s39, 1
      %p162 = scmp.ne.s32.totalorder %s157, %s159
      %p163 = scmp.eq.s32.totalorder %s39, 0
      %p164 = por %p162, %p163
      %p165 = scmp.ne.s32.totalorder %s157, %s159
      %p166 = scmp.eq.s32.totalorder %s44, 1
      %p167 = por %p165, %p166
      %p168 = scmp.ne.s32.totalorder %s159, %s160
      %p169 = scmp.eq.s32.totalorder %s44, 0
      %p170 = por %p168, %p169
      %p171 = scmp.ne.s32.totalorder %s159, %s160
      %p172 = scmp.eq.s32.totalorder %s45, 1
      %p173 = por %p171, %p172
      %p175 = scmp.ne.s32.totalorder %s160, %s174
      %p176 = scmp.eq.s32.totalorder %s45, 0
      %p177 = por %p175, %p176
      %s179 = sadd.s32 %s178, 1
      %p182 = scmp.eq.s32.totalorder %s39, 1
      %p183 = scmp.ne.s32.totalorder %s178, %s180
      %p184 = scmp.eq.s32.totalorder %s39, 0
      %p185 = por %p183, %p184
      %p186 = scmp.ne.s32.totalorder %s178, %s180
      %p187 = scmp.eq.s32.totalorder %s44, 1
      %p188 = por %p186, %p187
      %p189 = scmp.ne.s32.totalorder %s180, %s181
      %p190 = scmp.eq.s32.totalorder %s44, 0
      %p191 = por %p189, %p190
      %p192 = scmp.ne.s32.totalorder %s180, %s181
      %p193 = scmp.eq.s32.totalorder %s45, 1
      %p194 = por %p192, %p193
      %p196 = scmp.ne.s32.totalorder %s181, %s195
      %p197 = scmp.eq.s32.totalorder %s45, 0
      %p198 = por %p196, %p197
      %s200 = sadd.s32 %s199, 1
      %p203 = scmp.eq.s32.totalorder %s39, 1
      %p204 = scmp.ne.s32.totalorder %s199, %s201
      %p205 = scmp.eq.s32.totalorder %s39, 0
      %p206 = por %p204, %p205
      %p207 = scmp.ne.s32.totalorder %s199, %s201
      %p208 = scmp.eq.s32.totalorder %s44, 1
      %p209 = por %p207, %p208
      %p210 = scmp.ne.s32.totalorder %s201, %s202
      %p211 = scmp.eq.s32.totalorder %s44, 0
      %p212 = por %p210, %p211
      %p213 = scmp.ne.s32.totalorder %s201, %s202
      %p214 = scmp.eq.s32.totalorder %s45, 1
      %p215 = por %p213, %p214
      %p217 = scmp.ne.s32.totalorder %s202, %s216
      %p218 = scmp.eq.s32.totalorder %s45, 0
      %p219 = por %p217, %p218
      %s221 = sadd.s32 %s220, 1
      %p224 = scmp.eq.s32.totalorder %s39, 1
      %p225 = scmp.ne.s32.totalorder %s220, %s222
      %p226 = scmp.eq.s32.totalorder %s39, 0
      %p227 = por %p225, %p226
      %p228 = scmp.ne.s32.totalorder %s220, %s222
      %p229 = scmp.eq.s32.totalorder %s44, 1
      %p230 = por %p228, %p229
      %p231 = scmp.ne.s32.totalorder %s222, %s223
      %p232 = scmp.eq.s32.totalorder %s44, 0
      %p233 = por %p231, %p232
      %p234 = scmp.ne.s32.totalorder %s222, %s223
      %p235 = scmp.eq.s32.totalorder %s45, 1
      %p236 = por %p234, %p235
      %p238 = scmp.ne.s32.totalorder %s223, %s237
      %p239 = scmp.eq.s32.totalorder %s45, 0
      %p240 = por %p238, %p239
      %s242 = sadd.s32 %s241, 1
      %p245 = scmp.eq.s32.totalorder %s39, 1
      %p246 = scmp.ne.s32.totalorder %s241, %s243
      %p247 = scmp.eq.s32.totalorder %s39, 0
      %p248 = por %p246, %p247
      %p249 = scmp.ne.s32.totalorder %s241, %s243
      %p250 = scmp.eq.s32.totalorder %s44, 1
      %p251 = por %p249, %p250
      %p252 = scmp.ne.s32.totalorder %s243, %s244
      %p253 = scmp.eq.s32.totalorder %s44, 0
      %p254 = por %p252, %p253
      %p255 = scmp.ne.s32.totalorder %s243, %s244
      %p256 = scmp.eq.s32.totalorder %s45, 1
      %p257 = por %p255, %p256
      %p259 = scmp.ne.s32.totalorder %s244, %s258
      %p260 = scmp.eq.s32.totalorder %s45, 0
      %p261 = por %p259, %p260
      %s263 = sadd.s32 %s262, 1
      %p266 = scmp.eq.s32.totalorder %s39, 1
      %p267 = scmp.ne.s32.totalorder %s262, %s264
      %p268 = scmp.eq.s32.totalorder %s39, 0
      %p269 = por %p267, %p268
      %p270 = scmp.ne.s32.totalorder %s262, %s264
      %p271 = scmp.eq.s32.totalorder %s44, 1
      %p272 = por %p270, %p271
      %p273 = scmp.ne.s32.totalorder %s264, %s265
      %p274 = scmp.eq.s32.totalorder %s44, 0
      %p275 = por %p273, %p274
      %p276 = scmp.ne.s32.totalorder %s264, %s265
      %p277 = scmp.eq.s32.totalorder %s45, 1
      %p278 = por %p276, %p277
      %p280 = scmp.ne.s32.totalorder %s265, %s279
      %p281 = scmp.eq.s32.totalorder %s45, 0
      %p282 = por %p280, %p281
      %s284 = sadd.s32 %s283, 1
      %p287 = scmp.eq.s32.totalorder %s39, 1
      %p288 = scmp.ne.s32.totalorder %s283, %s285
      %p289 = scmp.eq.s32.totalorder %s39, 0
      %p290 = por %p288, %p289
      %p291 = scmp.ne.s32.totalorder %s283, %s285
      %p292 = scmp.eq.s32.totalorder %s44, 1
      %p293 = por %p291, %p292
      %p294 = scmp.ne.s32.totalorder %s285, %s286
      %p295 = scmp.eq.s32.totalorder %s44, 0
      %p296 = por %p294, %p295
      %p297 = scmp.ne.s32.totalorder %s285, %s286
      %p298 = scmp.eq.s32.totalorder %s45, 1
      %p299 = por %p297, %p298
      %p301 = scmp.ne.s32.totalorder %s286, %s300
      %p302 = scmp.eq.s32.totalorder %s45, 0
      %p303 = por %p301, %p302
      %s305 = sadd.s32 %s304, 1
      %p308 = scmp.eq.s32.totalorder %s39, 1
      %p309 = scmp.ne.s32.totalorder %s304, %s306
      %p310 = scmp.eq.s32.totalorder %s39, 0
      %p311 = por %p309, %p310
      %p312 = scmp.ne.s32.totalorder %s304, %s306
      %p313 = scmp.eq.s32.totalorder %s44, 1
      %p314 = por %p312, %p313
      %p315 = scmp.ne.s32.totalorder %s306, %s307
      %p316 = scmp.eq.s32.totalorder %s44, 0
      %p317 = por %p315, %p316
      %p318 = scmp.ne.s32.totalorder %s306, %s307
      %p319 = scmp.eq.s32.totalorder %s45, 1
      %p320 = por %p318, %p319
      %p322 = scmp.ne.s32.totalorder %s307, %s321
      %p323 = scmp.eq.s32.totalorder %s45, 0
      %p324 = por %p322, %p323
      %s326 = sadd.s32 %s325, 1
      %p329 = scmp.eq.s32.totalorder %s39, 1
      %p330 = scmp.ne.s32.totalorder %s325, %s327
      %p331 = scmp.eq.s32.totalorder %s39, 0
      %p332 = por %p330, %p331
      %p333 = scmp.ne.s32.totalorder %s325, %s327
      %p334 = scmp.eq.s32.totalorder %s44, 1
      %p335 = por %p333, %p334
      %p336 = scmp.ne.s32.totalorder %s327, %s328
      %p337 = scmp.eq.s32.totalorder %s44, 0
      %p338 = por %p336, %p337
      %p339 = scmp.ne.s32.totalorder %s327, %s328
      %p340 = scmp.eq.s32.totalorder %s45, 1
      %p341 = por %p339, %p340
      %p343 = scmp.ne.s32.totalorder %s328, %s342
      %p344 = scmp.eq.s32.totalorder %s45, 0
      %p345 = por %p343, %p344
      %s347 = sadd.s32 %s346, 1
      %p350 = scmp.eq.s32.totalorder %s39, 1
      %p351 = scmp.ne.s32.totalorder %s346, %s348
      %p352 = scmp.eq.s32.totalorder %s39, 0
      %p353 = por %p351, %p352
      %p354 = scmp.ne.s32.totalorder %s346, %s348
      %p355 = scmp.eq.s32.totalorder %s44, 1
      %p356 = por %p354, %p355
      %p357 = scmp.ne.s32.totalorder %s348, %s349
      %p358 = scmp.eq.s32.totalorder %s44, 0
      %p359 = por %p357, %p358
      %p360 = scmp.ne.s32.totalorder %s348, %s349
      %p361 = scmp.eq.s32.totalorder %s45, 1
      %p362 = por %p360, %p361
      %p364 = scmp.ne.s32.totalorder %s349, %s363
      %p365 = scmp.eq.s32.totalorder %s45, 0
      %p366 = por %p364, %p365
      %s368 = sadd.s32 %s367, 1
      %p371 = scmp.eq.s32.totalorder %s39, 1
      %p372 = scmp.ne.s32.totalorder %s367, %s369
      %p373 = scmp.eq.s32.totalorder %s39, 0
      %p374 = por %p372, %p373
      %p375 = scmp.ne.s32.totalorder %s367, %s369
      %p376 = scmp.eq.s32.totalorder %s44, 1
      %p377 = por %p375, %p376
      %p378 = scmp.ne.s32.totalorder %s369, %s370
      %p379 = scmp.eq.s32.totalorder %s44, 0
      %p380 = por %p378, %p379
      %p381 = scmp.ne.s32.totalorder %s369, %s370
      %p382 = scmp.eq.s32.totalorder %s45, 1
      %p383 = por %p381, %p382
      %p385 = scmp.ne.s32.totalorder %s370, %s384
      %p386 = scmp.eq.s32.totalorder %s45, 0
      %p387 = por %p385, %p386
      %s389 = sadd.s32 %s388, 1
      %p392 = scmp.eq.s32.totalorder %s39, 1
      %p393 = scmp.ne.s32.totalorder %s388, %s390
      %p394 = scmp.eq.s32.totalorder %s39, 0
      %p395 = por %p393, %p394
      %p396 = scmp.ne.s32.totalorder %s388, %s390
      %p397 = scmp.eq.s32.totalorder %s44, 1
      %p398 = por %p396, %p397
      %p399 = scmp.ne.s32.totalorder %s390, %s391
      %p400 = scmp.eq.s32.totalorder %s44, 0
      %p401 = por %p399, %p400
      %p402 = scmp.ne.s32.totalorder %s390, %s391
      %p403 = scmp.eq.s32.totalorder %s45, 1
      %p404 = por %p402, %p403
      %p406 = scmp.ne.s32.totalorder %s391, %s405
      %p407 = scmp.eq.s32.totalorder %s45, 0
      %p408 = por %p406, %p407
      %s410 = sadd.s32 %s409, 1
      %p413 = scmp.eq.s32.totalorder %s39, 1
      %p414 = scmp.ne.s32.totalorder %s409, %s411
      %p415 = scmp.eq.s32.totalorder %s39, 0
      %p416 = por %p414, %p415
      %p417 = scmp.ne.s32.totalorder %s409, %s411
      %p418 = scmp.eq.s32.totalorder %s44, 1
      %p419 = por %p417, %p418
      %p420 = scmp.ne.s32.totalorder %s411, %s412
      %p421 = scmp.eq.s32.totalorder %s44, 0
      %p422 = por %p420, %p421
      %p423 = scmp.ne.s32.totalorder %s411, %s412
      %p424 = scmp.eq.s32.totalorder %s45, 1
      %p425 = por %p423, %p424
      %p427 = scmp.ne.s32.totalorder %s412, %s426
      %p428 = scmp.eq.s32.totalorder %s45, 0
      %p429 = por %p427, %p428
      %s431 = sadd.s32 %s430, 1
      %p434 = scmp.eq.s32.totalorder %s39, 1
      %p435 = scmp.ne.s32.totalorder %s430, %s432
      %p436 = scmp.eq.s32.totalorder %s39, 0
      %p437 = por %p435, %p436
      %p438 = scmp.ne.s32.totalorder %s430, %s432
      %p439 = scmp.eq.s32.totalorder %s44, 1
      %p440 = por %p438, %p439
      %p441 = scmp.ne.s32.totalorder %s432, %s433
      %p442 = scmp.eq.s32.totalorder %s44, 0
      %p443 = por %p441, %p442
      %p444 = scmp.ne.s32.totalorder %s432, %s433
      %p445 = scmp.eq.s32.totalorder %s45, 1
      %p446 = por %p444, %p445
      %p448 = scmp.ne.s32.totalorder %s433, %s447
      %p449 = scmp.eq.s32.totalorder %s45, 0
      %p450 = por %p448, %p449
      %s452 = sadd.s32 %s451, 1
      %p455 = scmp.eq.s32.totalorder %s39, 1
      %p456 = scmp.ne.s32.totalorder %s451, %s453
      %p457 = scmp.eq.s32.totalorder %s39, 0
      %p458 = por %p456, %p457
      %p459 = scmp.ne.s32.totalorder %s451, %s453
      %p460 = scmp.eq.s32.totalorder %s44, 1
      %p461 = por %p459, %p460
      %p462 = scmp.ne.s32.totalorder %s453, %s454
      %p463 = scmp.eq.s32.totalorder %s44, 0
      %p464 = por %p462, %p463
      %p465 = scmp.ne.s32.totalorder %s453, %s454
      %p466 = scmp.eq.s32.totalorder %s45, 1
      %p467 = por %p465, %p466
      %p469 = scmp.ne.s32.totalorder %s454, %s468
      %p470 = scmp.eq.s32.totalorder %s45, 0
      %p471 = por %p469, %p470
      %s473 = sadd.s32 %s472, 1
      %p476 = scmp.eq.s32.totalorder %s39, 1
      %p477 = scmp.ne.s32.totalorder %s472, %s474
      %p478 = scmp.eq.s32.totalorder %s39, 0
      %p479 = por %p477, %p478
      %p480 = scmp.ne.s32.totalorder %s472, %s474
      %p481 = scmp.eq.s32.totalorder %s44, 1
      %p482 = por %p480, %p481
      %p483 = scmp.ne.s32.totalorder %s474, %s475
      %p484 = scmp.eq.s32.totalorder %s44, 0
      %p485 = por %p483, %p484
      %p486 = scmp.ne.s32.totalorder %s474, %s475
      %p487 = scmp.eq.s32.totalorder %s45, 1
      %p488 = por %p486, %p487
      %p490 = scmp.ne.s32.totalorder %s475, %s489
      %p491 = scmp.eq.s32.totalorder %s45, 0
      %p492 = por %p490, %p491
      %s493 = ssub.s32 %s39, %s46
      %p494 = scmp.eq.s32.totalorder %s493, 0
      %s496 = sadd.s32 %s495, 1
      %s497 = scalar_select %p494, %s495, %s496
      %p500 = pneg %p494
      %p501 = scmp.eq.s32.totalorder %s39, 1
      %p502 = por %p500, %p501
      %p503 = scmp.ne.s32.totalorder %s495, %s498
      %p504 = scmp.eq.s32.totalorder %s39, 0
      %p505 = por %p503, %p504
      %p506 = scmp.ne.s32.totalorder %s495, %s498
      %p507 = scmp.eq.s32.totalorder %s44, 1
      %p508 = por %p506, %p507
      %p509 = scmp.ne.s32.totalorder %s498, %s499
      %p510 = scmp.eq.s32.totalorder %s44, 0
      %p511 = por %p509, %p510
      %p512 = scmp.ne.s32.totalorder %s498, %s499
      %p513 = scmp.eq.s32.totalorder %s45, 1
      %p514 = por %p512, %p513
      %p516 = scmp.ne.s32.totalorder %s499, %s515
      %p517 = scmp.eq.s32.totalorder %s45, 0
      %p518 = por %p516, %p517
      %p519 = scmp.le.s32.totalorder 1, %s39
      %p520 = scmp.lt.s32.totalorder %s39, 3
      %p521 = pnand %p519, %p520
      %p522 = pneg %p521
      // Predicated region
      $region9: #{tpu_custom_call.1} parent=5 // pred_check
        _
      $region10: #{tpu_custom_call.1} parent=5 // pred_check_branch
        %524 = sbr.rel (%p521) target = $region12
      $region11: #{tpu_custom_call.1} parent=5 // pred_region
        %s525 = ssub.s32 %s39, 1
        // Predicated region
        $region13: #{tpu_custom_call.1} parent=11 // pred_check
          %p526 = pneg %p86
        $region14: #{tpu_custom_call.1} parent=11 // pred_check_branch
          %528 = sbr.rel (%p526) target = $region16
        $region15: #{tpu_custom_call.1} parent=11 // pred_region
          %530 = vsyncadd [#allocation3], 0
          %s532 = sshll.u32 %s1, 4
          %s533 = int_to_ptr.hbm [resolvable:$true] %s532
          %s534 = sshll.u32 [#allocation2], 4
          %s535 = int_to_ptr.vmem [resolvable:$true] %s534
          %537 = dma.hbm_to_vmem [thread:$0]  %s533, 64, %s535, [#allocation3]
        $region16: #{tpu_custom_call.1} parent=11 // pred_fallthru
          _
        // Predicated region
        $region17: #{tpu_custom_call.1} parent=11 // pred_check
          %p538 = pneg %p107
        $region18: #{tpu_custom_call.1} parent=11 // pred_check_branch
          %540 = sbr.rel (%p538) target = $region20
        $region19: #{tpu_custom_call.1} parent=11 // pred_region
          _
        $region20: #{tpu_custom_call.1} parent=11 // pred_fallthru
          _
        // Predicated region
        $region21: #{tpu_custom_call.1} parent=11 // pred_check
          %p541 = pneg %p128
        $region22: #{tpu_custom_call.1} parent=11 // pred_check_branch
          %543 = sbr.rel (%p541) target = $region24
        $region23: #{tpu_custom_call.1} parent=11 // pred_region
          _
        $region24: #{tpu_custom_call.1} parent=11 // pred_fallthru
          _
        // Predicated region
        $region25: #{tpu_custom_call.1} parent=11 // pred_check
          %p544 = pneg %p149
        $region26: #{tpu_custom_call.1} parent=11 // pred_check_branch
          %546 = sbr.rel (%p544) target = $region28
        $region27: #{tpu_custom_call.1} parent=11 // pred_region
          %548 = vsyncadd [#allocation6], 0
          %s550 = sshll.u32 %s4, 4
          %s551 = int_to_ptr.hbm [resolvable:$true] %s550
          %s552 = sshll.u32 [#allocation5], 4
          %s553 = int_to_ptr.vmem [resolvable:$true] %s552
          %555 = dma.hbm_to_vmem [thread:$0]  %s551, 64, %s553, [#allocation6]
        $region28: #{tpu_custom_call.1} parent=11 // pred_fallthru
          _
        // Predicated region
        $region29: #{tpu_custom_call.1} parent=11 // pred_check
          %p556 = pneg %p170
        $region30: #{tpu_custom_call.1} parent=11 // pred_check_branch
          %558 = sbr.rel (%p556) target = $region32
        $region31: #{tpu_custom_call.1} parent=11 // pred_region
          %560 = vsyncadd [#allocation6], 0
          %s561 = sshll.u32 %s5, 4
          %s562 = int_to_ptr.hbm [resolvable:$true] %s561
          %s563 = sshll.u32 [#allocation7], 4
          %s564 = int_to_ptr.vmem [resolvable:$true] %s563
          %569 = dma.hbm_to_vmem [thread:$0]  %s562, 256, %s564, [#allocation6], 64, 64, 4
        $region32: #{tpu_custom_call.1} parent=11 // pred_fallthru
          _
        // Predicated region
        $region33: #{tpu_custom_call.1} parent=11 // pred_check
          %p570 = pneg %p191
        $region34: #{tpu_custom_call.1} parent=11 // pred_check_branch
          %572 = sbr.rel (%p570) target = $region36
        $region35: #{tpu_custom_call.1} parent=11 // pred_region
          %574 = vsyncadd [#allocation9], 0
          %s575 = sshll.u32 %s6, 4
          %s576 = int_to_ptr.hbm [resolvable:$true] %s575
          %s577 = sshll.u32 [#allocation8], 4
          %s578 = int_to_ptr.vmem [resolvable:$true] %s577
          %583 = dma.hbm_to_vmem [thread:$0]  %s576, 256, %s578, [#allocation9], 64, 64, 4
        $region36: #{tpu_custom_call.1} parent=11 // pred_fallthru
          _
        // Predicated region
        $region37: #{tpu_custom_call.1} parent=11 // pred_check
          %p584 = pneg %p212
        $region38: #{tpu_custom_call.1} parent=11 // pred_check_branch
          %586 = sbr.rel (%p584) target = $region40
        $region39: #{tpu_custom_call.1} parent=11 // pred_region
          %588 = vsyncadd [#allocation9], 0
          %s590 = sshll.u32 %s7, 4
          %s591 = int_to_ptr.hbm [resolvable:$true] %s590
          %s592 = sshll.u32 [#allocation10], 4
          %s593 = int_to_ptr.vmem [resolvable:$true] %s592
          %595 = dma.hbm_to_vmem [thread:$0]  %s591, 64, %s593, [#allocation9]
        $region40: #{tpu_custom_call.1} parent=11 // pred_fallthru
          _
        // Predicated region
        $region41: #{tpu_custom_call.1} parent=11 // pred_check
          %p596 = pneg %p233
        $region42: #{tpu_custom_call.1} parent=11 // pred_check_branch
          %598 = sbr.rel (%p596) target = $region44
        $region43: #{tpu_custom_call.1} parent=11 // pred_region
          %600 = vsyncadd [#allocation12], 0
          %s601 = sshll.u32 %s8, 4
          %s602 = int_to_ptr.hbm [resolvable:$true] %s601
          %s603 = sshll.u32 [#allocation11], 4
          %s604 = int_to_ptr.vmem [resolvable:$true] %s603
          %609 = dma.hbm_to_vmem [thread:$0]  %s602, 256, %s604, [#allocation12], 64, 64, 4
        $region44: #{tpu_custom_call.1} parent=11 // pred_fallthru
          _
        // Predicated region
        $region45: #{tpu_custom_call.1} parent=11 // pred_check
          %p610 = pneg %p254
        $region46: #{tpu_custom_call.1} parent=11 // pred_check_branch
          %612 = sbr.rel (%p610) target = $region48
        $region47: #{tpu_custom_call.1} parent=11 // pred_region
          %614 = vsyncadd [#allocation12], 0
          %s615 = sshll.u32 %s9, 4
          %s616 = int_to_ptr.hbm [resolvable:$true] %s615
          %s617 = sshll.u32 [#allocation13], 4
          %s618 = int_to_ptr.vmem [resolvable:$true] %s617
          %623 = dma.hbm_to_vmem [thread:$0]  %s616, 256, %s618, [#allocation12], 64, 64, 4
        $region48: #{tpu_custom_call.1} parent=11 // pred_fallthru
          _
        // Predicated region
        $region49: #{tpu_custom_call.1} parent=11 // pred_check
          %p624 = pneg %p275
        $region50: #{tpu_custom_call.1} parent=11 // pred_check_branch
          %626 = sbr.rel (%p624) target = $region52
        $region51: #{tpu_custom_call.1} parent=11 // pred_region
          %628 = vsyncadd [#allocation15], 0
          %s630 = sshll.u32 %s10, 4
          %s631 = int_to_ptr.hbm [resolvable:$true] %s630
          %s632 = sshll.u32 [#allocation14], 4
          %s633 = int_to_ptr.vmem [resolvable:$true] %s632
          %635 = dma.hbm_to_vmem [thread:$0]  %s631, 64, %s633, [#allocation15]
        $region52: #{tpu_custom_call.1} parent=11 // pred_fallthru
          _
        // Predicated region
        $region53: #{tpu_custom_call.1} parent=11 // pred_check
          %p636 = pneg %p296
        $region54: #{tpu_custom_call.1} parent=11 // pred_check_branch
          %638 = sbr.rel (%p636) target = $region56
        $region55: #{tpu_custom_call.1} parent=11 // pred_region
          %640 = vsyncadd [#allocation15], 0
          %s641 = sshll.u32 %s11, 4
          %s642 = int_to_ptr.hbm [resolvable:$true] %s641
          %s643 = sshll.u32 [#allocation16], 4
          %s644 = int_to_ptr.vmem [resolvable:$true] %s643
          %649 = dma.hbm_to_vmem [thread:$0]  %s642, 256, %s644, [#allocation15], 64, 64, 4
        $region56: #{tpu_custom_call.1} parent=11 // pred_fallthru
          _
        // Predicated region
        $region57: #{tpu_custom_call.1} parent=11 // pred_check
          %p650 = pneg %p317
        $region58: #{tpu_custom_call.1} parent=11 // pred_check_branch
          %652 = sbr.rel (%p650) target = $region60
        $region59: #{tpu_custom_call.1} parent=11 // pred_region
          %654 = vsyncadd [#allocation18], 0
          %s655 = sshll.u32 %s12, 4
          %s656 = int_to_ptr.hbm [resolvable:$true] %s655
          %s657 = sshll.u32 [#allocation17], 4
          %s658 = int_to_ptr.vmem [resolvable:$true] %s657
          %663 = dma.hbm_to_vmem [thread:$0]  %s656, 256, %s658, [#allocation18], 64, 64, 4
        $region60: #{tpu_custom_call.1} parent=11 // pred_fallthru
          _
        // Predicated region
        $region61: #{tpu_custom_call.1} parent=11 // pred_check
          %p664 = pneg %p338
        $region62: #{tpu_custom_call.1} parent=11 // pred_check_branch
          %666 = sbr.rel (%p664) target = $region64
        $region63: #{tpu_custom_call.1} parent=11 // pred_region
          %668 = vsyncadd [#allocation18], 0
          %s670 = sshll.u32 %s13, 4
          %s671 = int_to_ptr.hbm [resolvable:$true] %s670
          %s672 = sshll.u32 [#allocation19], 4
          %s673 = int_to_ptr.vmem [resolvable:$true] %s672
          %675 = dma.hbm_to_vmem [thread:$0]  %s671, 64, %s673, [#allocation18]
        $region64: #{tpu_custom_call.1} parent=11 // pred_fallthru
          _
        // Predicated region
        $region65: #{tpu_custom_call.1} parent=11 // pred_check
          %p676 = pneg %p359
        $region66: #{tpu_custom_call.1} parent=11 // pred_check_branch
          %678 = sbr.rel (%p676) target = $region68
        $region67: #{tpu_custom_call.1} parent=11 // pred_region
          %680 = vsyncadd [#allocation21], 0
          %s681 = sshll.u32 %s14, 4
          %s682 = int_to_ptr.hbm [resolvable:$true] %s681
          %s683 = sshll.u32 [#allocation20], 4
          %s684 = int_to_ptr.vmem [resolvable:$true] %s683
          %689 = dma.hbm_to_vmem [thread:$0]  %s682, 256, %s684, [#allocation21], 64, 64, 4
        $region68: #{tpu_custom_call.1} parent=11 // pred_fallthru
          _
        // Predicated region
        $region69: #{tpu_custom_call.1} parent=11 // pred_check
          %p690 = pneg %p380
        $region70: #{tpu_custom_call.1} parent=11 // pred_check_branch
          %692 = sbr.rel (%p690) target = $region72
        $region71: #{tpu_custom_call.1} parent=11 // pred_region
          %694 = vsyncadd [#allocation21], 0
          %s695 = sshll.u32 %s15, 4
          %s696 = int_to_ptr.hbm [resolvable:$true] %s695
          %s697 = sshll.u32 [#allocation22], 4
          %s698 = int_to_ptr.vmem [resolvable:$true] %s697
          %703 = dma.hbm_to_vmem [thread:$0]  %s696, 256, %s698, [#allocation21], 64, 64, 4
        $region72: #{tpu_custom_call.1} parent=11 // pred_fallthru
          _
        // Predicated region
        $region73: #{tpu_custom_call.1} parent=11 // pred_check
          %p704 = pneg %p401
        $region74: #{tpu_custom_call.1} parent=11 // pred_check_branch
          %706 = sbr.rel (%p704) target = $region76
        $region75: #{tpu_custom_call.1} parent=11 // pred_region
          %708 = vsyncadd [#allocation24], 0
          %s710 = sshll.u32 %s16, 4
          %s711 = int_to_ptr.hbm [resolvable:$true] %s710
          %s712 = sshll.u32 [#allocation23], 4
          %s713 = int_to_ptr.vmem [resolvable:$true] %s712
          %715 = dma.hbm_to_vmem [thread:$0]  %s711, 16, %s713, [#allocation24]
        $region76: #{tpu_custom_call.1} parent=11 // pred_fallthru
          _
        // Predicated region
        $region77: #{tpu_custom_call.1} parent=11 // pred_check
          %p716 = pneg %p422
        $region78: #{tpu_custom_call.1} parent=11 // pred_check_branch
          %718 = sbr.rel (%p716) target = $region80
        $region79: #{tpu_custom_call.1} parent=11 // pred_region
          %720 = vsyncadd [#allocation24], 0
          %s722 = sshll.u32 %s17, 4
          %s723 = int_to_ptr.hbm [resolvable:$true] %s722
          %s724 = sshll.u32 [#allocation25], 4
          %s725 = int_to_ptr.vmem [resolvable:$true] %s724
          %727 = dma.hbm_to_vmem [thread:$0]  %s723, 64, %s725, [#allocation24]
        $region80: #{tpu_custom_call.1} parent=11 // pred_fallthru
          _
        // Predicated region
        $region81: #{tpu_custom_call.1} parent=11 // pred_check
          %p728 = pneg %p443
        $region82: #{tpu_custom_call.1} parent=11 // pred_check_branch
          %730 = sbr.rel (%p728) target = $region84
        $region83: #{tpu_custom_call.1} parent=11 // pred_region
          %732 = vsyncadd [#allocation27], 0
          %s733 = sshll.u32 %s18, 4
          %s734 = int_to_ptr.hbm [resolvable:$true] %s733
          %s735 = sshll.u32 [#allocation26], 4
          %s736 = int_to_ptr.vmem [resolvable:$true] %s735
          %741 = dma.hbm_to_vmem [thread:$0]  %s734, 256, %s736, [#allocation27], 64, 64, 4
        $region84: #{tpu_custom_call.1} parent=11 // pred_fallthru
          _
        // Predicated region
        $region85: #{tpu_custom_call.1} parent=11 // pred_check
          %p742 = pneg %p464
        $region86: #{tpu_custom_call.1} parent=11 // pred_check_branch
          %744 = sbr.rel (%p742) target = $region88
        $region87: #{tpu_custom_call.1} parent=11 // pred_region
          _
        $region88: #{tpu_custom_call.1} parent=11 // pred_fallthru
          _
        // Predicated region
        $region89: #{tpu_custom_call.1} parent=11 // pred_check
          %p745 = pneg %p485
        $region90: #{tpu_custom_call.1} parent=11 // pred_check_branch
          %747 = sbr.rel (%p745) target = $region92
        $region91: #{tpu_custom_call.1} parent=11 // pred_region
          _
        $region92: #{tpu_custom_call.1} parent=11 // pred_fallthru
          _
      $region12: #{tpu_custom_call.1} parent=5 // pred_fallthru
        _
      %p748 = scmp.lt.s32.totalorder %s39, 2
      // Predicated region
      $region93: #{tpu_custom_call.1} parent=5 // pred_check
        %p749 = pneg %p748
      $region94: #{tpu_custom_call.1} parent=5 // pred_check_branch
        %751 = sbr.rel (%p749) target = $region96
      $region95: #{tpu_custom_call.1} parent=5 // pred_region
        // Predicated region
        $region97: #{tpu_custom_call.1} parent=95 // pred_check
          %p752 = pneg %p59
        $region98: #{tpu_custom_call.1} parent=95 // pred_check_branch
          %754 = sbr.rel (%p752) target = $region100
        $region99: #{tpu_custom_call.1} parent=95 // pred_region
          %p755 = scmp.lt.s32.totalorder %s39, 1
          %s756 = scalar_select %p755, %s39, 1
          %s757 = smul.addr %s756, 8
          %s758 = scalar_lea.vmem %s0, %s757
        $region100: #{tpu_custom_call.1} parent=95 // pred_fallthru
          _
      $region96: #{tpu_custom_call.1} parent=5 // pred_fallthru
        _
      %p759 = scmp.le.s32.totalorder 1, %s39
      %p760 = scmp.lt.s32.totalorder %s39, 3
      %p761 = pnand %p759, %p760
      %p762 = pneg %p761
      // Predicated region
      $region101: #{tpu_custom_call.1} parent=5 // pred_check
        _
      $region102: #{tpu_custom_call.1} parent=5 // pred_check_branch
        %764 = sbr.rel (%p761) target = $region104
      $region103: #{tpu_custom_call.1} parent=5 // pred_region
        %s765 = ssub.s32 %s39, 1
        // Predicated region
        $region105: #{tpu_custom_call.1} parent=103 // pred_check
          %p766 = pneg %p86
        $region106: #{tpu_custom_call.1} parent=103 // pred_check_branch
          %768 = sbr.rel (%p766) target = $region108
        $region107: #{tpu_custom_call.1} parent=103 // pred_region
          %770 = dma.done [#allocation3], 64
        $region108: #{tpu_custom_call.1} parent=103 // pred_fallthru
          _
        // Predicated region
        $region109: #{tpu_custom_call.1} parent=103 // pred_check
          %p771 = pneg %p149
        $region110: #{tpu_custom_call.1} parent=103 // pred_check_branch
          %773 = sbr.rel (%p771) target = $region112
        $region111: #{tpu_custom_call.1} parent=103 // pred_region
          %775 = dma.done [#allocation6], 64
        $region112: #{tpu_custom_call.1} parent=103 // pred_fallthru
          _
        // Predicated region
        $region113: #{tpu_custom_call.1} parent=103 // pred_check
          %p776 = pneg %p170
        $region114: #{tpu_custom_call.1} parent=103 // pred_check_branch
          %778 = sbr.rel (%p776) target = $region116
        $region115: #{tpu_custom_call.1} parent=103 // pred_region
          %780 = dma.done [#allocation6], 256
        $region116: #{tpu_custom_call.1} parent=103 // pred_fallthru
          _
        // Predicated region
        $region117: #{tpu_custom_call.1} parent=103 // pred_check
          %p781 = pneg %p191
        $region118: #{tpu_custom_call.1} parent=103 // pred_check_branch
          %783 = sbr.rel (%p781) target = $region120
        $region119: #{tpu_custom_call.1} parent=103 // pred_region
          %785 = dma.done [#allocation9], 256
        $region120: #{tpu_custom_call.1} parent=103 // pred_fallthru
          _
        // Predicated region
        $region121: #{tpu_custom_call.1} parent=103 // pred_check
          %p786 = pneg %p212
        $region122: #{tpu_custom_call.1} parent=103 // pred_check_branch
          %788 = sbr.rel (%p786) target = $region124
        $region123: #{tpu_custom_call.1} parent=103 // pred_region
          %790 = dma.done [#allocation9], 64
        $region124: #{tpu_custom_call.1} parent=103 // pred_fallthru
          _
        // Predicated region
        $region125: #{tpu_custom_call.1} parent=103 // pred_check
          %p791 = pneg %p233
        $region126: #{tpu_custom_call.1} parent=103 // pred_check_branch
          %793 = sbr.rel (%p791) target = $region128
        $region127: #{tpu_custom_call.1} parent=103 // pred_region
          %795 = dma.done [#allocation12], 256
        $region128: #{tpu_custom_call.1} parent=103 // pred_fallthru
          _
        // Predicated region
        $region129: #{tpu_custom_call.1} parent=103 // pred_check
          %p796 = pneg %p254
        $region130: #{tpu_custom_call.1} parent=103 // pred_check_branch
          %798 = sbr.rel (%p796) target = $region132
        $region131: #{tpu_custom_call.1} parent=103 // pred_region
          %800 = dma.done [#allocation12], 256
        $region132: #{tpu_custom_call.1} parent=103 // pred_fallthru
          _
        // Predicated region
        $region133: #{tpu_custom_call.1} parent=103 // pred_check
          %p801 = pneg %p275
        $region134: #{tpu_custom_call.1} parent=103 // pred_check_branch
          %803 = sbr.rel (%p801) target = $region136
        $region135: #{tpu_custom_call.1} parent=103 // pred_region
          %805 = dma.done [#allocation15], 64
        $region136: #{tpu_custom_call.1} parent=103 // pred_fallthru
          _
        // Predicated region
        $region137: #{tpu_custom_call.1} parent=103 // pred_check
          %p806 = pneg %p296
        $region138: #{tpu_custom_call.1} parent=103 // pred_check_branch
          %808 = sbr.rel (%p806) target = $region140
        $region139: #{tpu_custom_call.1} parent=103 // pred_region
          %810 = dma.done [#allocation15], 256
        $region140: #{tpu_custom_call.1} parent=103 // pred_fallthru
          _
        // Predicated region
        $region141: #{tpu_custom_call.1} parent=103 // pred_check
          %p811 = pneg %p317
        $region142: #{tpu_custom_call.1} parent=103 // pred_check_branch
          %813 = sbr.rel (%p811) target = $region144
        $region143: #{tpu_custom_call.1} parent=103 // pred_region
          %815 = dma.done [#allocation18], 256
        $region144: #{tpu_custom_call.1} parent=103 // pred_fallthru
          _
        // Predicated region
        $region145: #{tpu_custom_call.1} parent=103 // pred_check
          %p816 = pneg %p338
        $region146: #{tpu_custom_call.1} parent=103 // pred_check_branch
          %818 = sbr.rel (%p816) target = $region148
        $region147: #{tpu_custom_call.1} parent=103 // pred_region
          %820 = dma.done [#allocation18], 64
        $region148: #{tpu_custom_call.1} parent=103 // pred_fallthru
          _
        // Predicated region
        $region149: #{tpu_custom_call.1} parent=103 // pred_check
          %p821 = pneg %p359
        $region150: #{tpu_custom_call.1} parent=103 // pred_check_branch
          %823 = sbr.rel (%p821) target = $region152
        $region151: #{tpu_custom_call.1} parent=103 // pred_region
          %825 = dma.done [#allocation21], 256
        $region152: #{tpu_custom_call.1} parent=103 // pred_fallthru
          _
        // Predicated region
        $region153: #{tpu_custom_call.1} parent=103 // pred_check
          %p826 = pneg %p380
        $region154: #{tpu_custom_call.1} parent=103 // pred_check_branch
          %828 = sbr.rel (%p826) target = $region156
        $region155: #{tpu_custom_call.1} parent=103 // pred_region
          %830 = dma.done [#allocation21], 256
        $region156: #{tpu_custom_call.1} parent=103 // pred_fallthru
          _
        // Predicated region
        $region157: #{tpu_custom_call.1} parent=103 // pred_check
          %p831 = pneg %p401
        $region158: #{tpu_custom_call.1} parent=103 // pred_check_branch
          %833 = sbr.rel (%p831) target = $region160
        $region159: #{tpu_custom_call.1} parent=103 // pred_region
          %835 = dma.done [#allocation24], 16
        $region160: #{tpu_custom_call.1} parent=103 // pred_fallthru
          _
        // Predicated region
        $region161: #{tpu_custom_call.1} parent=103 // pred_check
          %p836 = pneg %p422
        $region162: #{tpu_custom_call.1} parent=103 // pred_check_branch
          %838 = sbr.rel (%p836) target = $region164
        $region163: #{tpu_custom_call.1} parent=103 // pred_region
          %840 = dma.done [#allocation24], 64
        $region164: #{tpu_custom_call.1} parent=103 // pred_fallthru
          _
        // Predicated region
        $region165: #{tpu_custom_call.1} parent=103 // pred_check
          %p841 = pneg %p443
        $region166: #{tpu_custom_call.1} parent=103 // pred_check_branch
          %843 = sbr.rel (%p841) target = $region168
        $region167: #{tpu_custom_call.1} parent=103 // pred_region
          %845 = dma.done [#allocation27], 256
        $region168: #{tpu_custom_call.1} parent=103 // pred_fallthru
          _
        %p846 = scmp.lt.s32.totalorder %s44, 1
        %s847 = scalar_select %p846, %s44, 1
        %s848 = smul.addr %s847, 8
        %s849 = scalar_lea.vmem %s0, %s848
        %p850 = pneg %p65
        %p851 = pneg %p62
        %p852 = pneg %p86
        %p853 = pneg %p83
        %p854 = pneg %p107
        %p855 = pneg %p104
        %p856 = pneg %p128
        %p857 = pneg %p125
        %p858 = pneg %p149
        %p859 = pneg %p146
        %p860 = pneg %p170
        %p861 = pneg %p167
        %p862 = pneg %p191
        %p863 = pneg %p188
        %p864 = pneg %p212
        %p865 = pneg %p209
        %p866 = pneg %p233
        %p867 = pneg %p230
        %p868 = pneg %p254
        %p869 = pneg %p251
        %p870 = pneg %p275
        %p871 = pneg %p272
        %p872 = pneg %p296
        %p873 = pneg %p293
        %p874 = pneg %p317
        %p875 = pneg %p314
        %p876 = pneg %p338
        %p877 = pneg %p335
        %p878 = pneg %p359
        %p879 = pneg %p356
        %p880 = pneg %p380
        %p881 = pneg %p377
        %p882 = pneg %p401
        %p883 = pneg %p398
        %p884 = pneg %p422
        %p885 = pneg %p419
        %p886 = pneg %p443
        %p887 = pneg %p440
        %p888 = pneg %p464
        %p889 = pneg %p461
        %p890 = pneg %p485
        %p891 = pneg %p482
        %p892 = pneg %p511
        %p893 = pneg %p508
        %s894 = sand.u32 %s498, 1
        %s895 = scalar_lea.sflag [#allocation4], %s894
        %s896 = sand.u32 %s498, 1
        %s897 = smul.addr %s896, 8
        %s898 = scalar_lea.vmem [#allocation28], %s897
        %p899 = scmp.lt.s32.totalorder %s44, 1
        %s900 = scalar_select %p899, %s44, 1
        %s901 = smul.addr %s900, 8
        %s902 = scalar_lea.vmem %s0, %s901
        %v904 = vld [vmem:[%s902] sm:$0xff]
        %v905 = vld [vmem:[#allocation19] sm:$0x7]
        %v906 = vld [vmem:[#allocation20] sm:$0xf]
        %v907 = vld [vmem:[#allocation20 + $0x4] sm:$0xf]
        %v908 = vld [vmem:[#allocation20 + $0x8] sm:$0xf]
        %v909 = vld [vmem:[#allocation20 + $0xc] sm:$0xf]
        %v910 = vld [vmem:[#allocation22] sm:$0xf]
        %v911 = vld [vmem:[#allocation22 + $0x4] sm:$0xf]
        %v912 = vld [vmem:[#allocation22 + $0x8] sm:$0xf]
        %v913 = vld [vmem:[#allocation22 + $0xc] sm:$0xf]
        %vm914 = vcmask 261120
        %v915 = vsel %vm914, %v904, 0.0
        %916 = vadd.xlane.f32.xlu0 %v915
        %v917 = vpop.xlane.xlu0 %916
        %v918 = vrcp.pop 32.0
        %v919 = vmul.f32 32.0, %v918
        %v920 = vsub.f32 1.0, %v919
        %v921 = vmul.f32 %v918, %v920
        %v922 = vadd.f32 %v918, %v921
        %vm923 = vweird.f32 %v918
        %v924 = vsel %vm923, %v918, %v922
        %v925 = vmul.f32 %v917, %v924
        %v926 = vsub.f32 %v904, %v925
        %v927 = vmul.f32 %v926, %v926
        %v928 = vsel %vm914, %v927, 0.0
        %929 = vadd.xlane.f32.xlu0 %v928
        %v930 = vpop.xlane.xlu0 %929
        %v931 = vmul.f32 %v930, %v924
        %v932 = vadd.f32 %v931, 1e-05
        %v933 = vrsqrt.pop %v932
        %v934 = vmul.f32 %v933, %v932
        %v935 = vmul.f32 %v934, %v933
        %v936 = vmul.f32 0.5, %v935
        %v937 = vsub.f32 1.5, %v936
        %v938 = vmul.f32 %v933, %v937
        %vm939 = vweird.f32 %v932
        %vm940 = vweird.f32 %v933
        %vm941 = vmor %vm939, %vm940
        %v942 = vsel %vm941, %v933, %v938
        %v943 = vmul.f32 %v926, %v942
        %v944 = vperm.slane %v905, 0
        %v945 = vmul.f32 %v943, %v944
        %v946 = vperm.slane %v905, 1
        %v947 = vadd.f32 %v945, %v946
        %v948 = vpack.c.bf16 %v947, %v947
        %v953 = vunpack.c.l.b16 %v906
        %v954 = vunpack.c.l.b16 %v907
        %v955 = vunpack.c.l.b16 %v908
        %v956 = vunpack.c.l.b16 %v909
        %v957 = vpack.c.b16 %v954, %v953
        %v958 = vpack.c.b16 %v956, %v955
        %v962 = vsel %vm914, %v948, 0
        %964 = vmatpush.bf16.msra.mxu0 0
        %965 = vmatpush.bf16.msra.mxu0 0
        %966 = vmatpush.bf16.msra.mxu0 0
        %967 = vmatpush.bf16.msra.mxu0 0
        %968 = vmatpush.bf16.msra.mxu0 0
        %969 = vmatpush.bf16.msra.mxu0 0
        %970 = vmatpush.bf16.msra.mxu0 %v958
        %971 = vmatpush.bf16.msra.mxu0 %v957
        %972 = vmatmul.bf16.gmra.mxu0 %v962
        %v973 = vpop.f32.mrf.mxu0
        %v974 = vadd.f32 0.0, %v973
        %v975 = vpop.f32.mrf.mxu0
        %976 = vdwg.mxu0
        %v977 = vpack.c.bf16 %v974, %v974
        %v979 = vunpack.c.l.b16 %v977
        %v980 = vpack.c.b16 %v979, %v979
        %981 = vrot.lane.b32.xlu0 %v980, 96
        %v982 = vpop.permute.xlu0 %981
        %vm983 = vcmask 130048
        %v985 = vsel %vm983, %v977, 0
        %v988 = vsel %vm983, %v982, 0
        %990 = vmatpush.bf16.xpose.msra.mxu0 0
        %991 = vmatpush.bf16.xpose.msra.mxu0 0
        %992 = vmatpush.bf16.xpose.msra.mxu0 0
        %993 = vmatpush.bf16.xpose.msra.mxu0 0
        %994 = vmatpush.bf16.xpose.msra.mxu0 0
        %995 = vmatpush.bf16.xpose.msra.mxu0 0
        %996 = vmatpush.bf16.xpose.msra.mxu0 0
        %997 = vmatpush.bf16.xpose.msra.mxu0 %v988
        %998 = vmatmul.bf16.gmra.mxu0 %v985
        %v999 = vpop.f32.mrf.mxu0
        %v1000 = vadd.f32 0.0, %v999
        %v1001 = vpop.f32.mrf.mxu0
        %1002 = vdwg.mxu0
        %vm1003 = vcmask 64512
        %v1004 = vsel %vm1003, %v1000, -inf
        %1005 = vmax.xlane.f32.xlu0 %v1004
        %v1006 = vpop.xlane.xlu0 %1005
        %v1007 = vsub.f32 %v1000, %v1006
        %v1008 = vmul.f32 %v1007, 1.442695
        %v1009 = vpow.pop %v1008
        %v1010 = vsel %vm1003, %v1009, 0.0
        %1011 = vadd.xlane.f32.xlu0 %v1010
        %v1012 = vpop.xlane.xlu0 %1011
        %v1013 = vrcp.pop %v1012
        %v1014 = vmul.f32 %v1009, %v1013
        %v1015 = vpack.c.bf16 %v1014, %v1014
        %1016 = vrot.lane.b32.xlu0 %v980, 64
        %v1017 = vpop.permute.xlu0 %1016
        %v1019 = vsel %vm1003, %v1015, 0
        %vm1021 = vcmask 1043456
        %v1023 = vsel %vm1021, %v1017, 0
        %1025 = vmatpush.bf16.msra.mxu0 0
        %1026 = vmatpush.bf16.msra.mxu0 0
        %1027 = vmatpush.bf16.msra.mxu0 0
        %1028 = vmatpush.bf16.msra.mxu0 0
        %1029 = vmatpush.bf16.msra.mxu0 0
        %1030 = vmatpush.bf16.msra.mxu0 0
        %1031 = vmatpush.bf16.msra.mxu0 0
        %1032 = vmatpush.bf16.msra.mxu0 %v1023
        %1033 = vmatmul.bf16.gmra.mxu0 %v1019
        %v1034 = vpop.f32.mrf.mxu0
        %v1035 = vadd.f32 0.0, %v1034
        %v1036 = vpop.f32.mrf.mxu0
        %1037 = vdwg.mxu0
        %1038 = vrot.lane.b32.xlu0 %v980, 112
        %v1039 = vpop.permute.xlu0 %1038
        %1040 = vrot.lane.b32.xlu0 %v980, 80
        %v1041 = vpop.permute.xlu0 %1040
        %v1043 = vsel %vm983, %v1039, 0
        %v1046 = vsel %vm983, %v1041, 0
        %1048 = vmatpush.bf16.xpose.msra.mxu0 0
        %1049 = vmatpush.bf16.xpose.msra.mxu0 0
        %1050 = vmatpush.bf16.xpose.msra.mxu0 0
        %1051 = vmatpush.bf16.xpose.msra.mxu0 0
        %1052 = vmatpush.bf16.xpose.msra.mxu0 0
        %1053 = vmatpush.bf16.xpose.msra.mxu0 0
        %1054 = vmatpush.bf16.xpose.msra.mxu0 0
        %1055 = vmatpush.bf16.xpose.msra.mxu0 %v1046
        %1056 = vmatmul.bf16.gmra.mxu0 %v1043
        %v1057 = vpop.f32.mrf.mxu0
        %v1058 = vadd.f32 0.0, %v1057
        %v1059 = vpop.f32.mrf.mxu0
        %1060 = vdwg.mxu0
        %v1061 = vsel %vm1003, %v1058, -inf
        %1062 = vmax.xlane.f32.xlu0 %v1061
        %v1063 = vpop.xlane.xlu0 %1062
        %v1064 = vsub.f32 %v1058, %v1063
        %v1065 = vmul.f32 %v1064, 1.442695
        %v1066 = vpow.pop %v1065
        %v1067 = vsel %vm1003, %v1066, 0.0
        %1068 = vadd.xlane.f32.xlu0 %v1067
        %v1069 = vpop.xlane.xlu0 %1068
        %v1070 = vrcp.pop %v1069
        %v1071 = vmul.f32 %v1066, %v1070
        %v1072 = vpack.c.bf16 %v1071, %v1071
        %1073 = vrot.lane.b32.xlu0 %v980, 48
        %v1074 = vpop.permute.xlu0 %1073
        %v1076 = vsel %vm1003, %v1072, 0
        %v1079 = vsel %vm1021, %v1074, 0
        %1081 = vmatpush.bf16.msra.mxu0 0
        %1082 = vmatpush.bf16.msra.mxu0 0
        %1083 = vmatpush.bf16.msra.mxu0 0
        %1084 = vmatpush.bf16.msra.mxu0 0
        %1085 = vmatpush.bf16.msra.mxu0 0
        %1086 = vmatpush.bf16.msra.mxu0 0
        %1087 = vmatpush.bf16.msra.mxu0 0
        %1088 = vmatpush.bf16.msra.mxu0 %v1079
        %1089 = vmatmul.bf16.gmra.mxu0 %v1076
        %v1090 = vpop.f32.mrf.mxu0
        %v1091 = vadd.f32 0.0, %v1090
        %v1092 = vpop.f32.mrf.mxu0
        %1093 = vdwg.mxu0
        %1095 = vrot.lane.b32.xlu0 %v1091, 16
        %v1096 = vpop.permute.xlu0 %1095
        %v1098 = vsel %vm983, %v1035, %v1096
        %v1099 = vpack.c.bf16 %v1098, %v1098
        %v1104 = vunpack.c.l.b16 %v910
        %v1105 = vunpack.c.l.b16 %v911
        %v1106 = vunpack.c.l.b16 %v912
        %v1107 = vunpack.c.l.b16 %v913
        %v1108 = vpack.c.b16 %v1105, %v1104
        %v1109 = vpack.c.b16 %v1107, %v1106
        %v1113 = vsel %vm914, %v1099, 0
        %1115 = vmatpush.bf16.msra.mxu0 0
        %1116 = vmatpush.bf16.msra.mxu0 0
        %1117 = vmatpush.bf16.msra.mxu0 0
        %1118 = vmatpush.bf16.msra.mxu0 0
        %1119 = vmatpush.bf16.msra.mxu0 0
        %1120 = vmatpush.bf16.msra.mxu0 0
        %1121 = vmatpush.bf16.msra.mxu0 %v1109
        %1122 = vmatpush.bf16.msra.mxu0 %v1108
        %1123 = vmatmul.bf16.gmra.mxu0 %v1113
        %v1124 = vpop.f32.mrf.mxu0
        %v1125 = vadd.f32 0.0, %v1124
        %v1126 = vpop.f32.mrf.mxu0
        %1127 = vdwg.mxu0
        %v1128 = vperm.slane %v905, 2
        %v1129 = vadd.f32 %v1125, %v1128
        %v1130 = vadd.f32 %v904, %v1129
        %v1131 = vld [vmem:[#allocation25] sm:$0x7]
        %v1132 = vld [vmem:[#allocation23] sm:$0x1]
        %v1133 = vld [vmem:[#allocation26] sm:$0xf]
        %v1134 = vld [vmem:[#allocation26 + $0x4] sm:$0xf]
        %v1135 = vld [vmem:[#allocation26 + $0x8] sm:$0xf]
        %v1136 = vld [vmem:[#allocation26 + $0xc] sm:$0xf]
        %v1137 = vld [vmem:[%s19] sm:$0xf]
        %v1138 = vld [vmem:[%s19 + $0x4] sm:$0xf]
        %v1139 = vld [vmem:[%s19 + $0x8] sm:$0xf]
        %v1140 = vld [vmem:[%s19 + $0xc] sm:$0xf]
        %v1141 = vld [vmem:[%s19 + $0x10] sm:$0xf]
        %v1142 = vld [vmem:[%s19 + $0x14] sm:$0xf]
        %v1143 = vld [vmem:[%s19 + $0x18] sm:$0xf]
        %v1144 = vld [vmem:[%s19 + $0x1c] sm:$0xf]
        %v1145 = vsel %vm914, %v1130, 0.0
        %1146 = vadd.xlane.f32.xlu0 %v1145
        %v1147 = vpop.xlane.xlu0 %1146
        %v1148 = vmul.f32 %v1147, %v924
        %v1149 = vsub.f32 %v1130, %v1148
        %v1150 = vmul.f32 %v1149, %v1149
        %v1151 = vsel %vm914, %v1150, 0.0
        %1152 = vadd.xlane.f32.xlu0 %v1151
        %v1153 = vpop.xlane.xlu0 %1152
        %v1154 = vmul.f32 %v1153, %v924
        %v1155 = vadd.f32 %v1154, 1e-05
        %v1156 = vrsqrt.pop %v1155
        %v1157 = vmul.f32 %v1156, %v1155
        %v1158 = vmul.f32 %v1157, %v1156
        %v1159 = vmul.f32 0.5, %v1158
        %v1160 = vsub.f32 1.5, %v1159
        %v1161 = vmul.f32 %v1156, %v1160
        %vm1162 = vweird.f32 %v1155
        %vm1163 = vweird.f32 %v1156
        %vm1164 = vmor %vm1162, %vm1163
        %v1165 = vsel %vm1164, %v1156, %v1161
        %v1166 = vmul.f32 %v1149, %v1165
        %v1167 = vperm.slane %v1131, 0
        %v1168 = vmul.f32 %v1166, %v1167
        %v1169 = vperm.slane %v1131, 1
        %v1170 = vadd.f32 %v1168, %v1169
        %v1171 = vpack.c.bf16 %v1170, %v1170
        %v1173 = vperm.slane %v1132, 0
        %v1179 = vunpack.c.l.b16 %v1133
        %v1180 = vunpack.c.l.b16 %v1134
        %v1181 = vunpack.c.l.b16 %v1135
        %v1182 = vunpack.c.l.b16 %v1136
        %v1183 = vpack.c.b16 %v1180, %v1179
        %v1184 = vpack.c.b16 %v1182, %v1181
        %v1188 = vsel %vm914, %v1171, 0
        %1190 = vmatpush.bf16.msra.mxu0 0
        %1191 = vmatpush.bf16.msra.mxu0 0
        %1192 = vmatpush.bf16.msra.mxu0 0
        %1193 = vmatpush.bf16.msra.mxu0 0
        %1194 = vmatpush.bf16.msra.mxu0 0
        %1195 = vmatpush.bf16.msra.mxu0 0
        %1196 = vmatpush.bf16.msra.mxu0 %v1184
        %1197 = vmatpush.bf16.msra.mxu0 %v1183
        %1198 = vmatmul.bf16.gmra.mxu0 %v1188
        %v1199 = vpop.f32.mrf.mxu0
        %v1200 = vadd.f32 %v1173, %v1199
        %v1201 = vpop.f32.mrf.mxu0
        %1202 = vdwg.mxu0
        %v1203 = vmul.f32 %v1200, 0.5
        %v1204 = vmul.f32 %v1200, 0.70710677
        %v1205 = vmul.f32 %v1204, %v1204
        %v1206 = vmin.f32 16.0, %v1205
        %v1207 = vmul.f32 %v1206, 2.1237322e-06
        %v1208 = vadd.f32 %v1207, 0.00028619796
        %v1209 = vmul.f32 %v1206, %v1208
        %v1210 = vadd.f32 %v1209, 0.0036580483
        %v1211 = vmul.f32 %v1206, %v1210
        %v1212 = vadd.f32 %v1211, 0.05243302
        %v1213 = vmul.f32 %v1206, %v1212
        %v1214 = vadd.f32 %v1213, 0.18741608
        %v1215 = vmul.f32 %v1206, %v1214
        %v1216 = vadd.f32 %v1215, 1.1283791
        %v1217 = vmul.f32 %v1204, %v1216
        %v1218 = vmul.f32 %v1206, 3.8918573e-05
        %v1219 = vadd.f32 %v1218, 0.001143296
        %v1220 = vmul.f32 %v1206, %v1219
        %v1221 = vadd.f32 %v1220, 0.014752088
        %v1222 = vmul.f32 %v1206, %v1221
        %v1223 = vadd.f32 %v1222, 0.112945676
        %v1224 = vmul.f32 %v1206, %v1223
        %v1225 = vadd.f32 %v1224, 0.4994258
        %v1226 = vmul.f32 %v1206, %v1225
        %v1227 = vadd.f32 %v1226, 1.0
        %v1228 = vrcp.pop %v1227
        %v1229 = vmul.f32 %v1227, %v1228
        %v1230 = vsub.f32 1.0, %v1229
        %v1231 = vmul.f32 %v1228, %v1230
        %v1232 = vadd.f32 %v1228, %v1231
        %vm1233 = vweird.f32 %v1227
        %vm1234 = vweird.f32 %v1228
        %vm1235 = vmor %vm1233, %vm1234
        %v1236 = vsel %vm1235, %v1228, %v1232
        %v1237 = vand.u32 2147483647, %v1227
        %vm1238 = vcmp.eq.f32.partialorder %v1237, 8.507059e+37
        %v1239 = vand.u32 %v1227, 2147483648
        %v1240 = vor.u32 1.1754944e-38, %v1239
        %v1241 = vsel %vm1238, %v1240, %v1236
        %v1242 = vmul.f32 %v1217, %v1241
        %v1243 = vmin.f32 %v1242, 1.0
        %v1244 = vmax.f32 %v1243, -1.0
        %v1245 = vadd.f32 %v1244, 1.0
        %v1246 = vmul.f32 %v1203, %v1245
        %v1247 = vpack.c.bf16 %v1246, %v1246
        %v1248 = vperm.slane %v1131, 2
        %v1257 = vunpack.c.l.b16 %v1137
        %v1258 = vunpack.c.l.b16 %v1138
        %v1259 = vunpack.c.l.b16 %v1139
        %v1260 = vunpack.c.l.b16 %v1140
        %v1261 = vunpack.c.l.b16 %v1141
        %v1262 = vunpack.c.l.b16 %v1142
        %v1263 = vunpack.c.l.b16 %v1143
        %v1264 = vunpack.c.l.b16 %v1144
        %v1265 = vpack.c.b16 %v1258, %v1257
        %v1266 = vpack.c.b16 %v1260, %v1259
        %v1267 = vpack.c.b16 %v1262, %v1261
        %v1268 = vpack.c.b16 %v1264, %v1263
        %vm1273 = vcmask 523264
        %v1275 = vsel %vm1273, %v1247, 0
        %1277 = vmatpush.bf16.msra.mxu0 0
        %1278 = vmatpush.bf16.msra.mxu0 0
        %1279 = vmatpush.bf16.msra.mxu0 0
        %1280 = vmatpush.bf16.msra.mxu0 0
        %1281 = vmatpush.bf16.msra.mxu0 %v1268
        %1282 = vmatpush.bf16.msra.mxu0 %v1267
        %1283 = vmatpush.bf16.msra.mxu0 %v1266
        %1284 = vmatpush.bf16.msra.mxu0 %v1265
        %1285 = vmatmul.bf16.gmra.mxu0 %v1275
        %v1286 = vpop.f32.mrf.mxu0
        %v1287 = vadd.f32 %v1248, %v1286
        %v1288 = vpop.f32.mrf.mxu0
        %1289 = vdwg.mxu0
        %v1290 = vadd.f32 %v1130, %v1287
        %v1291 = vld [vmem:[%s20] sm:$0x3]
        %v1292 = vsel %vm914, %v1290, 0.0
        %1293 = vadd.xlane.f32.xlu0 %v1292
        %v1294 = vpop.xlane.xlu0 %1293
        %v1295 = vmul.f32 %v1294, %v924
        %v1296 = vsub.f32 %v1290, %v1295
        %v1297 = vmul.f32 %v1296, %v1296
        %v1298 = vsel %vm914, %v1297, 0.0
        %1299 = vadd.xlane.f32.xlu0 %v1298
        %v1300 = vpop.xlane.xlu0 %1299
        %v1301 = vmul.f32 %v1300, %v924
        %v1302 = vadd.f32 %v1301, 1e-05
        %v1303 = vrsqrt.pop %v1302
        %v1304 = vmul.f32 %v1303, %v1302
        %v1305 = vmul.f32 %v1304, %v1303
        %v1306 = vmul.f32 0.5, %v1305
        %v1307 = vsub.f32 1.5, %v1306
        %v1308 = vmul.f32 %v1303, %v1307
        %vm1309 = vweird.f32 %v1302
        %vm1310 = vweird.f32 %v1303
        %vm1311 = vmor %vm1309, %vm1310
        %v1312 = vsel %vm1311, %v1303, %v1308
        %v1313 = vmul.f32 %v1296, %v1312
        %v1314 = vperm.slane %v1291, 0
        %v1315 = vmul.f32 %v1313, %v1314
        %v1316 = vperm.slane %v1291, 1
        %v1317 = vadd.f32 %v1315, %v1316
        %v1318 = vld [vmem:[#allocation2] sm:$0x7]
        %v1319 = vld [vmem:[%s2] sm:$0xf]
        %v1320 = vld [vmem:[%s2 + $0x4] sm:$0xf]
        %v1321 = vld [vmem:[%s2 + $0x8] sm:$0xf]
        %v1322 = vld [vmem:[%s2 + $0xc] sm:$0xf]
        %v1323 = vld [vmem:[%s3] sm:$0xf]
        %v1324 = vld [vmem:[%s3 + $0x4] sm:$0xf]
        %v1325 = vld [vmem:[%s3 + $0x8] sm:$0xf]
        %v1326 = vld [vmem:[%s3 + $0xc] sm:$0xf]
        %v1327 = vsel %vm914, %v1317, 0.0
        %1328 = vadd.xlane.f32.xlu0 %v1327
        %v1329 = vpop.xlane.xlu0 %1328
        %v1330 = vmul.f32 %v1329, %v924
        %v1331 = vsub.f32 %v1317, %v1330
        %v1332 = vmul.f32 %v1331, %v1331
        %v1333 = vsel %vm914, %v1332, 0.0
        %1334 = vadd.xlane.f32.xlu0 %v1333
        %v1335 = vpop.xlane.xlu0 %1334
        %v1336 = vmul.f32 %v1335, %v924
        %v1337 = vadd.f32 %v1336, 1e-05
        %v1338 = vrsqrt.pop %v1337
        %v1339 = vmul.f32 %v1338, %v1337
        %v1340 = vmul.f32 %v1339, %v1338
        %v1341 = vmul.f32 0.5, %v1340
        %v1342 = vsub.f32 1.5, %v1341
        %v1343 = vmul.f32 %v1338, %v1342
        %vm1344 = vweird.f32 %v1337
        %vm1345 = vweird.f32 %v1338
        %vm1346 = vmor %vm1344, %vm1345
        %v1347 = vsel %vm1346, %v1338, %v1343
        %v1348 = vmul.f32 %v1331, %v1347
        %v1349 = vperm.slane %v1318, 0
        %v1350 = vmul.f32 %v1348, %v1349
        %v1351 = vperm.slane %v1318, 1
        %v1352 = vadd.f32 %v1350, %v1351
        %v1353 = vpack.c.bf16 %v1352, %v1352
        %v1354 = vpack.c.bf16 %v1317, %v1317
        %v1359 = vunpack.c.l.b16 %v1319
        %v1360 = vunpack.c.l.b16 %v1320
        %v1361 = vunpack.c.l.b16 %v1321
        %v1362 = vunpack.c.l.b16 %v1322
        %v1363 = vpack.c.b16 %v1360, %v1359
        %v1364 = vpack.c.b16 %v1362, %v1361
        %v1368 = vsel %vm914, %v1353, 0
        %1370 = vmatpush.bf16.msra.mxu0 0
        %1371 = vmatpush.bf16.msra.mxu0 0
        %1372 = vmatpush.bf16.msra.mxu0 0
        %1373 = vmatpush.bf16.msra.mxu0 0
        %1374 = vmatpush.bf16.msra.mxu0 0
        %1375 = vmatpush.bf16.msra.mxu0 0
        %1376 = vmatpush.bf16.msra.mxu0 %v1364
        %1377 = vmatpush.bf16.msra.mxu0 %v1363
        %1378 = vmatmul.bf16.gmra.mxu0 %v1368
        %v1379 = vpop.f32.mrf.mxu0
        %v1380 = vadd.f32 0.0, %v1379
        %v1381 = vpop.f32.mrf.mxu0
        %1382 = vdwg.mxu0
        %1383 = vrot.lane.b32.xlu0 %v1363, 96
        %v1384 = vpop.permute.xlu0 %1383
        %1385 = vrot.lane.b32.xlu0 %v1364, 96
        %v1386 = vpop.permute.xlu0 %1385
        %v1390 = vsel %vm914, %v1354, 0
        %1392 = vmatpush.bf16.msra.mxu0 0
        %1393 = vmatpush.bf16.msra.mxu0 0
        %1394 = vmatpush.bf16.msra.mxu0 0
        %1395 = vmatpush.bf16.msra.mxu0 0
        %1396 = vmatpush.bf16.msra.mxu0 0
        %1397 = vmatpush.bf16.msra.mxu0 0
        %1398 = vmatpush.bf16.msra.mxu0 %v1386
        %1399 = vmatpush.bf16.msra.mxu0 %v1384
        %1400 = vmatmul.bf16.gmra.mxu0 %v1390
        %v1401 = vpop.f32.mrf.mxu0
        %v1402 = vadd.f32 0.0, %v1401
        %v1403 = vpop.f32.mrf.mxu0
        %1404 = vdwg.mxu0
        %v1405 = vpack.c.bf16 %v1380, %v1380
        %v1406 = vpack.c.bf16 %v1402, %v1402
        %v1408 = vsel %vm983, %v1405, 0
        %v1411 = vsel %vm983, %v1406, 0
        %1413 = vmatpush.bf16.xpose.msra.mxu0 0
        %1414 = vmatpush.bf16.xpose.msra.mxu0 0
        %1415 = vmatpush.bf16.xpose.msra.mxu0 0
        %1416 = vmatpush.bf16.xpose.msra.mxu0 0
        %1417 = vmatpush.bf16.xpose.msra.mxu0 0
        %1418 = vmatpush.bf16.xpose.msra.mxu0 0
        %1419 = vmatpush.bf16.xpose.msra.mxu0 0
        %1420 = vmatpush.bf16.xpose.msra.mxu0 %v1411
        %1421 = vmatmul.bf16.gmra.mxu0 %v1408
        %v1422 = vpop.f32.mrf.mxu0
        %v1423 = vadd.f32 0.0, %v1422
        %v1424 = vpop.f32.mrf.mxu0
        %1425 = vdwg.mxu0
        %v1426 = vsel %vm1003, %v1423, -inf
        %1427 = vmax.xlane.f32.xlu0 %v1426
        %v1428 = vpop.xlane.xlu0 %1427
        %v1429 = vsub.f32 %v1423, %v1428
        %v1430 = vmul.f32 %v1429, 1.442695
        %v1431 = vpow.pop %v1430
        %v1432 = vsel %vm1003, %v1431, 0.0
        %1433 = vadd.xlane.f32.xlu0 %v1432
        %v1434 = vpop.xlane.xlu0 %1433
        %v1435 = vrcp.pop %v1434
        %v1436 = vmul.f32 %v1431, %v1435
        %v1437 = vpack.c.bf16 %v1436, %v1436
        %v1439 = vunpack.c.l.b16 %v1406
        %v1440 = vpack.c.b16 %v1439, %v1439
        %1441 = vrot.lane.b32.xlu0 %v1440, 96
        %v1442 = vpop.permute.xlu0 %1441
        %v1444 = vsel %vm1003, %v1437, 0
        %v1447 = vsel %vm1021, %v1442, 0
        %1449 = vmatpush.bf16.msra.mxu0 0
        %1450 = vmatpush.bf16.msra.mxu0 0
        %1451 = vmatpush.bf16.msra.mxu0 0
        %1452 = vmatpush.bf16.msra.mxu0 0
        %1453 = vmatpush.bf16.msra.mxu0 0
        %1454 = vmatpush.bf16.msra.mxu0 0
        %1455 = vmatpush.bf16.msra.mxu0 0
        %1456 = vmatpush.bf16.msra.mxu0 %v1447
        %1457 = vmatmul.bf16.gmra.mxu0 %v1444
        %v1458 = vpop.f32.mrf.mxu0
        %v1459 = vadd.f32 0.0, %v1458
        %v1460 = vpop.f32.mrf.mxu0
        %1461 = vdwg.mxu0
        %v1463 = vunpack.c.l.b16 %v1405
        %v1464 = vpack.c.b16 %v1463, %v1463
        %1465 = vrot.lane.b32.xlu0 %v1464, 112
        %v1466 = vpop.permute.xlu0 %1465
        %1467 = vrot.lane.b32.xlu0 %v1440, 112
        %v1468 = vpop.permute.xlu0 %1467
        %v1470 = vsel %vm983, %v1466, 0
        %v1473 = vsel %vm983, %v1468, 0
        %1475 = vmatpush.bf16.xpose.msra.mxu0 0
        %1476 = vmatpush.bf16.xpose.msra.mxu0 0
        %1477 = vmatpush.bf16.xpose.msra.mxu0 0
        %1478 = vmatpush.bf16.xpose.msra.mxu0 0
        %1479 = vmatpush.bf16.xpose.msra.mxu0 0
        %1480 = vmatpush.bf16.xpose.msra.mxu0 0
        %1481 = vmatpush.bf16.xpose.msra.mxu0 0
        %1482 = vmatpush.bf16.xpose.msra.mxu0 %v1473
        %1483 = vmatmul.bf16.gmra.mxu0 %v1470
        %v1484 = vpop.f32.mrf.mxu0
        %v1485 = vadd.f32 0.0, %v1484
        %v1486 = vpop.f32.mrf.mxu0
        %1487 = vdwg.mxu0
        %v1488 = vsel %vm1003, %v1485, -inf
        %1489 = vmax.xlane.f32.xlu0 %v1488
        %v1490 = vpop.xlane.xlu0 %1489
        %v1491 = vsub.f32 %v1485, %v1490
        %v1492 = vmul.f32 %v1491, 1.442695
        %v1493 = vpow.pop %v1492
        %v1494 = vsel %vm1003, %v1493, 0.0
        %1495 = vadd.xlane.f32.xlu0 %v1494
        %v1496 = vpop.xlane.xlu0 %1495
        %v1497 = vrcp.pop %v1496
        %v1498 = vmul.f32 %v1493, %v1497
        %v1499 = vpack.c.bf16 %v1498, %v1498
        %1500 = vrot.lane.b32.xlu0 %v1440, 80
        %v1501 = vpop.permute.xlu0 %1500
        %v1503 = vsel %vm1003, %v1499, 0
        %v1506 = vsel %vm1021, %v1501, 0
        %1508 = vmatpush.bf16.msra.mxu0 0
        %1509 = vmatpush.bf16.msra.mxu0 0
        %1510 = vmatpush.bf16.msra.mxu0 0
        %1511 = vmatpush.bf16.msra.mxu0 0
        %1512 = vmatpush.bf16.msra.mxu0 0
        %1513 = vmatpush.bf16.msra.mxu0 0
        %1514 = vmatpush.bf16.msra.mxu0 0
        %1515 = vmatpush.bf16.msra.mxu0 %v1506
        %1516 = vmatmul.bf16.gmra.mxu0 %v1503
        %v1517 = vpop.f32.mrf.mxu0
        %v1518 = vadd.f32 0.0, %v1517
        %v1519 = vpop.f32.mrf.mxu0
        %1520 = vdwg.mxu0
        %1522 = vrot.lane.b32.xlu0 %v1518, 16
        %v1523 = vpop.permute.xlu0 %1522
        %v1525 = vsel %vm983, %v1459, %v1523
        %v1526 = vpack.c.bf16 %v1525, %v1525
        %v1531 = vunpack.c.l.b16 %v1323
        %v1532 = vunpack.c.l.b16 %v1324
        %v1533 = vunpack.c.l.b16 %v1325
        %v1534 = vunpack.c.l.b16 %v1326
        %v1535 = vpack.c.b16 %v1532, %v1531
        %v1536 = vpack.c.b16 %v1534, %v1533
        %v1540 = vsel %vm914, %v1526, 0
        %1542 = vmatpush.bf16.msra.mxu0 0
        %1543 = vmatpush.bf16.msra.mxu0 0
        %1544 = vmatpush.bf16.msra.mxu0 0
        %1545 = vmatpush.bf16.msra.mxu0 0
        %1546 = vmatpush.bf16.msra.mxu0 0
        %1547 = vmatpush.bf16.msra.mxu0 0
        %1548 = vmatpush.bf16.msra.mxu0 %v1536
        %1549 = vmatpush.bf16.msra.mxu0 %v1535
        %1550 = vmatmul.bf16.gmra.mxu0 %v1540
        %v1551 = vpop.f32.mrf.mxu0
        %v1552 = vadd.f32 0.0, %v1551
        %v1553 = vpop.f32.mrf.mxu0
        %1554 = vdwg.mxu0
        %v1555 = vperm.slane %v1318, 2
        %v1556 = vadd.f32 %v1552, %v1555
        %v1557 = vadd.f32 %v1317, %v1556
        %v1558 = vld [vmem:[#allocation5] sm:$0x7]
        %v1559 = vld [vmem:[#allocation7] sm:$0xf]
        %v1560 = vld [vmem:[#allocation7 + $0x4] sm:$0xf]
        %v1561 = vld [vmem:[#allocation7 + $0x8] sm:$0xf]
        %v1562 = vld [vmem:[#allocation7 + $0xc] sm:$0xf]
        %v1563 = vld [vmem:[#allocation8] sm:$0xf]
        %v1564 = vld [vmem:[#allocation8 + $0x4] sm:$0xf]
        %v1565 = vld [vmem:[#allocation8 + $0x8] sm:$0xf]
        %v1566 = vld [vmem:[#allocation8 + $0xc] sm:$0xf]
        %v1567 = vperm.slane %v1558, 0
        %v1568 = vmul.f32 %v1348, %v1567
        %v1569 = vperm.slane %v1558, 1
        %v1570 = vadd.f32 %v1568, %v1569
        %v1571 = vpack.c.bf16 %v1570, %v1570
        %v1572 = vpack.c.bf16 %v1557, %v1557
        %v1577 = vunpack.c.l.b16 %v1559
        %v1578 = vunpack.c.l.b16 %v1560
        %v1579 = vunpack.c.l.b16 %v1561
        %v1580 = vunpack.c.l.b16 %v1562
        %v1581 = vpack.c.b16 %v1578, %v1577
        %v1582 = vpack.c.b16 %v1580, %v1579
        %v1586 = vsel %vm914, %v1571, 0
        %1588 = vmatpush.bf16.msra.mxu0 0
        %1589 = vmatpush.bf16.msra.mxu0 0
        %1590 = vmatpush.bf16.msra.mxu0 0
        %1591 = vmatpush.bf16.msra.mxu0 0
        %1592 = vmatpush.bf16.msra.mxu0 0
        %1593 = vmatpush.bf16.msra.mxu0 0
        %1594 = vmatpush.bf16.msra.mxu0 %v1582
        %1595 = vmatpush.bf16.msra.mxu0 %v1581
        %1596 = vmatmul.bf16.gmra.mxu0 %v1586
        %v1597 = vpop.f32.mrf.mxu0
        %v1598 = vadd.f32 0.0, %v1597
        %v1599 = vpop.f32.mrf.mxu0
        %1600 = vdwg.mxu0
        %1601 = vrot.lane.b32.xlu0 %v1581, 96
        %v1602 = vpop.permute.xlu0 %1601
        %1603 = vrot.lane.b32.xlu0 %v1582, 96
        %v1604 = vpop.permute.xlu0 %1603
        %v1608 = vsel %vm914, %v1572, 0
        %1610 = vmatpush.bf16.msra.mxu0 0
        %1611 = vmatpush.bf16.msra.mxu0 0
        %1612 = vmatpush.bf16.msra.mxu0 0
        %1613 = vmatpush.bf16.msra.mxu0 0
        %1614 = vmatpush.bf16.msra.mxu0 0
        %1615 = vmatpush.bf16.msra.mxu0 0
        %1616 = vmatpush.bf16.msra.mxu0 %v1604
        %1617 = vmatpush.bf16.msra.mxu0 %v1602
        %1618 = vmatmul.bf16.gmra.mxu0 %v1608
        %v1619 = vpop.f32.mrf.mxu0
        %v1620 = vadd.f32 0.0, %v1619
        %v1621 = vpop.f32.mrf.mxu0
        %1622 = vdwg.mxu0
        %v1623 = vpack.c.bf16 %v1598, %v1598
        %v1624 = vpack.c.bf16 %v1620, %v1620
        %v1626 = vsel %vm983, %v1623, 0
        %v1629 = vsel %vm983, %v1624, 0
        %1631 = vmatpush.bf16.xpose.msra.mxu0 0
        %1632 = vmatpush.bf16.xpose.msra.mxu0 0
        %1633 = vmatpush.bf16.xpose.msra.mxu0 0
        %1634 = vmatpush.bf16.xpose.msra.mxu0 0
        %1635 = vmatpush.bf16.xpose.msra.mxu0 0
        %1636 = vmatpush.bf16.xpose.msra.mxu0 0
        %1637 = vmatpush.bf16.xpose.msra.mxu0 0
        %1638 = vmatpush.bf16.xpose.msra.mxu0 %v1629
        %1639 = vmatmul.bf16.gmra.mxu0 %v1626
        %v1640 = vpop.f32.mrf.mxu0
        %v1641 = vadd.f32 0.0, %v1640
        %v1642 = vpop.f32.mrf.mxu0
        %1643 = vdwg.mxu0
        %v1644 = vsel %vm1003, %v1641, -inf
        %1645 = vmax.xlane.f32.xlu0 %v1644
        %v1646 = vpop.xlane.xlu0 %1645
        %v1647 = vsub.f32 %v1641, %v1646
        %v1648 = vmul.f32 %v1647, 1.442695
        %v1649 = vpow.pop %v1648
        %v1650 = vsel %vm1003, %v1649, 0.0
        %1651 = vadd.xlane.f32.xlu0 %v1650
        %v1652 = vpop.xlane.xlu0 %1651
        %v1653 = vrcp.pop %v1652
        %v1654 = vmul.f32 %v1649, %v1653
        %v1655 = vpack.c.bf16 %v1654, %v1654
        %v1657 = vunpack.c.l.b16 %v1624
        %v1658 = vpack.c.b16 %v1657, %v1657
        %1659 = vrot.lane.b32.xlu0 %v1658, 96
        %v1660 = vpop.permute.xlu0 %1659
        %v1662 = vsel %vm1003, %v1655, 0
        %v1665 = vsel %vm1021, %v1660, 0
        %1667 = vmatpush.bf16.msra.mxu0 0
        %1668 = vmatpush.bf16.msra.mxu0 0
        %1669 = vmatpush.bf16.msra.mxu0 0
        %1670 = vmatpush.bf16.msra.mxu0 0
        %1671 = vmatpush.bf16.msra.mxu0 0
        %1672 = vmatpush.bf16.msra.mxu0 0
        %1673 = vmatpush.bf16.msra.mxu0 0
        %1674 = vmatpush.bf16.msra.mxu0 %v1665
        %1675 = vmatmul.bf16.gmra.mxu0 %v1662
        %v1676 = vpop.f32.mrf.mxu0
        %v1677 = vadd.f32 0.0, %v1676
        %v1678 = vpop.f32.mrf.mxu0
        %1679 = vdwg.mxu0
        %v1681 = vunpack.c.l.b16 %v1623
        %v1682 = vpack.c.b16 %v1681, %v1681
        %1683 = vrot.lane.b32.xlu0 %v1682, 112
        %v1684 = vpop.permute.xlu0 %1683
        %1685 = vrot.lane.b32.xlu0 %v1658, 112
        %v1686 = vpop.permute.xlu0 %1685
        %v1688 = vsel %vm983, %v1684, 0
        %v1691 = vsel %vm983, %v1686, 0
        %1693 = vmatpush.bf16.xpose.msra.mxu0 0
        %1694 = vmatpush.bf16.xpose.msra.mxu0 0
        %1695 = vmatpush.bf16.xpose.msra.mxu0 0
        %1696 = vmatpush.bf16.xpose.msra.mxu0 0
        %1697 = vmatpush.bf16.xpose.msra.mxu0 0
        %1698 = vmatpush.bf16.xpose.msra.mxu0 0
        %1699 = vmatpush.bf16.xpose.msra.mxu0 0
        %1700 = vmatpush.bf16.xpose.msra.mxu0 %v1691
        %1701 = vmatmul.bf16.gmra.mxu0 %v1688
        %v1702 = vpop.f32.mrf.mxu0
        %v1703 = vadd.f32 0.0, %v1702
        %v1704 = vpop.f32.mrf.mxu0
        %1705 = vdwg.mxu0
        %v1706 = vsel %vm1003, %v1703, -inf
        %1707 = vmax.xlane.f32.xlu0 %v1706
        %v1708 = vpop.xlane.xlu0 %1707
        %v1709 = vsub.f32 %v1703, %v1708
        %v1710 = vmul.f32 %v1709, 1.442695
        %v1711 = vpow.pop %v1710
        %v1712 = vsel %vm1003, %v1711, 0.0
        %1713 = vadd.xlane.f32.xlu0 %v1712
        %v1714 = vpop.xlane.xlu0 %1713
        %v1715 = vrcp.pop %v1714
        %v1716 = vmul.f32 %v1711, %v1715
        %v1717 = vpack.c.bf16 %v1716, %v1716
        %1718 = vrot.lane.b32.xlu0 %v1658, 80
        %v1719 = vpop.permute.xlu0 %1718
        %v1721 = vsel %vm1003, %v1717, 0
        %v1724 = vsel %vm1021, %v1719, 0
        %1726 = vmatpush.bf16.msra.mxu0 0
        %1727 = vmatpush.bf16.msra.mxu0 0
        %1728 = vmatpush.bf16.msra.mxu0 0
        %1729 = vmatpush.bf16.msra.mxu0 0
        %1730 = vmatpush.bf16.msra.mxu0 0
        %1731 = vmatpush.bf16.msra.mxu0 0
        %1732 = vmatpush.bf16.msra.mxu0 0
        %1733 = vmatpush.bf16.msra.mxu0 %v1724
        %1734 = vmatmul.bf16.gmra.mxu0 %v1721
        %v1735 = vpop.f32.mrf.mxu0
        %v1736 = vadd.f32 0.0, %v1735
        %v1737 = vpop.f32.mrf.mxu0
        %1738 = vdwg.mxu0
        %1740 = vrot.lane.b32.xlu0 %v1736, 16
        %v1741 = vpop.permute.xlu0 %1740
        %v1743 = vsel %vm983, %v1677, %v1741
        %v1744 = vpack.c.bf16 %v1743, %v1743
        %v1749 = vunpack.c.l.b16 %v1563
        %v1750 = vunpack.c.l.b16 %v1564
        %v1751 = vunpack.c.l.b16 %v1565
        %v1752 = vunpack.c.l.b16 %v1566
        %v1753 = vpack.c.b16 %v1750, %v1749
        %v1754 = vpack.c.b16 %v1752, %v1751
        %v1758 = vsel %vm914, %v1744, 0
        %1760 = vmatpush.bf16.msra.mxu0 0
        %1761 = vmatpush.bf16.msra.mxu0 0
        %1762 = vmatpush.bf16.msra.mxu0 0
        %1763 = vmatpush.bf16.msra.mxu0 0
        %1764 = vmatpush.bf16.msra.mxu0 0
        %1765 = vmatpush.bf16.msra.mxu0 0
        %1766 = vmatpush.bf16.msra.mxu0 %v1754
        %1767 = vmatpush.bf16.msra.mxu0 %v1753
        %1768 = vmatmul.bf16.gmra.mxu0 %v1758
        %v1769 = vpop.f32.mrf.mxu0
        %v1770 = vadd.f32 0.0, %v1769
        %v1771 = vpop.f32.mrf.mxu0
        %1772 = vdwg.mxu0
        %v1773 = vperm.slane %v1558, 2
        %v1774 = vadd.f32 %v1770, %v1773
        %v1775 = vadd.f32 %v1317, %v1774
        %v1776 = vld [vmem:[#allocation10] sm:$0x7]
        %v1777 = vld [vmem:[#allocation11] sm:$0xf]
        %v1778 = vld [vmem:[#allocation11 + $0x4] sm:$0xf]
        %v1779 = vld [vmem:[#allocation11 + $0x8] sm:$0xf]
        %v1780 = vld [vmem:[#allocation11 + $0xc] sm:$0xf]
        %v1781 = vld [vmem:[#allocation13] sm:$0xf]
        %v1782 = vld [vmem:[#allocation13 + $0x4] sm:$0xf]
        %v1783 = vld [vmem:[#allocation13 + $0x8] sm:$0xf]
        %v1784 = vld [vmem:[#allocation13 + $0xc] sm:$0xf]
        %v1785 = vsel %vm914, %v1557, 0.0
        %1786 = vadd.xlane.f32.xlu0 %v1785
        %v1787 = vpop.xlane.xlu0 %1786
        %v1788 = vmul.f32 %v1787, %v924
        %v1789 = vsub.f32 %v1557, %v1788
        %v1790 = vmul.f32 %v1789, %v1789
        %v1791 = vsel %vm914, %v1790, 0.0
        %1792 = vadd.xlane.f32.xlu0 %v1791
        %v1793 = vpop.xlane.xlu0 %1792
        %v1794 = vmul.f32 %v1793, %v924
        %v1795 = vadd.f32 %v1794, 1e-05
        %v1796 = vrsqrt.pop %v1795
        %v1797 = vmul.f32 %v1796, %v1795
        %v1798 = vmul.f32 %v1797, %v1796
        %v1799 = vmul.f32 0.5, %v1798
        %v1800 = vsub.f32 1.5, %v1799
        %v1801 = vmul.f32 %v1796, %v1800
        %vm1802 = vweird.f32 %v1795
        %vm1803 = vweird.f32 %v1796
        %vm1804 = vmor %vm1802, %vm1803
        %v1805 = vsel %vm1804, %v1796, %v1801
        %v1806 = vmul.f32 %v1789, %v1805
        %v1807 = vperm.slane %v1776, 0
        %v1808 = vmul.f32 %v1806, %v1807
        %v1809 = vperm.slane %v1776, 1
        %v1810 = vadd.f32 %v1808, %v1809
        %v1811 = vpack.c.bf16 %v1810, %v1810
        %v1812 = vpack.c.bf16 %v1775, %v1775
        %v1817 = vunpack.c.l.b16 %v1777
        %v1818 = vunpack.c.l.b16 %v1778
        %v1819 = vunpack.c.l.b16 %v1779
        %v1820 = vunpack.c.l.b16 %v1780
        %v1821 = vpack.c.b16 %v1818, %v1817
        %v1822 = vpack.c.b16 %v1820, %v1819
        %v1826 = vsel %vm914, %v1811, 0
        %1828 = vmatpush.bf16.msra.mxu0 0
        %1829 = vmatpush.bf16.msra.mxu0 0
        %1830 = vmatpush.bf16.msra.mxu0 0
        %1831 = vmatpush.bf16.msra.mxu0 0
        %1832 = vmatpush.bf16.msra.mxu0 0
        %1833 = vmatpush.bf16.msra.mxu0 0
        %1834 = vmatpush.bf16.msra.mxu0 %v1822
        %1835 = vmatpush.bf16.msra.mxu0 %v1821
        %1836 = vmatmul.bf16.gmra.mxu0 %v1826
        %v1837 = vpop.f32.mrf.mxu0
        %v1838 = vadd.f32 0.0, %v1837
        %v1839 = vpop.f32.mrf.mxu0
        %1840 = vdwg.mxu0
        %1841 = vrot.lane.b32.xlu0 %v1821, 96
        %v1842 = vpop.permute.xlu0 %1841
        %1843 = vrot.lane.b32.xlu0 %v1822, 96
        %v1844 = vpop.permute.xlu0 %1843
        %v1848 = vsel %vm914, %v1812, 0
        %1850 = vmatpush.bf16.msra.mxu0 0
        %1851 = vmatpush.bf16.msra.mxu0 0
        %1852 = vmatpush.bf16.msra.mxu0 0
        %1853 = vmatpush.bf16.msra.mxu0 0
        %1854 = vmatpush.bf16.msra.mxu0 0
        %1855 = vmatpush.bf16.msra.mxu0 0
        %1856 = vmatpush.bf16.msra.mxu0 %v1844
        %1857 = vmatpush.bf16.msra.mxu0 %v1842
        %1858 = vmatmul.bf16.gmra.mxu0 %v1848
        %v1859 = vpop.f32.mrf.mxu0
        %v1860 = vadd.f32 0.0, %v1859
        %v1861 = vpop.f32.mrf.mxu0
        %1862 = vdwg.mxu0
        %v1863 = vpack.c.bf16 %v1838, %v1838
        %v1864 = vpack.c.bf16 %v1860, %v1860
        %v1866 = vsel %vm983, %v1863, 0
        %v1869 = vsel %vm983, %v1864, 0
        %1871 = vmatpush.bf16.xpose.msra.mxu0 0
        %1872 = vmatpush.bf16.xpose.msra.mxu0 0
        %1873 = vmatpush.bf16.xpose.msra.mxu0 0
        %1874 = vmatpush.bf16.xpose.msra.mxu0 0
        %1875 = vmatpush.bf16.xpose.msra.mxu0 0
        %1876 = vmatpush.bf16.xpose.msra.mxu0 0
        %1877 = vmatpush.bf16.xpose.msra.mxu0 0
        %1878 = vmatpush.bf16.xpose.msra.mxu0 %v1869
        %1879 = vmatmul.bf16.gmra.mxu0 %v1866
        %v1880 = vpop.f32.mrf.mxu0
        %v1881 = vadd.f32 0.0, %v1880
        %v1882 = vpop.f32.mrf.mxu0
        %1883 = vdwg.mxu0
        %v1884 = vsel %vm1003, %v1881, -inf
        %1885 = vmax.xlane.f32.xlu0 %v1884
        %v1886 = vpop.xlane.xlu0 %1885
        %v1887 = vsub.f32 %v1881, %v1886
        %v1888 = vmul.f32 %v1887, 1.442695
        %v1889 = vpow.pop %v1888
        %v1890 = vsel %vm1003, %v1889, 0.0
        %1891 = vadd.xlane.f32.xlu0 %v1890
        %v1892 = vpop.xlane.xlu0 %1891
        %v1893 = vrcp.pop %v1892
        %v1894 = vmul.f32 %v1889, %v1893
        %v1895 = vpack.c.bf16 %v1894, %v1894
        %v1897 = vunpack.c.l.b16 %v1864
        %v1898 = vpack.c.b16 %v1897, %v1897
        %1899 = vrot.lane.b32.xlu0 %v1898, 96
        %v1900 = vpop.permute.xlu0 %1899
        %v1902 = vsel %vm1003, %v1895, 0
        %v1905 = vsel %vm1021, %v1900, 0
        %1907 = vmatpush.bf16.msra.mxu0 0
        %1908 = vmatpush.bf16.msra.mxu0 0
        %1909 = vmatpush.bf16.msra.mxu0 0
        %1910 = vmatpush.bf16.msra.mxu0 0
        %1911 = vmatpush.bf16.msra.mxu0 0
        %1912 = vmatpush.bf16.msra.mxu0 0
        %1913 = vmatpush.bf16.msra.mxu0 0
        %1914 = vmatpush.bf16.msra.mxu0 %v1905
        %1915 = vmatmul.bf16.gmra.mxu0 %v1902
        %v1916 = vpop.f32.mrf.mxu0
        %v1917 = vadd.f32 0.0, %v1916
        %v1918 = vpop.f32.mrf.mxu0
        %1919 = vdwg.mxu0
        %v1921 = vunpack.c.l.b16 %v1863
        %v1922 = vpack.c.b16 %v1921, %v1921
        %1923 = vrot.lane.b32.xlu0 %v1922, 112
        %v1924 = vpop.permute.xlu0 %1923
        %1925 = vrot.lane.b32.xlu0 %v1898, 112
        %v1926 = vpop.permute.xlu0 %1925
        %v1928 = vsel %vm983, %v1924, 0
        %v1931 = vsel %vm983, %v1926, 0
        %1933 = vmatpush.bf16.xpose.msra.mxu0 0
        %1934 = vmatpush.bf16.xpose.msra.mxu0 0
        %1935 = vmatpush.bf16.xpose.msra.mxu0 0
        %1936 = vmatpush.bf16.xpose.msra.mxu0 0
        %1937 = vmatpush.bf16.xpose.msra.mxu0 0
        %1938 = vmatpush.bf16.xpose.msra.mxu0 0
        %1939 = vmatpush.bf16.xpose.msra.mxu0 0
        %1940 = vmatpush.bf16.xpose.msra.mxu0 %v1931
        %1941 = vmatmul.bf16.gmra.mxu0 %v1928
        %v1942 = vpop.f32.mrf.mxu0
        %v1943 = vadd.f32 0.0, %v1942
        %v1944 = vpop.f32.mrf.mxu0
        %1945 = vdwg.mxu0
        %v1946 = vsel %vm1003, %v1943, -inf
        %1947 = vmax.xlane.f32.xlu0 %v1946
        %v1948 = vpop.xlane.xlu0 %1947
        %v1949 = vsub.f32 %v1943, %v1948
        %v1950 = vmul.f32 %v1949, 1.442695
        %v1951 = vpow.pop %v1950
        %v1952 = vsel %vm1003, %v1951, 0.0
        %1953 = vadd.xlane.f32.xlu0 %v1952
        %v1954 = vpop.xlane.xlu0 %1953
        %v1955 = vrcp.pop %v1954
        %v1956 = vmul.f32 %v1951, %v1955
        %v1957 = vpack.c.bf16 %v1956, %v1956
        %1958 = vrot.lane.b32.xlu0 %v1898, 80
        %v1959 = vpop.permute.xlu0 %1958
        %v1961 = vsel %vm1003, %v1957, 0
        %v1964 = vsel %vm1021, %v1959, 0
        %1966 = vmatpush.bf16.msra.mxu0 0
        %1967 = vmatpush.bf16.msra.mxu0 0
        %1968 = vmatpush.bf16.msra.mxu0 0
        %1969 = vmatpush.bf16.msra.mxu0 0
        %1970 = vmatpush.bf16.msra.mxu0 0
        %1971 = vmatpush.bf16.msra.mxu0 0
        %1972 = vmatpush.bf16.msra.mxu0 0
        %1973 = vmatpush.bf16.msra.mxu0 %v1964
        %1974 = vmatmul.bf16.gmra.mxu0 %v1961
        %v1975 = vpop.f32.mrf.mxu0
        %v1976 = vadd.f32 0.0, %v1975
        %v1977 = vpop.f32.mrf.mxu0
        %1978 = vdwg.mxu0
        %1980 = vrot.lane.b32.xlu0 %v1976, 16
        %v1981 = vpop.permute.xlu0 %1980
        %v1983 = vsel %vm983, %v1917, %v1981
        %v1984 = vpack.c.bf16 %v1983, %v1983
        %v1989 = vunpack.c.l.b16 %v1781
        %v1990 = vunpack.c.l.b16 %v1782
        %v1991 = vunpack.c.l.b16 %v1783
        %v1992 = vunpack.c.l.b16 %v1784
        %v1993 = vpack.c.b16 %v1990, %v1989
        %v1994 = vpack.c.b16 %v1992, %v1991
        %v1998 = vsel %vm914, %v1984, 0
        %2000 = vmatpush.bf16.msra.mxu0 0
        %2001 = vmatpush.bf16.msra.mxu0 0
        %2002 = vmatpush.bf16.msra.mxu0 0
        %2003 = vmatpush.bf16.msra.mxu0 0
        %2004 = vmatpush.bf16.msra.mxu0 0
        %2005 = vmatpush.bf16.msra.mxu0 0
        %2006 = vmatpush.bf16.msra.mxu0 %v1994
        %2007 = vmatpush.bf16.msra.mxu0 %v1993
        %2008 = vmatmul.bf16.gmra.mxu0 %v1998
        %v2009 = vpop.f32.mrf.mxu0
        %v2010 = vadd.f32 0.0, %v2009
        %v2011 = vpop.f32.mrf.mxu0
        %2012 = vdwg.mxu0
        %v2013 = vperm.slane %v1776, 2
        %v2014 = vadd.f32 %v2010, %v2013
        %v2015 = vadd.f32 %v1557, %v2014
        %2016 = vst.msk [vmem:[%s898] sm:$0xff] %vm914, %v2015
        %s2017 = sand.u32 %s498, 1
        %s2018 = scalar_lea.sflag [#allocation4], %s2017
        %s2019 = sand.u32 %s498, 1
        %s2020 = smul.addr %s2019, 8
        %s2021 = scalar_lea.vmem [#allocation28], %s2020
        // Predicated region
        $region169: #{tpu_custom_call.1} parent=103 // pred_check
          %p2022 = pneg %p508
        $region170: #{tpu_custom_call.1} parent=103 // pred_check_branch
          %2024 = sbr.rel (%p2022) target = $region172
        $region171: #{tpu_custom_call.1} parent=103 // pred_region
          %2026 = vsyncadd %s2018, 0
          %s2027 = smul.addr %s44, 8
          %s2028 = scalar_lea.hbm %s21, %s2027
          %s2030 = sshll.u32 %s2021, 4
          %s2031 = int_to_ptr.vmem [resolvable:$true] %s2030
          %s2032 = sshll.u32 %s2028, 4
          %s2033 = int_to_ptr.hbm [resolvable:$true] %s2032
          %2035 = dma.vmem_to_hbm [thread:$0]  %s2031, 128, %s2033, %s2018
        $region172: #{tpu_custom_call.1} parent=103 // pred_fallthru
          _
      $region104: #{tpu_custom_call.1} parent=5 // pred_fallthru
        _
      %p2036 = scmp.le.s32.totalorder 2, %s39
      // Predicated region
      $region173: #{tpu_custom_call.1} parent=5 // pred_check
        %p2037 = pneg %p2036
      $region174: #{tpu_custom_call.1} parent=5 // pred_check_branch
        %2039 = sbr.rel (%p2037) target = $region176
      $region175: #{tpu_custom_call.1} parent=5 // pred_region
        %s2040 = ssub.s32 %s39, 2
        // Predicated region
        $region177: #{tpu_custom_call.1} parent=175 // pred_check
          %p2041 = pneg %p514
        $region178: #{tpu_custom_call.1} parent=175 // pred_check_branch
          %2043 = sbr.rel (%p2041) target = $region180
        $region179: #{tpu_custom_call.1} parent=175 // pred_region
          %s2044 = sand.u32 %s499, 1
          %s2045 = scalar_lea.sflag [#allocation4], %s2044
          %s2046 = sand.u32 %s499, 1
          %s2047 = smul.addr %s2046, 8
          %s2048 = scalar_lea.vmem [#allocation28], %s2047
          %2050 = dma.done %s2045, 128
        $region180: #{tpu_custom_call.1} parent=175 // pred_fallthru
          _
      $region176: #{tpu_custom_call.1} parent=5 // pred_fallthru
        _
    $region6: #{tpu_custom_call.1} parent=1 // loop_footer
      %s43 = sadd.s32 1, %s39
    $region7: #{tpu_custom_call.1} parent=1 // loop_footer_branch
      %38 = sbr.rel target = $region3
    $region8: #{tpu_custom_call.1} parent=1 // loop_exit
      _
    %2051 = vsyncpa [#allocation3], 1
    %s2052 = scalar_lea.sflag [#allocation3], 1
    %2053 = vsyncpa %s2052, 1
    %2054 = vsyncpa [#allocation6], 1
    %2055 = vsyncpa [#allocation9], 1
    %2056 = vsyncpa [#allocation12], 1
    %2057 = vsyncpa [#allocation15], 1
    %2058 = vsyncpa [#allocation18], 1
    %2059 = vsyncpa [#allocation21], 1
    %2060 = vsyncpa [#allocation24], 1
    %2061 = vsyncpa [#allocation27], 1
    %2062 = vsyncpa [#allocation4], 1
    %s2063 = scalar_lea.sflag [#allocation4], 1
    %2064 = vsyncpa %s2063, 1

</llo_original>
